<compile_context>
chip_gen: v6e
topology: v6e:2x2x1
jax: 0.10.0
libtpu: 0.0.40
codegen_flags: <defaults>
</compile_context>

<pallas_src>
import functools

import jax
import jax.numpy as jnp
from jax import lax
from jax.experimental import pallas as pl
from jax.experimental.pallas import tpu as pltpu


def _downsample_kernel(x_ref, top_ref, bot_ref, w_ref, o_ref, xpad_ref, *, precision):
    """One (batch, H-tile) step of Conv3x3(pad=1) + PixelUnshuffle(2).

    x_ref   : (TH, W/2, 2C)      tile, width pre-split as lane index = phase*C + c
    top_ref : (1,  W/2, 2C)      row above the tile (ignored at the top edge)
    bot_ref : (1,  W/2, 2C)      row below the tile (ignored at the bottom edge)
    w_ref   : (9C, Co)           conv weight, rows ordered (kh, kw, c_in)
    o_ref   : (TH/2, W/2, 4*Co)  fused output, channels ordered (row i, col j, c)
    xpad_ref: (TH+2, W/2+2, 2C)  VMEM scratch: zero-padded halo tile
    """
    ti = pl.program_id(1)
    n_t = pl.num_programs(1)
    TH, W2, C2 = x_ref.shape
    C = C2 // 2
    Co = w_ref.shape[1]
    TH2 = TH // 2

    # ---- fused zero padding: build the halo tile in VMEM (no HBM pad pass) ----
    xpad_ref[...] = jnp.zeros_like(xpad_ref)          # borders + edge-halo rows
    xpad_ref[1:TH + 1, 1:W2 + 1, :] = x_ref[...]

    @pl.when(ti > 0)
    def _():
        xpad_ref[0, 1:W2 + 1, :] = top_ref[0]

    @pl.when(ti < n_t - 1)
    def _():
        xpad_ref[TH + 1, 1:W2 + 1, :] = bot_ref[0]

    w = w_ref[...]                                    # hoisted, cast in wrapper

    def tap(kh, col0, ch0):
        # (TH, W2, C) input patch for one (kh, kw) tap of one output column phase.
        return xpad_ref[kh:kh + TH, col0:col0 + W2, ch0:ch0 + C]

    # (xpad column offset, channel offset) for kw = 0, 1, 2, per output column phase j.
    # phase j=0 reads input columns 2w-1, 2w, 2w+1 ; phase j=1 reads 2w, 2w+1, 2w+2.
    col_taps = (((0, C), (1, 0), (1, C)),
                ((1, 0), (1, C), (2, 0)))

    ys = []
    for j in range(2):
        taps = [tap(kh, col0, ch0) for kh in range(3) for (col0, ch0) in col_taps[j]]
        patches = jnp.concatenate(taps, axis=-1)                 # (TH, W2, 9C)
        patches = patches.reshape(TH * W2, 9 * C)                # im2col
        acc = jnp.dot(patches, w, preferred_element_type=jnp.float32,
                      precision=precision)                       # single MXU matmul
        ys.append(acc.reshape(TH, W2, Co).reshape(TH2, 2, W2, Co))

    y0, y1 = ys                                                  # column phases j=0/1
    # Fused PixelUnshuffle(2): lane order (row phase i, col phase j, c); the wrapper's
    # single output transpose converts this to PyTorch's channel = c*4 + i*2 + j.
    out = jnp.concatenate([y0[:, 0], y1[:, 0], y0[:, 1], y1[:, 1]], axis=-1)
    o_ref[...] = out.astype(o_ref.dtype)


def _pick_tile_rows(H, row_bytes, budget_bytes=2 << 20, max_rows=256):
    """Largest even divisor of H whose input tile stays under `budget_bytes`.

    Keeps the double-buffered working set comfortably inside VMEM on v5e/v6e/v7x
    while still producing enough grid steps for DMA/compute overlap.
    """
    cap = max(2, min(H, max_rows, budget_bytes // max(row_bytes, 1)))
    for th in range(int(cap), 1, -1):
        if th % 2 == 0 and H % th == 0:
            return th
    return 2


def downsample(x, weight, *, tile_rows=None, precision=None,
               vmem_limit_bytes=64 * 1024 * 1024):
    """x: (B, C, H, W) NCHW; weight: (C//2, C, 3, 3) OIHW (bias=False).

    Returns (B, 2*C, H//2, W//2), matching
    nn.Sequential(nn.Conv2d(C, C//2, 3, 1, 1, bias=False), nn.PixelUnshuffle(2)).
    """
    B, C, H, W = x.shape
    Co = weight.shape[0]
    assert weight.shape == (Co, C, 3, 3)
    assert H % 2 == 0 and W % 2 == 0
    W2, C2, C4 = W // 2, 2 * C, 4 * Co

    # NCHW -> NHWC (one XLA layout pass), then a free reshape that pre-splits the
    # width into (column pair, column phase): (B, H, W, C) -> (B, H, W/2, 2C).
    xr = jnp.transpose(x, (0, 2, 3, 1)).reshape(B, H, W2, C2)
    # OIHW -> (kh, kw, c_in, c_out) -> (9C, Co): matmul-ready, cast once.
    w9 = jnp.transpose(weight, (2, 3, 1, 0)).reshape(9 * C, Co).astype(x.dtype)

    if tile_rows is None:
        tile_rows = _pick_tile_rows(H, W2 * C2 * x.dtype.itemsize)
    assert tile_rows % 2 == 0 and H % tile_rows == 0
    TH = tile_rows
    TH2 = TH // 2
    n_t = H // TH

    kernel = functools.partial(_downsample_kernel, precision=precision)

    y = pl.pallas_call(
        kernel,
        out_shape=jax.ShapeDtypeStruct((B, H // 2, W2, C4), x.dtype),
        grid_spec=pltpu.PrefetchScalarGridSpec(
            num_scalar_prefetch=0,
            grid=(B, n_t),
            in_specs=[
                # main tile
                pl.BlockSpec((None, TH, W2, C2), lambda b, t: (b, t, 0, 0)),
                # 1-row halos above/below (clamped; masked in-kernel at image edges)
                pl.BlockSpec((None, 1, W2, C2),
                             lambda b, t: (b, jnp.maximum(t * TH - 1, 0), 0, 0)),
                pl.BlockSpec((None, 1, W2, C2),
                             lambda b, t: (b, jnp.minimum(t * TH + TH, H - 1), 0, 0)),
                # weight, VMEM-resident
                pl.BlockSpec((9 * C, Co), lambda b, t: (0, 0)),
            ],
            out_specs=pl.BlockSpec((None, TH2, W2, C4), lambda b, t: (b, t, 0, 0)),
            scratch_shapes=[pltpu.VMEM((TH + 2, W2 + 2, C2), x.dtype)],
        ),
        compiler_params=pltpu.CompilerParams(
            dimension_semantics=("parallel", "parallel"),
            vmem_limit_bytes=vmem_limit_bytes,
        ),
    )(xr, xr, xr, w9)

    # Kernel output channels are ordered (i, j, c); one XLA transpose produces the
    # NCHW PixelUnshuffle layout with channel index = c*4 + i*2 + j.
    y = y.reshape(B, H // 2, W2, 2, 2, Co)
    return jnp.transpose(y, (0, 5, 3, 4, 1, 2)).reshape(B, C4, H // 2, W2)


def reference_downsample(x, weight):
    y = lax.conv_general_dilated(
        x, weight, window_strides=(1, 1), padding=((1, 1), (1, 1)),
        dimension_numbers=("NCHW", "OIHW", "NCHW"),
        precision=lax.Precision.HIGHEST,
    )
    B, Co, H, W = y.shape
    y = y.reshape(B, Co, H // 2, 2, W // 2, 2)
    return jnp.transpose(y, (0, 1, 3, 5, 2, 4)).reshape(B, 4 * Co, H // 2, W // 2)


if __name__ == "__main__":
    key = jax.random.PRNGKey(0)
    kx, kw = jax.random.split(key)

    B, n_feat, H, W = 2, 4, 16, 16
    x = jax.random.normal(kx, (B, n_feat, H, W), dtype=jnp.float32)
    weight = 0.1 * jax.random.normal(kw, (n_feat // 2, n_feat, 3, 3), dtype=jnp.float32)

    ref = reference_downsample(x, weight)

    # 1) Tight numerical check (HIGHEST matmul precision), default tiling.
    out = jax.block_until_ready(downsample(x, weight, precision=lax.Precision.HIGHEST))
    assert out.shape == (B, 2 * n_feat, H // 2, W // 2)
    assert out.dtype == x.dtype
    assert jnp.allclose(out, ref, atol=1e-4, rtol=1e-4)

    # 2) Tight check with a forced multi-tile grid (exercises the fused halo logic).
    out_t = jax.block_until_ready(
        downsample(x, weight, tile_rows=4, precision=lax.Precision.HIGHEST))
    assert jnp.allclose(out_t, ref, atol=1e-4, rtol=1e-4)

    # 3) Fast path: default MXU precision (per perf feedback), looser tolerance.
    out_f = jax.block_until_ready(downsample(x, weight, tile_rows=8))
    assert jnp.allclose(out_f, ref, atol=3e-2, rtol=3e-2)

    print("KERNEL_OK")
</pallas_src>

<mosaic_0001>
module attributes {stable_mosaic.version = 11 : i64} {
  func.func @_downsample_kernel(%arg0: i32, %arg1: i32, %arg2: memref<1x16x8x8xf32, #tpu.memory_space<vmem>>, %arg3: memref<1x1x8x8xf32, #tpu.memory_space<vmem>>, %arg4: memref<1x1x8x8xf32, #tpu.memory_space<vmem>>, %arg5: memref<36x2xf32, #tpu.memory_space<vmem>>, %arg6: memref<1x8x8x8xf32, #tpu.memory_space<vmem>>, %arg7: memref<18x10x8xf32, #tpu.memory_space<vmem>>) attributes {dimension_semantics = [#tpu.dimension_semantics<parallel>, #tpu.dimension_semantics<parallel>], iteration_bounds = array<i64: 2, 1>, scalar_prefetch = 0 : i64, scratch_operands = 1 : i64, tpu.core_type = #tpu.core_type<tc>, window_params = [{transform_indices = @transform_0, window_bounds = array<i64: 1, 16, 8, 8>}, {transform_indices = @transform_1, window_bounds = array<i64: 1, 1, 8, 8>}, {transform_indices = @transform_2, window_bounds = array<i64: 1, 1, 8, 8>}, {pipeline_mode = #tpu.pipeline_mode<synchronous>, transform_indices = @transform_3, window_bounds = array<i64: 36, 2>}, {transform_indices = @transform_4, window_bounds = array<i64: 1, 8, 8, 8>}]} {
    %cst = arith.constant 0.000000e+00 : f32
    %0 = vector.broadcast %cst : f32 to vector<18x10x8xf32>
    %c0 = arith.constant 0 : index
    %c0_0 = arith.constant 0 : index
    %c0_1 = arith.constant 0 : index
    %1 = vector.load %arg7[%c0, %c0_0, %c0_1] : memref<18x10x8xf32, #tpu.memory_space<vmem>>, vector<18x10x8xf32>
    tpu.vector_store %arg7[%c0, %c0_0, %c0_1], %0 {strides = array<i32>} : memref<18x10x8xf32, #tpu.memory_space<vmem>>, vector<18x10x8xf32>,
    %c0_2 = arith.constant 0 : index
    %c0_3 = arith.constant 0 : index
    %c0_4 = arith.constant 0 : index
    %c0_5 = arith.constant 0 : index
    %2 = vector.load %arg2[%c0_2, %c0_3, %c0_4, %c0_5] : memref<1x16x8x8xf32, #tpu.memory_space<vmem>>, vector<1x16x8x8xf32>
    %3 = vector.shape_cast %2 : vector<1x16x8x8xf32> to vector<16x8x8xf32>
    %c1 = arith.constant 1 : index
    %c1_6 = arith.constant 1 : index
    %c0_7 = arith.constant 0 : index
    %4 = vector.load %arg7[%c1, %c1_6, %c0_7] : memref<18x10x8xf32, #tpu.memory_space<vmem>>, vector<16x8x8xf32>
    tpu.vector_store %arg7[%c1, %c1_6, %c0_7], %3 {strides = array<i32>} : memref<18x10x8xf32, #tpu.memory_space<vmem>>, vector<16x8x8xf32>,
    %c0_i32 = arith.constant 0 : i32
    %5 = arith.cmpi sgt, %arg1, %c0_i32 : i32
    %6 = arith.extui %5 : i1 to i32
    %c0_i32_8 = arith.constant 0 : i32
    %7 = arith.cmpi ne, %6, %c0_i32_8 : i32
    scf.if %7 {
      %c0_71 = arith.constant 0 : index
      %c0_72 = arith.constant 0 : index
      %c0_73 = arith.constant 0 : index
      %c0_74 = arith.constant 0 : index
      %52 = vector.load %arg3[%c0_71, %c0_72, %c0_73, %c0_74] : memref<1x1x8x8xf32, #tpu.memory_space<vmem>>, vector<1x1x8x8xf32>
      %53 = vector.shape_cast %52 : vector<1x1x8x8xf32> to vector<8x8xf32>
      %c0_75 = arith.constant 0 : index
      %c1_76 = arith.constant 1 : index
      %c0_77 = arith.constant 0 : index
      %54 = vector.load %arg7[%c0_75, %c1_76, %c0_77] : memref<18x10x8xf32, #tpu.memory_space<vmem>>, vector<1x8x8xf32>
      %55 = vector.shape_cast %54 : vector<1x8x8xf32> to vector<8x8xf32>
      %56 = vector.shape_cast %53 : vector<8x8xf32> to vector<1x8x8xf32>
      tpu.vector_store %arg7[%c0_75, %c1_76, %c0_77], %56 {strides = array<i32>} : memref<18x10x8xf32, #tpu.memory_space<vmem>>, vector<1x8x8xf32>,
    } else {
    }
    %c0_i32_9 = arith.constant 0 : i32
    %8 = arith.cmpi slt, %arg1, %c0_i32_9 : i32
    %9 = arith.extui %8 : i1 to i32
    %c0_i32_10 = arith.constant 0 : i32
    %10 = arith.cmpi ne, %9, %c0_i32_10 : i32
    scf.if %10 {
      %c0_71 = arith.constant 0 : index
      %c0_72 = arith.constant 0 : index
      %c0_73 = arith.constant 0 : index
      %c0_74 = arith.constant 0 : index
      %52 = vector.load %arg4[%c0_71, %c0_72, %c0_73, %c0_74] : memref<1x1x8x8xf32, #tpu.memory_space<vmem>>, vector<1x1x8x8xf32>
      %53 = vector.shape_cast %52 : vector<1x1x8x8xf32> to vector<8x8xf32>
      %c17 = arith.constant 17 : index
      %c1_75 = arith.constant 1 : index
      %c0_76 = arith.constant 0 : index
      %54 = vector.load %arg7[%c17, %c1_75, %c0_76] : memref<18x10x8xf32, #tpu.memory_space<vmem>>, vector<1x8x8xf32>
      %55 = vector.shape_cast %54 : vector<1x8x8xf32> to vector<8x8xf32>
      %56 = vector.shape_cast %53 : vector<8x8xf32> to vector<1x8x8xf32>
      tpu.vector_store %arg7[%c17, %c1_75, %c0_76], %56 {strides = array<i32>} : memref<18x10x8xf32, #tpu.memory_space<vmem>>, vector<1x8x8xf32>,
    } else {
    }
    %c0_11 = arith.constant 0 : index
    %c0_12 = arith.constant 0 : index
    %11 = vector.load %arg5[%c0_11, %c0_12] : memref<36x2xf32, #tpu.memory_space<vmem>>, vector<36x2xf32>
    %c0_13 = arith.constant 0 : index
    %c0_14 = arith.constant 0 : index
    %c4 = arith.constant 4 : index
    %12 = vector.load %arg7[%c0_13, %c0_14, %c4] : memref<18x10x8xf32, #tpu.memory_space<vmem>>, vector<16x8x4xf32>
    %c0_15 = arith.constant 0 : index
    %c1_16 = arith.constant 1 : index
    %c0_17 = arith.constant 0 : index
    %13 = vector.load %arg7[%c0_15, %c1_16, %c0_17] : memref<18x10x8xf32, #tpu.memory_space<vmem>>, vector<16x8x4xf32>
    %c0_18 = arith.constant 0 : index
    %c1_19 = arith.constant 1 : index
    %c4_20 = arith.constant 4 : index
    %14 = vector.load %arg7[%c0_18, %c1_19, %c4_20] : memref<18x10x8xf32, #tpu.memory_space<vmem>>, vector<16x8x4xf32>
    %c1_21 = arith.constant 1 : index
    %c0_22 = arith.constant 0 : index
    %c4_23 = arith.constant 4 : index
    %15 = vector.load %arg7[%c1_21, %c0_22, %c4_23] : memref<18x10x8xf32, #tpu.memory_space<vmem>>, vector<16x8x4xf32>
    %c1_24 = arith.constant 1 : index
    %c1_25 = arith.constant 1 : index
    %c0_26 = arith.constant 0 : index
    %16 = vector.load %arg7[%c1_24, %c1_25, %c0_26] : memref<18x10x8xf32, #tpu.memory_space<vmem>>, vector<16x8x4xf32>
    %c1_27 = arith.constant 1 : index
    %c1_28 = arith.constant 1 : index
    %c4_29 = arith.constant 4 : index
    %17 = vector.load %arg7[%c1_27, %c1_28, %c4_29] : memref<18x10x8xf32, #tpu.memory_space<vmem>>, vector<16x8x4xf32>
    %c2 = arith.constant 2 : index
    %c0_30 = arith.constant 0 : index
    %c4_31 = arith.constant 4 : index
    %18 = vector.load %arg7[%c2, %c0_30, %c4_31] : memref<18x10x8xf32, #tpu.memory_space<vmem>>, vector<16x8x4xf32>
    %c2_32 = arith.constant 2 : index
    %c1_33 = arith.constant 1 : index
    %c0_34 = arith.constant 0 : index
    %19 = vector.load %arg7[%c2_32, %c1_33, %c0_34] : memref<18x10x8xf32, #tpu.memory_space<vmem>>, vector<16x8x4xf32>
    %c2_35 = arith.constant 2 : index
    %c1_36 = arith.constant 1 : index
    %c4_37 = arith.constant 4 : index
    %20 = vector.load %arg7[%c2_35, %c1_36, %c4_37] : memref<18x10x8xf32, #tpu.memory_space<vmem>>, vector<16x8x4xf32>
    %21 = tpu.concatenate %12, %13, %14, %15, %16, %17, %18, %19, %20 in 2 : vector<16x8x4xf32>, vector<16x8x4xf32>, vector<16x8x4xf32>, vector<16x8x4xf32>, vector<16x8x4xf32>, vector<16x8x4xf32>, vector<16x8x4xf32>, vector<16x8x4xf32>, vector<16x8x4xf32> -> vector<16x8x36xf32>
    %22 = vector.shape_cast %21 : vector<16x8x36xf32> to vector<128x36xf32>
    %cst_38 = arith.constant dense<0.000000e+00> : vector<128x2xf32>
    %23 = tpu.matmul %22, %11, %cst_38 {dimension_numbers = #tpu.dot_dimension_numbers<[1], [0], [0], [1], [0, 0, 1, 1], [], []>, precision = #tpu.contract_precision<fp32>} : vector<128x36xf32>, vector<36x2xf32>, vector<128x2xf32> -> vector<128x2xf32>
    %24 = vector.shape_cast %23 : vector<128x2xf32> to vector<16x8x2xf32>
    %25 = vector.shape_cast %24 : vector<16x8x2xf32> to vector<8x2x8x2xf32>
    %c0_39 = arith.constant 0 : index
    %c1_40 = arith.constant 1 : index
    %c0_41 = arith.constant 0 : index
    %26 = vector.load %arg7[%c0_39, %c1_40, %c0_41] : memref<18x10x8xf32, #tpu.memory_space<vmem>>, vector<16x8x4xf32>
    %c0_42 = arith.constant 0 : index
    %c1_43 = arith.constant 1 : index
    %c4_44 = arith.constant 4 : index
    %27 = vector.load %arg7[%c0_42, %c1_43, %c4_44] : memref<18x10x8xf32, #tpu.memory_space<vmem>>, vector<16x8x4xf32>
    %c0_45 = arith.constant 0 : index
    %c2_46 = arith.constant 2 : index
    %c0_47 = arith.constant 0 : index
    %28 = vector.load %arg7[%c0_45, %c2_46, %c0_47] : memref<18x10x8xf32, #tpu.memory_space<vmem>>, vector<16x8x4xf32>
    %c1_48 = arith.constant 1 : index
    %c1_49 = arith.constant 1 : index
    %c0_50 = arith.constant 0 : index
    %29 = vector.load %arg7[%c1_48, %c1_49, %c0_50] : memref<18x10x8xf32, #tpu.memory_space<vmem>>, vector<16x8x4xf32>
    %c1_51 = arith.constant 1 : index
    %c1_52 = arith.constant 1 : index
    %c4_53 = arith.constant 4 : index
    %30 = vector.load %arg7[%c1_51, %c1_52, %c4_53] : memref<18x10x8xf32, #tpu.memory_space<vmem>>, vector<16x8x4xf32>
    %c1_54 = arith.constant 1 : index
    %c2_55 = arith.constant 2 : index
    %c0_56 = arith.constant 0 : index
    %31 = vector.load %arg7[%c1_54, %c2_55, %c0_56] : memref<18x10x8xf32, #tpu.memory_space<vmem>>, vector<16x8x4xf32>
    %c2_57 = arith.constant 2 : index
    %c1_58 = arith.constant 1 : index
    %c0_59 = arith.constant 0 : index
    %32 = vector.load %arg7[%c2_57, %c1_58, %c0_59] : memref<18x10x8xf32, #tpu.memory_space<vmem>>, vector<16x8x4xf32>
    %c2_60 = arith.constant 2 : index
    %c1_61 = arith.constant 1 : index
    %c4_62 = arith.constant 4 : index
    %33 = vector.load %arg7[%c2_60, %c1_61, %c4_62] : memref<18x10x8xf32, #tpu.memory_space<vmem>>, vector<16x8x4xf32>
    %c2_63 = arith.constant 2 : index
    %c2_64 = arith.constant 2 : index
    %c0_65 = arith.constant 0 : index
    %34 = vector.load %arg7[%c2_63, %c2_64, %c0_65] : memref<18x10x8xf32, #tpu.memory_space<vmem>>, vector<16x8x4xf32>
    %35 = tpu.concatenate %26, %27, %28, %29, %30, %31, %32, %33, %34 in 2 : vector<16x8x4xf32>, vector<16x8x4xf32>, vector<16x8x4xf32>, vector<16x8x4xf32>, vector<16x8x4xf32>, vector<16x8x4xf32>, vector<16x8x4xf32>, vector<16x8x4xf32>, vector<16x8x4xf32> -> vector<16x8x36xf32>
    %36 = vector.shape_cast %35 : vector<16x8x36xf32> to vector<128x36xf32>
    %cst_66 = arith.constant dense<0.000000e+00> : vector<128x2xf32>
    %37 = tpu.matmul %36, %11, %cst_66 {dimension_numbers = #tpu.dot_dimension_numbers<[1], [0], [0], [1], [0, 0, 1, 1], [], []>, precision = #tpu.contract_precision<fp32>} : vector<128x36xf32>, vector<36x2xf32>, vector<128x2xf32> -> vector<128x2xf32>
    %38 = vector.shape_cast %37 : vector<128x2xf32> to vector<16x8x2xf32>
    %39 = vector.shape_cast %38 : vector<16x8x2xf32> to vector<8x2x8x2xf32>
    %40 = vector.extract_strided_slice %25 {offsets = [0, 0, 0, 0], sizes = [8, 1, 8, 2], strides = [1, 1, 1, 1]} : vector<8x2x8x2xf32> to vector<8x1x8x2xf32>
    %41 = vector.shape_cast %40 : vector<8x1x8x2xf32> to vector<8x8x2xf32>
    %42 = vector.extract_strided_slice %39 {offsets = [0, 0, 0, 0], sizes = [8, 1, 8, 2], strides = [1, 1, 1, 1]} : vector<8x2x8x2xf32> to vector<8x1x8x2xf32>
    %43 = vector.shape_cast %42 : vector<8x1x8x2xf32> to vector<8x8x2xf32>
    %44 = vector.extract_strided_slice %25 {offsets = [0, 1, 0, 0], sizes = [8, 1, 8, 2], strides = [1, 1, 1, 1]} : vector<8x2x8x2xf32> to vector<8x1x8x2xf32>
    %45 = vector.shape_cast %44 : vector<8x1x8x2xf32> to vector<8x8x2xf32>
    %46 = vector.extract_strided_slice %39 {offsets = [0, 1, 0, 0], sizes = [8, 1, 8, 2], strides = [1, 1, 1, 1]} : vector<8x2x8x2xf32> to vector<8x1x8x2xf32>
    %47 = vector.shape_cast %46 : vector<8x1x8x2xf32> to vector<8x8x2xf32>
    %48 = tpu.concatenate %41, %43, %45, %47 in 2 : vector<8x8x2xf32>, vector<8x8x2xf32>, vector<8x8x2xf32>, vector<8x8x2xf32> -> vector<8x8x8xf32>
    %c0_67 = arith.constant 0 : index
    %c0_68 = arith.constant 0 : index
    %c0_69 = arith.constant 0 : index
    %c0_70 = arith.constant 0 : index
    %49 = vector.load %arg6[%c0_67, %c0_68, %c0_69, %c0_70] : memref<1x8x8x8xf32, #tpu.memory_space<vmem>>, vector<1x8x8x8xf32>
    %50 = vector.shape_cast %49 : vector<1x8x8x8xf32> to vector<8x8x8xf32>
    %51 = vector.shape_cast %48 : vector<8x8x8xf32> to vector<1x8x8x8xf32>
    tpu.vector_store %arg6[%c0_67, %c0_68, %c0_69, %c0_70], %51 {strides = array<i32>} : memref<1x8x8x8xf32, #tpu.memory_space<vmem>>, vector<1x8x8x8xf32>,
    return
  }
  func.func @transform_0(%arg0: i32, %arg1: i32) -> (i32, i32, i32, i32) {
    %c0_i32 = arith.constant 0 : i32
    %c0_i32_0 = arith.constant 0 : i32
    %c0_i32_1 = arith.constant 0 : i32
    return %arg0, %arg1, %c0_i32, %c0_i32_0 : i32, i32, i32, i32
  }
  func.func @transform_1(%arg0: i32, %arg1: i32) -> (i32, i32, i32, i32) {
    %c16_i32 = arith.constant 16 : i32
    %0 = arith.muli %arg1, %c16_i32 : i32
    %c1_i32 = arith.constant 1 : i32
    %1 = arith.subi %0, %c1_i32 : i32
    %c0_i32 = arith.constant 0 : i32
    %2 = arith.maxsi %1, %c0_i32 : i32
    %c0_i32_0 = arith.constant 0 : i32
    %c0_i32_1 = arith.constant 0 : i32
    %c0_i32_2 = arith.constant 0 : i32
    return %arg0, %2, %c0_i32_0, %c0_i32_1 : i32, i32, i32, i32
  }
  func.func @transform_2(%arg0: i32, %arg1: i32) -> (i32, i32, i32, i32) {
    %c16_i32 = arith.constant 16 : i32
    %0 = arith.muli %arg1, %c16_i32 : i32
    %c16_i32_0 = arith.constant 16 : i32
    %1 = arith.addi %0, %c16_i32_0 : i32
    %c15_i32 = arith.constant 15 : i32
    %2 = arith.minsi %1, %c15_i32 : i32
    %c0_i32 = arith.constant 0 : i32
    %c0_i32_1 = arith.constant 0 : i32
    %c0_i32_2 = arith.constant 0 : i32
    return %arg0, %2, %c0_i32, %c0_i32_1 : i32, i32, i32, i32
  }
  func.func @transform_3(%arg0: i32, %arg1: i32) -> (i32, i32) {
    %c0_i32 = arith.constant 0 : i32
    %c0_i32_0 = arith.constant 0 : i32
    %c0_i32_1 = arith.constant 0 : i32
    return %c0_i32, %c0_i32_0 : i32, i32
  }
  func.func @transform_4(%arg0: i32, %arg1: i32) -> (i32, i32, i32, i32) {
    %c0_i32 = arith.constant 0 : i32
    %c0_i32_0 = arith.constant 0 : i32
    %c0_i32_1 = arith.constant 0 : i32
    return %arg0, %arg1, %c0_i32, %c0_i32_0 : i32, i32, i32, i32
  }
}

</mosaic_0001>

<llo_original>
// kernel: tpu_custom_call.1
$region0: #{tpu_custom_call.1}
  #allocation0 [shape = 'u32[]', space=smem, size = 0x4, offset = 0x4, fixed_abs, tag = 'smem constant byte address 0x4 - core index']
  #allocation1 [shape = 'u32[144,128]{1,0:T(1,128)}', space=vmem, size = 0x12000, scoped, tag = 'internal scratch']
  #allocation2 [shape = 'f32[18,10,8]{2,1,0:T(8,128)}', space=vmem, size = 0x24000, scoped, tag = 'scratch operand']
  %s0 = inlined_call_operand.vmem [shape: f32[2,16,8,8], index: 0, kind: input, shape index: {}]
  %s1 = inlined_call_operand.vmem [shape: f32[2,16,8,8], index: 1, kind: input, shape index: {}]
  %s2 = inlined_call_operand.vmem [shape: f32[2,16,8,8], index: 2, kind: input, shape index: {}]
  %s3 = inlined_call_operand.vmem [shape: f32[36,2], index: 3, kind: input, shape index: {}]
  %s4 = inlined_call_operand.hbm [shape: f32[2,8,8,8], index: 4, kind: output, shape index: {}]
  %s5 = sld [smem:[#allocation0]]
  $region57: #{tpu_custom_call.1} parent=0
    _
  %s7 = ssub.s32 1, %s5
  %s8 = scalar_select 0, %s7, %s5
  $region1: #{tpu_custom_call.1} parent=0
    #allocation3 [shape = 'u8[65536]{0}', space=vmem, size = 0x10000, scoped, tag = 'output window, operand 0']
    #allocation4 [shape = 's32[2]{0}', space=sflag, size = 0x8, scoped, tag = 'scoped memory for tpu_custom_call.1']
    %9 = vsyncpa [#allocation4], 0
    %s10 = scalar_lea.sflag [#allocation4], 1
    %11 = vsyncpa %s10, 0
    loop: start=0, step=1, limit=4
    $region2: #{tpu_custom_call.1} parent=1 // loop_pre_header
      _
    $region3: #{tpu_custom_call.1} parent=1 // loop_header
      %s13 = sphi 0, %s17
      %p14 = scmp.ge.s32.totalorder %s13, 4
      %s20 = sphi 0, %s32
      %s21 = sphi 0, %s28
      %s22 = sphi 0, %s20
      %s23 = sphi 0, %s21
      %s24 = sphi 0, %s22
      %s25 = sphi 0, %s23
      %s37 = sphi 0, %s39
      %s40 = sphi 0, %s37
      %s41 = sphi 0, %s40
      %s57 = sphi 0, %s41
      %s73 = sphi 0, %s75
      %s76 = sphi 0, %s73
      %s77 = sphi 0, %s76
      %s93 = sphi 0, %s77
      %s109 = sphi 0, %s111
      %s112 = sphi 0, %s109
      %s113 = sphi 0, %s112
      %s129 = sphi 0, %s113
      %s133 = sphi 0, %s133
      %s135 = sphi 0, %s133
      %s136 = sphi 0, %s135
      %s150 = sphi 0, %s136
      %s158 = sphi 0, %s160
      %s161 = sphi 0, %s158
      %s162 = sphi 0, %s161
      %s178 = sphi 0, %s162
    $region4: #{tpu_custom_call.1} parent=1 // loop_header_branch
      %16 = sbr.rel (%p14) target = $region8
    $region5: #{tpu_custom_call.1} parent=1 // loop_body
      %s18 = ssub.s32 %s13, 1
      %s19 = ssub.s32 %s13, 2
      %s26 = sadd.s32 1, %s21
      %p27 = scmp.ge.s32.totalorder %s26, 1
      %s28 = scalar_select %p27, 0, %s26
      %s29 = sadd.s32 1, %s20
      %s30 = scalar_select %p27, %s29, %s20
      %p31 = scmp.ge.s32.totalorder %s30, 2
      %s32 = scalar_select %p31, 0, %s30
      %s33 = ssub.s32 %s20, %s32
      %s34 = ssub.s32 %s21, %s28
      %s35 = sor.u32 %s33, %s34
      %p36 = scmp.eq.s32.totalorder %s35, 0
      %s38 = sadd.s32 %s37, 1
      %s39 = scalar_select %p36, %s37, %s38
      %p42 = pneg %p36
      %p43 = scmp.eq.s32.totalorder %s13, 1
      %p44 = por %p42, %p43
      %p45 = scmp.ne.s32.totalorder %s37, %s40
      %p46 = scmp.eq.s32.totalorder %s13, 0
      %p47 = por %p45, %p46
      %p48 = scmp.ne.s32.totalorder %s37, %s40
      %p49 = scmp.eq.s32.totalorder %s18, 1
      %p50 = por %p48, %p49
      %p51 = scmp.ne.s32.totalorder %s40, %s41
      %p52 = scmp.eq.s32.totalorder %s18, 0
      %p53 = por %p51, %p52
      %p54 = scmp.ne.s32.totalorder %s40, %s41
      %p55 = scmp.eq.s32.totalorder %s19, 1
      %p56 = por %p54, %p55
      %p58 = scmp.ne.s32.totalorder %s41, %s57
      %p59 = scmp.eq.s32.totalorder %s19, 0
      %p60 = por %p58, %p59
      %s61 = smul.u32 %s21, 16
      %s62 = ssub.s32 %s61, 1
      %p63 = scmp.gt.s32.totalorder %s62, 0
      %s64 = scalar_select %p63, %s62, 0
      %s65 = smul.u32 %s28, 16
      %s66 = ssub.s32 %s65, 1
      %p67 = scmp.gt.s32.totalorder %s66, 0
      %s68 = scalar_select %p67, %s66, 0
      %s69 = ssub.s32 %s20, %s32
      %s70 = ssub.s32 %s64, %s68
      %s71 = sor.u32 %s69, %s70
      %p72 = scmp.eq.s32.totalorder %s71, 0
      %s74 = sadd.s32 %s73, 1
      %s75 = scalar_select %p72, %s73, %s74
      %p78 = pneg %p72
      %p79 = scmp.eq.s32.totalorder %s13, 1
      %p80 = por %p78, %p79
      %p81 = scmp.ne.s32.totalorder %s73, %s76
      %p82 = scmp.eq.s32.totalorder %s13, 0
      %p83 = por %p81, %p82
      %p84 = scmp.ne.s32.totalorder %s73, %s76
      %p85 = scmp.eq.s32.totalorder %s18, 1
      %p86 = por %p84, %p85
      %p87 = scmp.ne.s32.totalorder %s76, %s77
      %p88 = scmp.eq.s32.totalorder %s18, 0
      %p89 = por %p87, %p88
      %p90 = scmp.ne.s32.totalorder %s76, %s77
      %p91 = scmp.eq.s32.totalorder %s19, 1
      %p92 = por %p90, %p91
      %p94 = scmp.ne.s32.totalorder %s77, %s93
      %p95 = scmp.eq.s32.totalorder %s19, 0
      %p96 = por %p94, %p95
      %s97 = smul.u32 %s21, 16
      %s98 = sadd.s32 %s97, 16
      %p99 = scmp.lt.s32.totalorder %s98, 15
      %s100 = scalar_select %p99, %s98, 15
      %s101 = smul.u32 %s28, 16
      %s102 = sadd.s32 %s101, 16
      %p103 = scmp.lt.s32.totalorder %s102, 15
      %s104 = scalar_select %p103, %s102, 15
      %s105 = ssub.s32 %s20, %s32
      %s106 = ssub.s32 %s100, %s104
      %s107 = sor.u32 %s105, %s106
      %p108 = scmp.eq.s32.totalorder %s107, 0
      %s110 = sadd.s32 %s109, 1
      %s111 = scalar_select %p108, %s109, %s110
      %p114 = pneg %p108
      %p115 = scmp.eq.s32.totalorder %s13, 1
      %p116 = por %p114, %p115
      %p117 = scmp.ne.s32.totalorder %s109, %s112
      %p118 = scmp.eq.s32.totalorder %s13, 0
      %p119 = por %p117, %p118
      %p120 = scmp.ne.s32.totalorder %s109, %s112
      %p121 = scmp.eq.s32.totalorder %s18, 1
      %p122 = por %p120, %p121
      %p123 = scmp.ne.s32.totalorder %s112, %s113
      %p124 = scmp.eq.s32.totalorder %s18, 0
      %p125 = por %p123, %p124
      %p126 = scmp.ne.s32.totalorder %s112, %s113
      %p127 = scmp.eq.s32.totalorder %s19, 1
      %p128 = por %p126, %p127
      %p130 = scmp.ne.s32.totalorder %s113, %s129
      %p131 = scmp.eq.s32.totalorder %s19, 0
      %p132 = por %p130, %p131
      %s134 = sadd.s32 %s133, 1
      %p137 = scmp.eq.s32.totalorder %s13, 1
      %p138 = scmp.ne.s32.totalorder %s133, %s135
      %p139 = scmp.eq.s32.totalorder %s13, 0
      %p140 = por %p138, %p139
      %p141 = scmp.ne.s32.totalorder %s133, %s135
      %p142 = scmp.eq.s32.totalorder %s18, 1
      %p143 = por %p141, %p142
      %p144 = scmp.ne.s32.totalorder %s135, %s136
      %p145 = scmp.eq.s32.totalorder %s18, 0
      %p146 = por %p144, %p145
      %p147 = scmp.ne.s32.totalorder %s135, %s136
      %p148 = scmp.eq.s32.totalorder %s19, 1
      %p149 = por %p147, %p148
      %p151 = scmp.ne.s32.totalorder %s136, %s150
      %p152 = scmp.eq.s32.totalorder %s19, 0
      %p153 = por %p151, %p152
      %s154 = ssub.s32 %s20, %s32
      %s155 = ssub.s32 %s21, %s28
      %s156 = sor.u32 %s154, %s155
      %p157 = scmp.eq.s32.totalorder %s156, 0
      %s159 = sadd.s32 %s158, 1
      %s160 = scalar_select %p157, %s158, %s159
      %p163 = pneg %p157
      %p164 = scmp.eq.s32.totalorder %s13, 1
      %p165 = por %p163, %p164
      %p166 = scmp.ne.s32.totalorder %s158, %s161
      %p167 = scmp.eq.s32.totalorder %s13, 0
      %p168 = por %p166, %p167
      %p169 = scmp.ne.s32.totalorder %s158, %s161
      %p170 = scmp.eq.s32.totalorder %s18, 1
      %p171 = por %p169, %p170
      %p172 = scmp.ne.s32.totalorder %s161, %s162
      %p173 = scmp.eq.s32.totalorder %s18, 0
      %p174 = por %p172, %p173
      %p175 = scmp.ne.s32.totalorder %s161, %s162
      %p176 = scmp.eq.s32.totalorder %s19, 1
      %p177 = por %p175, %p176
      %p179 = scmp.ne.s32.totalorder %s162, %s178
      %p180 = scmp.eq.s32.totalorder %s19, 0
      %p181 = por %p179, %p180
      %p182 = scmp.le.s32.totalorder 1, %s13
      %p183 = scmp.lt.s32.totalorder %s13, 3
      %p184 = pnand %p182, %p183
      %p185 = pneg %p184
      // Predicated region
      $region9: #{tpu_custom_call.1} parent=5 // pred_check
        _
      $region10: #{tpu_custom_call.1} parent=5 // pred_check_branch
        %187 = sbr.rel (%p184) target = $region12
      $region11: #{tpu_custom_call.1} parent=5 // pred_region
        %s188 = ssub.s32 %s13, 1
        // Predicated region
        $region13: #{tpu_custom_call.1} parent=11 // pred_check
          %p189 = pneg %p146
        $region14: #{tpu_custom_call.1} parent=11 // pred_check_branch
          %191 = sbr.rel (%p189) target = $region16
        $region15: #{tpu_custom_call.1} parent=11 // pred_region
          _
        $region16: #{tpu_custom_call.1} parent=11 // pred_fallthru
          _
      $region12: #{tpu_custom_call.1} parent=5 // pred_fallthru
        _
      %p192 = scmp.lt.s32.totalorder %s13, 2
      // Predicated region
      $region17: #{tpu_custom_call.1} parent=5 // pred_check
        %p193 = pneg %p192
      $region18: #{tpu_custom_call.1} parent=5 // pred_check_branch
        %195 = sbr.rel (%p193) target = $region20
      $region19: #{tpu_custom_call.1} parent=5 // pred_region
        // Predicated region
        $region21: #{tpu_custom_call.1} parent=19 // pred_check
          %p196 = pneg %p47
        $region22: #{tpu_custom_call.1} parent=19 // pred_check_branch
          %198 = sbr.rel (%p196) target = $region24
        $region23: #{tpu_custom_call.1} parent=19 // pred_region
          %s199 = smul.u32 16, %s21
          %p200 = scmp.lt.s32.totalorder %s20, 1
          %s201 = scalar_select %p200, %s20, 1
          %p202 = scmp.lt.s32.totalorder %s199, 15
          %s203 = scalar_select %p202, %s199, 15
          %s204 = smul.addr %s201, 16
          %s205 = sadd.s32 %s203, %s204
          %s206 = smul.addr %s205, 8
          %s207 = scalar_lea.vmem %s0, %s206
          %s208 = smul.u32 16, %s21
        $region24: #{tpu_custom_call.1} parent=19 // pred_fallthru
          _
        // Predicated region
        $region25: #{tpu_custom_call.1} parent=19 // pred_check
          %p209 = pneg %p83
        $region26: #{tpu_custom_call.1} parent=19 // pred_check_branch
          %211 = sbr.rel (%p209) target = $region28
        $region27: #{tpu_custom_call.1} parent=19 // pred_region
          %s212 = smul.u32 %s21, 16
          %s213 = ssub.s32 %s212, 1
          %p214 = scmp.gt.s32.totalorder %s213, 0
          %s215 = scalar_select %p214, %s213, 0
          %p216 = scmp.lt.s32.totalorder %s20, 1
          %s217 = scalar_select %p216, %s20, 1
          %p218 = scmp.lt.s32.totalorder %s215, 15
          %s219 = scalar_select %p218, %s215, 15
          %s220 = smul.addr %s217, 16
          %s221 = sadd.s32 %s219, %s220
          %s222 = smul.addr %s221, 8
          %s223 = scalar_lea.vmem %s1, %s222
          %s224 = smul.u32 %s21, 16
          %s225 = ssub.s32 %s224, 1
          %p226 = scmp.gt.s32.totalorder %s225, 0
          %s227 = scalar_select %p226, %s225, 0
        $region28: #{tpu_custom_call.1} parent=19 // pred_fallthru
          _
        // Predicated region
        $region29: #{tpu_custom_call.1} parent=19 // pred_check
          %p228 = pneg %p119
        $region30: #{tpu_custom_call.1} parent=19 // pred_check_branch
          %230 = sbr.rel (%p228) target = $region32
        $region31: #{tpu_custom_call.1} parent=19 // pred_region
          %s231 = smul.u32 %s21, 16
          %s232 = sadd.s32 %s231, 16
          %p233 = scmp.lt.s32.totalorder %s232, 15
          %s234 = scalar_select %p233, %s232, 15
          %p235 = scmp.lt.s32.totalorder %s20, 1
          %s236 = scalar_select %p235, %s20, 1
          %p237 = scmp.lt.s32.totalorder %s234, 15
          %s238 = scalar_select %p237, %s234, 15
          %s239 = smul.addr %s236, 16
          %s240 = sadd.s32 %s238, %s239
          %s241 = smul.addr %s240, 8
          %s242 = scalar_lea.vmem %s2, %s241
          %s243 = smul.u32 %s21, 16
          %s244 = sadd.s32 %s243, 16
          %p245 = scmp.lt.s32.totalorder %s244, 15
          %s246 = scalar_select %p245, %s244, 15
        $region32: #{tpu_custom_call.1} parent=19 // pred_fallthru
          _
      $region20: #{tpu_custom_call.1} parent=5 // pred_fallthru
        _
      %p247 = scmp.le.s32.totalorder 1, %s13
      %p248 = scmp.lt.s32.totalorder %s13, 3
      %p249 = pnand %p247, %p248
      %p250 = pneg %p249
      // Predicated region
      $region33: #{tpu_custom_call.1} parent=5 // pred_check
        _
      $region34: #{tpu_custom_call.1} parent=5 // pred_check_branch
        %252 = sbr.rel (%p249) target = $region36
      $region35: #{tpu_custom_call.1} parent=5 // pred_region
        %s253 = ssub.s32 %s13, 1
        %s254 = smul.u32 16, %s23
        %p255 = scmp.lt.s32.totalorder %s22, 1
        %s256 = scalar_select %p255, %s22, 1
        %p257 = scmp.lt.s32.totalorder %s254, 15
        %s258 = scalar_select %p257, %s254, 15
        %s259 = smul.addr %s256, 16
        %s260 = sadd.s32 %s258, %s259
        %s261 = smul.addr %s260, 8
        %s262 = scalar_lea.vmem %s0, %s261
        %p263 = pneg %p53
        %p264 = pneg %p50
        %s265 = smul.u32 %s23, 16
        %s266 = ssub.s32 %s265, 1
        %p267 = scmp.gt.s32.totalorder %s266, 0
        %s268 = scalar_select %p267, %s266, 0
        %p269 = scmp.lt.s32.totalorder %s22, 1
        %s270 = scalar_select %p269, %s22, 1
        %p271 = scmp.lt.s32.totalorder %s268, 15
        %s272 = scalar_select %p271, %s268, 15
        %s273 = smul.addr %s270, 16
        %s274 = sadd.s32 %s272, %s273
        %s275 = smul.addr %s274, 8
        %s276 = scalar_lea.vmem %s1, %s275
        %p277 = pneg %p89
        %p278 = pneg %p86
        %s279 = smul.u32 %s23, 16
        %s280 = sadd.s32 %s279, 16
        %p281 = scmp.lt.s32.totalorder %s280, 15
        %s282 = scalar_select %p281, %s280, 15
        %p283 = scmp.lt.s32.totalorder %s22, 1
        %s284 = scalar_select %p283, %s22, 1
        %p285 = scmp.lt.s32.totalorder %s282, 15
        %s286 = scalar_select %p285, %s282, 15
        %s287 = smul.addr %s284, 16
        %s288 = sadd.s32 %s286, %s287
        %s289 = smul.addr %s288, 8
        %s290 = scalar_lea.vmem %s2, %s289
        %p291 = pneg %p125
        %p292 = pneg %p122
        %p293 = pneg %p146
        %p294 = pneg %p143
        %p295 = pneg %p174
        %p296 = pneg %p171
        %s297 = sand.u32 %s161, 1
        %s298 = scalar_lea.sflag [#allocation4], %s297
        %s299 = sand.u32 %s161, 1
        %s300 = smul.addr %s299, 64
        %s301 = scalar_lea.vmem [#allocation3], %s300
        %s302 = smul.u32 16, %s23
        %p303 = scmp.lt.s32.totalorder %s22, 1
        %s304 = scalar_select %p303, %s22, 1
        %p305 = scmp.lt.s32.totalorder %s302, 15
        %s306 = scalar_select %p305, %s302, 15
        %s307 = smul.addr %s304, 16
        %s308 = sadd.s32 %s306, %s307
        %s309 = smul.addr %s308, 8
        %s310 = scalar_lea.vmem %s0, %s309
        %s311 = smul.u32 16, %s23
        %s312 = smul.u32 %s23, 16
        %s313 = ssub.s32 %s312, 1
        %p314 = scmp.gt.s32.totalorder %s313, 0
        %s315 = scalar_select %p314, %s313, 0
        %p316 = scmp.lt.s32.totalorder %s22, 1
        %s317 = scalar_select %p316, %s22, 1
        %p318 = scmp.lt.s32.totalorder %s315, 15
        %s319 = scalar_select %p318, %s315, 15
        %s320 = smul.addr %s317, 16
        %s321 = sadd.s32 %s319, %s320
        %s322 = smul.addr %s321, 8
        %s323 = scalar_lea.vmem %s1, %s322
        %s324 = smul.u32 %s23, 16
        %s325 = ssub.s32 %s324, 1
        %p326 = scmp.gt.s32.totalorder %s325, 0
        %s327 = scalar_select %p326, %s325, 0
        %s328 = smul.u32 %s23, 16
        %s329 = sadd.s32 %s328, 16
        %p330 = scmp.lt.s32.totalorder %s329, 15
        %s331 = scalar_select %p330, %s329, 15
        %p332 = scmp.lt.s32.totalorder %s22, 1
        %s333 = scalar_select %p332, %s22, 1
        %p334 = scmp.lt.s32.totalorder %s331, 15
        %s335 = scalar_select %p334, %s331, 15
        %s336 = smul.addr %s333, 16
        %s337 = sadd.s32 %s335, %s336
        %s338 = smul.addr %s337, 8
        %s339 = scalar_lea.vmem %s2, %s338
        %s340 = smul.u32 %s23, 16
        %s341 = sadd.s32 %s340, 16
        %p342 = scmp.lt.s32.totalorder %s341, 15
        %s343 = scalar_select %p342, %s341, 15
        %s344 = smul.u32 8, %s23
        %vm345 = vcmask 64512
        %346 = vst.msk [vmem:[#allocation2] sm:$0xff] %vm345, 0.0
        %vm347 = vcmask 58368
        %348 = vst.msk [vmem:[#allocation2 + $0x8] sm:$0x3] %vm347, 0.0
        %349 = vst.msk [vmem:[#allocation2 + $0x10] sm:$0xff] %vm345, 0.0
        %350 = vst.msk [vmem:[#allocation2 + $0x18] sm:$0x3] %vm347, 0.0
        %351 = vst.msk [vmem:[#allocation2 + $0x20] sm:$0xff] %vm345, 0.0
        %352 = vst.msk [vmem:[#allocation2 + $0x28] sm:$0x3] %vm347, 0.0
        %353 = vst.msk [vmem:[#allocation2 + $0x30] sm:$0xff] %vm345, 0.0
        %354 = vst.msk [vmem:[#allocation2 + $0x38] sm:$0x3] %vm347, 0.0
        %355 = vst.msk [vmem:[#allocation2 + $0x40] sm:$0xff] %vm345, 0.0
        %356 = vst.msk [vmem:[#allocation2 + $0x48] sm:$0x3] %vm347, 0.0
        %357 = vst.msk [vmem:[#allocation2 + $0x50] sm:$0xff] %vm345, 0.0
        %358 = vst.msk [vmem:[#allocation2 + $0x58] sm:$0x3] %vm347, 0.0
        %359 = vst.msk [vmem:[#allocation2 + $0x60] sm:$0xff] %vm345, 0.0
        %360 = vst.msk [vmem:[#allocation2 + $0x68] sm:$0x3] %vm347, 0.0
        %361 = vst.msk [vmem:[#allocation2 + $0x70] sm:$0xff] %vm345, 0.0
        %362 = vst.msk [vmem:[#allocation2 + $0x78] sm:$0x3] %vm347, 0.0
        %363 = vst.msk [vmem:[#allocation2 + $0x80] sm:$0xff] %vm345, 0.0
        %364 = vst.msk [vmem:[#allocation2 + $0x88] sm:$0x3] %vm347, 0.0
        %365 = vst.msk [vmem:[#allocation2 + $0x90] sm:$0xff] %vm345, 0.0
        %366 = vst.msk [vmem:[#allocation2 + $0x98] sm:$0x3] %vm347, 0.0
        %367 = vst.msk [vmem:[#allocation2 + $0xa0] sm:$0xff] %vm345, 0.0
        %368 = vst.msk [vmem:[#allocation2 + $0xa8] sm:$0x3] %vm347, 0.0
        %369 = vst.msk [vmem:[#allocation2 + $0xb0] sm:$0xff] %vm345, 0.0
        %370 = vst.msk [vmem:[#allocation2 + $0xb8] sm:$0x3] %vm347, 0.0
        %371 = vst.msk [vmem:[#allocation2 + $0xc0] sm:$0xff] %vm345, 0.0
        %372 = vst.msk [vmem:[#allocation2 + $0xc8] sm:$0x3] %vm347, 0.0
        %373 = vst.msk [vmem:[#allocation2 + $0xd0] sm:$0xff] %vm345, 0.0
        %374 = vst.msk [vmem:[#allocation2 + $0xd8] sm:$0x3] %vm347, 0.0
        %375 = vst.msk [vmem:[#allocation2 + $0xe0] sm:$0xff] %vm345, 0.0
        %376 = vst.msk [vmem:[#allocation2 + $0xe8] sm:$0x3] %vm347, 0.0
        %377 = vst.msk [vmem:[#allocation2 + $0xf0] sm:$0xff] %vm345, 0.0
        %378 = vst.msk [vmem:[#allocation2 + $0xf8] sm:$0x3] %vm347, 0.0
        %379 = vst.msk [vmem:[#allocation2 + $0x100] sm:$0xff] %vm345, 0.0
        %380 = vst.msk [vmem:[#allocation2 + $0x108] sm:$0x3] %vm347, 0.0
        %381 = vst.msk [vmem:[#allocation2 + $0x110] sm:$0xff] %vm345, 0.0
        %382 = vst.msk [vmem:[#allocation2 + $0x118] sm:$0x3] %vm347, 0.0
        %v383 = vld [vmem:[%s310] sm:$0xff]
        %v384 = vld [vmem:[%s310 + $0x8] sm:$0xff]
        %v385 = vld [vmem:[%s310 + $0x10] sm:$0xff]
        %v386 = vld [vmem:[%s310 + $0x18] sm:$0xff]
        %v387 = vld [vmem:[%s310 + $0x20] sm:$0xff]
        %v388 = vld [vmem:[%s310 + $0x28] sm:$0xff]
        %v389 = vld [vmem:[%s310 + $0x30] sm:$0xff]
        %v390 = vld [vmem:[%s310 + $0x38] sm:$0xff]
        %v391 = vld [vmem:[%s310 + $0x40] sm:$0xff]
        %v392 = vld [vmem:[%s310 + $0x48] sm:$0xff]
        %v393 = vld [vmem:[%s310 + $0x50] sm:$0xff]
        %v394 = vld [vmem:[%s310 + $0x58] sm:$0xff]
        %v395 = vld [vmem:[%s310 + $0x60] sm:$0xff]
        %v396 = vld [vmem:[%s310 + $0x68] sm:$0xff]
        %v397 = vld [vmem:[%s310 + $0x70] sm:$0xff]
        %v398 = vld [vmem:[%s310 + $0x78] sm:$0xff]
        %s399 = scalar_lea.vmem [#allocation2], 16
        %400 = vst.msk [vmem:[%s399 + $0x1] sm:$0xff] %vm345, %v383
        %401 = vst.msk [vmem:[%s399 + $0x11] sm:$0xff] %vm345, %v384
        %402 = vst.msk [vmem:[%s399 + $0x21] sm:$0xff] %vm345, %v385
        %403 = vst.msk [vmem:[%s399 + $0x31] sm:$0xff] %vm345, %v386
        %404 = vst.msk [vmem:[%s399 + $0x41] sm:$0xff] %vm345, %v387
        %405 = vst.msk [vmem:[%s399 + $0x51] sm:$0xff] %vm345, %v388
        %406 = vst.msk [vmem:[%s399 + $0x61] sm:$0xff] %vm345, %v389
        %407 = vst.msk [vmem:[%s399 + $0x71] sm:$0xff] %vm345, %v390
        %408 = vst.msk [vmem:[%s399 + $0x81] sm:$0xff] %vm345, %v391
        %409 = vst.msk [vmem:[%s399 + $0x91] sm:$0xff] %vm345, %v392
        %410 = vst.msk [vmem:[%s399 + $0xa1] sm:$0xff] %vm345, %v393
        %411 = vst.msk [vmem:[%s399 + $0xb1] sm:$0xff] %vm345, %v394
        %412 = vst.msk [vmem:[%s399 + $0xc1] sm:$0xff] %vm345, %v395
        %413 = vst.msk [vmem:[%s399 + $0xd1] sm:$0xff] %vm345, %v396
        %414 = vst.msk [vmem:[%s399 + $0xe1] sm:$0xff] %vm345, %v397
        %415 = vst.msk [vmem:[%s399 + $0xf1] sm:$0xff] %vm345, %v398
        %p416 = scmp.gt.s32.totalorder %s23, 0
        // Predicated region
        $region37: #{tpu_custom_call.1} parent=35 // pred_check
          %p417 = pneg %p416
        $region38: #{tpu_custom_call.1} parent=35 // pred_check_branch
          %419 = sbr.rel (%p417) target = $region40
        $region39: #{tpu_custom_call.1} parent=35 // pred_region
          %v420 = vld [vmem:[%s323] sm:$0xff]
          %421 = vst.msk [vmem:[#allocation2 + $0x1] sm:$0xff] %vm345, %v420
        $region40: #{tpu_custom_call.1} parent=35 // pred_fallthru
          _
        %p422 = scmp.lt.s32.totalorder %s23, 0
        // Predicated region
        $region41: #{tpu_custom_call.1} parent=35 // pred_check
          %p423 = pneg %p422
        $region42: #{tpu_custom_call.1} parent=35 // pred_check_branch
          %425 = sbr.rel (%p423) target = $region44
        $region43: #{tpu_custom_call.1} parent=35 // pred_region
          %v426 = vld [vmem:[%s339] sm:$0xff]
          %s427 = scalar_lea.vmem [#allocation2], 272
          %428 = vst.msk [vmem:[%s427 + $0x1] sm:$0xff] %vm345, %v426
        $region44: #{tpu_custom_call.1} parent=35 // pred_fallthru
          _
        %v429 = vld [vmem:[%s3] sm:$0xff]
        %v430 = vld [vmem:[%s3 + $0x8] sm:$0xff]
        %v431 = vld [vmem:[%s3 + $0x10] sm:$0xff]
        %v432 = vld [vmem:[%s3 + $0x18] sm:$0xff]
        %v433 = vld [vmem:[%s3 + $0x20] sm:$0xf]
        %v434 = vld [vmem:[#allocation2] sm:$0xff]
        %v435 = vld [vmem:[#allocation2 + $0x10] sm:$0xff]
        %v436 = vld [vmem:[#allocation2 + $0x20] sm:$0xff]
        %v437 = vld [vmem:[#allocation2 + $0x30] sm:$0xff]
        %v438 = vld [vmem:[#allocation2 + $0x40] sm:$0xff]
        %v439 = vld [vmem:[#allocation2 + $0x50] sm:$0xff]
        %v440 = vld [vmem:[#allocation2 + $0x60] sm:$0xff]
        %v441 = vld [vmem:[#allocation2 + $0x70] sm:$0xff]
        %v442 = vld [vmem:[#allocation2 + $0x80] sm:$0xff]
        %v443 = vld [vmem:[#allocation2 + $0x90] sm:$0xff]
        %v444 = vld [vmem:[#allocation2 + $0xa0] sm:$0xff]
        %v445 = vld [vmem:[#allocation2 + $0xb0] sm:$0xff]
        %v446 = vld [vmem:[#allocation2 + $0xc0] sm:$0xff]
        %v447 = vld [vmem:[#allocation2 + $0xd0] sm:$0xff]
        %v448 = vld [vmem:[#allocation2 + $0xe0] sm:$0xff]
        %v449 = vld [vmem:[#allocation2 + $0xf0] sm:$0xff]
        %v450 = vld [vmem:[#allocation2 + $0x1] sm:$0xff]
        %v451 = vld [vmem:[#allocation2 + $0x11] sm:$0xff]
        %v452 = vld [vmem:[#allocation2 + $0x21] sm:$0xff]
        %v453 = vld [vmem:[#allocation2 + $0x31] sm:$0xff]
        %v454 = vld [vmem:[#allocation2 + $0x41] sm:$0xff]
        %v455 = vld [vmem:[#allocation2 + $0x51] sm:$0xff]
        %v456 = vld [vmem:[#allocation2 + $0x61] sm:$0xff]
        %v457 = vld [vmem:[#allocation2 + $0x71] sm:$0xff]
        %v458 = vld [vmem:[#allocation2 + $0x81] sm:$0xff]
        %v459 = vld [vmem:[#allocation2 + $0x91] sm:$0xff]
        %v460 = vld [vmem:[#allocation2 + $0xa1] sm:$0xff]
        %v461 = vld [vmem:[#allocation2 + $0xb1] sm:$0xff]
        %v462 = vld [vmem:[#allocation2 + $0xc1] sm:$0xff]
        %v463 = vld [vmem:[#allocation2 + $0xd1] sm:$0xff]
        %v464 = vld [vmem:[#allocation2 + $0xe1] sm:$0xff]
        %v465 = vld [vmem:[#allocation2 + $0xf1] sm:$0xff]
        %v466 = vld [vmem:[%s399] sm:$0xff]
        %v467 = vld [vmem:[%s399 + $0x10] sm:$0xff]
        %v468 = vld [vmem:[%s399 + $0x20] sm:$0xff]
        %v469 = vld [vmem:[%s399 + $0x30] sm:$0xff]
        %v470 = vld [vmem:[%s399 + $0x40] sm:$0xff]
        %v471 = vld [vmem:[%s399 + $0x50] sm:$0xff]
        %v472 = vld [vmem:[%s399 + $0x60] sm:$0xff]
        %v473 = vld [vmem:[%s399 + $0x70] sm:$0xff]
        %v474 = vld [vmem:[%s399 + $0x80] sm:$0xff]
        %v475 = vld [vmem:[%s399 + $0x90] sm:$0xff]
        %v476 = vld [vmem:[%s399 + $0xa0] sm:$0xff]
        %v477 = vld [vmem:[%s399 + $0xb0] sm:$0xff]
        %v478 = vld [vmem:[%s399 + $0xc0] sm:$0xff]
        %v479 = vld [vmem:[%s399 + $0xd0] sm:$0xff]
        %v480 = vld [vmem:[%s399 + $0xe0] sm:$0xff]
        %v481 = vld [vmem:[%s399 + $0xf0] sm:$0xff]
        %v482 = vld [vmem:[%s399 + $0x1] sm:$0xff]
        %v483 = vld [vmem:[%s399 + $0x11] sm:$0xff]
        %v484 = vld [vmem:[%s399 + $0x21] sm:$0xff]
        %v485 = vld [vmem:[%s399 + $0x31] sm:$0xff]
        %v486 = vld [vmem:[%s399 + $0x41] sm:$0xff]
        %v487 = vld [vmem:[%s399 + $0x51] sm:$0xff]
        %v488 = vld [vmem:[%s399 + $0x61] sm:$0xff]
        %v489 = vld [vmem:[%s399 + $0x71] sm:$0xff]
        %v490 = vld [vmem:[%s399 + $0x81] sm:$0xff]
        %v491 = vld [vmem:[%s399 + $0x91] sm:$0xff]
        %v492 = vld [vmem:[%s399 + $0xa1] sm:$0xff]
        %v493 = vld [vmem:[%s399 + $0xb1] sm:$0xff]
        %v494 = vld [vmem:[%s399 + $0xc1] sm:$0xff]
        %v495 = vld [vmem:[%s399 + $0xd1] sm:$0xff]
        %v496 = vld [vmem:[%s399 + $0xe1] sm:$0xff]
        %v497 = vld [vmem:[%s399 + $0xf1] sm:$0xff]
        %s498 = scalar_lea.vmem [#allocation2], 32
        %v499 = vld [vmem:[%s498] sm:$0xff]
        %v500 = vld [vmem:[%s498 + $0x10] sm:$0xff]
        %v501 = vld [vmem:[%s498 + $0x20] sm:$0xff]
        %v502 = vld [vmem:[%s498 + $0x30] sm:$0xff]
        %v503 = vld [vmem:[%s498 + $0x40] sm:$0xff]
        %v504 = vld [vmem:[%s498 + $0x50] sm:$0xff]
        %v505 = vld [vmem:[%s498 + $0x60] sm:$0xff]
        %v506 = vld [vmem:[%s498 + $0x70] sm:$0xff]
        %v507 = vld [vmem:[%s498 + $0x80] sm:$0xff]
        %v508 = vld [vmem:[%s498 + $0x90] sm:$0xff]
        %v509 = vld [vmem:[%s498 + $0xa0] sm:$0xff]
        %v510 = vld [vmem:[%s498 + $0xb0] sm:$0xff]
        %v511 = vld [vmem:[%s498 + $0xc0] sm:$0xff]
        %v512 = vld [vmem:[%s498 + $0xd0] sm:$0xff]
        %v513 = vld [vmem:[%s498 + $0xe0] sm:$0xff]
        %v514 = vld [vmem:[%s498 + $0xf0] sm:$0xff]
        %v515 = vld [vmem:[%s498 + $0x1] sm:$0xff]
        %v516 = vld [vmem:[%s498 + $0x11] sm:$0xff]
        %v517 = vld [vmem:[%s498 + $0x21] sm:$0xff]
        %v518 = vld [vmem:[%s498 + $0x31] sm:$0xff]
        %v519 = vld [vmem:[%s498 + $0x41] sm:$0xff]
        %v520 = vld [vmem:[%s498 + $0x51] sm:$0xff]
        %v521 = vld [vmem:[%s498 + $0x61] sm:$0xff]
        %v522 = vld [vmem:[%s498 + $0x71] sm:$0xff]
        %v523 = vld [vmem:[%s498 + $0x81] sm:$0xff]
        %v524 = vld [vmem:[%s498 + $0x91] sm:$0xff]
        %v525 = vld [vmem:[%s498 + $0xa1] sm:$0xff]
        %v526 = vld [vmem:[%s498 + $0xb1] sm:$0xff]
        %v527 = vld [vmem:[%s498 + $0xc1] sm:$0xff]
        %v528 = vld [vmem:[%s498 + $0xd1] sm:$0xff]
        %v529 = vld [vmem:[%s498 + $0xe1] sm:$0xff]
        %v530 = vld [vmem:[%s498 + $0xf1] sm:$0xff]
        %547 = vrot.lane.b32.xlu0 %v434, 124
        %v548 = vpop.permute.xlu0 %547
        %549 = vrot.lane.b32.xlu0 %v435, 124
        %v550 = vpop.permute.xlu0 %549
        %551 = vrot.lane.b32.xlu0 %v436, 124
        %v552 = vpop.permute.xlu0 %551
        %553 = vrot.lane.b32.xlu0 %v437, 124
        %v554 = vpop.permute.xlu0 %553
        %555 = vrot.lane.b32.xlu0 %v438, 124
        %v556 = vpop.permute.xlu0 %555
        %557 = vrot.lane.b32.xlu0 %v439, 124
        %v558 = vpop.permute.xlu0 %557
        %559 = vrot.lane.b32.xlu0 %v440, 124
        %v560 = vpop.permute.xlu0 %559
        %561 = vrot.lane.b32.xlu0 %v441, 124
        %v562 = vpop.permute.xlu0 %561
        %563 = vrot.lane.b32.xlu0 %v442, 124
        %v564 = vpop.permute.xlu0 %563
        %565 = vrot.lane.b32.xlu0 %v443, 124
        %v566 = vpop.permute.xlu0 %565
        %567 = vrot.lane.b32.xlu0 %v444, 124
        %v568 = vpop.permute.xlu0 %567
        %569 = vrot.lane.b32.xlu0 %v445, 124
        %v570 = vpop.permute.xlu0 %569
        %571 = vrot.lane.b32.xlu0 %v446, 124
        %v572 = vpop.permute.xlu0 %571
        %573 = vrot.lane.b32.xlu0 %v447, 124
        %v574 = vpop.permute.xlu0 %573
        %575 = vrot.lane.b32.xlu0 %v448, 124
        %v576 = vpop.permute.xlu0 %575
        %577 = vrot.lane.b32.xlu0 %v449, 124
        %v578 = vpop.permute.xlu0 %577
        %611 = vrot.lane.b32.xlu0 %v450, 4
        %v612 = vpop.permute.xlu0 %611
        %613 = vrot.lane.b32.xlu0 %v451, 4
        %v614 = vpop.permute.xlu0 %613
        %615 = vrot.lane.b32.xlu0 %v452, 4
        %v616 = vpop.permute.xlu0 %615
        %617 = vrot.lane.b32.xlu0 %v453, 4
        %v618 = vpop.permute.xlu0 %617
        %619 = vrot.lane.b32.xlu0 %v454, 4
        %v620 = vpop.permute.xlu0 %619
        %621 = vrot.lane.b32.xlu0 %v455, 4
        %v622 = vpop.permute.xlu0 %621
        %623 = vrot.lane.b32.xlu0 %v456, 4
        %v624 = vpop.permute.xlu0 %623
        %625 = vrot.lane.b32.xlu0 %v457, 4
        %v626 = vpop.permute.xlu0 %625
        %627 = vrot.lane.b32.xlu0 %v458, 4
        %v628 = vpop.permute.xlu0 %627
        %629 = vrot.lane.b32.xlu0 %v459, 4
        %v630 = vpop.permute.xlu0 %629
        %631 = vrot.lane.b32.xlu0 %v460, 4
        %v632 = vpop.permute.xlu0 %631
        %633 = vrot.lane.b32.xlu0 %v461, 4
        %v634 = vpop.permute.xlu0 %633
        %635 = vrot.lane.b32.xlu0 %v462, 4
        %v636 = vpop.permute.xlu0 %635
        %637 = vrot.lane.b32.xlu0 %v463, 4
        %v638 = vpop.permute.xlu0 %637
        %639 = vrot.lane.b32.xlu0 %v464, 4
        %v640 = vpop.permute.xlu0 %639
        %641 = vrot.lane.b32.xlu0 %v465, 4
        %v642 = vpop.permute.xlu0 %641
        %675 = vrot.lane.b32.xlu0 %v466, 8
        %v676 = vpop.permute.xlu0 %675
        %677 = vrot.lane.b32.xlu0 %v467, 8
        %v678 = vpop.permute.xlu0 %677
        %679 = vrot.lane.b32.xlu0 %v468, 8
        %v680 = vpop.permute.xlu0 %679
        %681 = vrot.lane.b32.xlu0 %v469, 8
        %v682 = vpop.permute.xlu0 %681
        %683 = vrot.lane.b32.xlu0 %v470, 8
        %v684 = vpop.permute.xlu0 %683
        %685 = vrot.lane.b32.xlu0 %v471, 8
        %v686 = vpop.permute.xlu0 %685
        %687 = vrot.lane.b32.xlu0 %v472, 8
        %v688 = vpop.permute.xlu0 %687
        %689 = vrot.lane.b32.xlu0 %v473, 8
        %v690 = vpop.permute.xlu0 %689
        %691 = vrot.lane.b32.xlu0 %v474, 8
        %v692 = vpop.permute.xlu0 %691
        %693 = vrot.lane.b32.xlu0 %v475, 8
        %v694 = vpop.permute.xlu0 %693
        %695 = vrot.lane.b32.xlu0 %v476, 8
        %v696 = vpop.permute.xlu0 %695
        %697 = vrot.lane.b32.xlu0 %v477, 8
        %v698 = vpop.permute.xlu0 %697
        %699 = vrot.lane.b32.xlu0 %v478, 8
        %v700 = vpop.permute.xlu0 %699
        %701 = vrot.lane.b32.xlu0 %v479, 8
        %v702 = vpop.permute.xlu0 %701
        %703 = vrot.lane.b32.xlu0 %v480, 8
        %v704 = vpop.permute.xlu0 %703
        %705 = vrot.lane.b32.xlu0 %v481, 8
        %v706 = vpop.permute.xlu0 %705
        %739 = vrot.lane.b32.xlu0 %v482, 16
        %v740 = vpop.permute.xlu0 %739
        %741 = vrot.lane.b32.xlu0 %v483, 16
        %v742 = vpop.permute.xlu0 %741
        %743 = vrot.lane.b32.xlu0 %v484, 16
        %v744 = vpop.permute.xlu0 %743
        %745 = vrot.lane.b32.xlu0 %v485, 16
        %v746 = vpop.permute.xlu0 %745
        %747 = vrot.lane.b32.xlu0 %v486, 16
        %v748 = vpop.permute.xlu0 %747
        %749 = vrot.lane.b32.xlu0 %v487, 16
        %v750 = vpop.permute.xlu0 %749
        %751 = vrot.lane.b32.xlu0 %v488, 16
        %v752 = vpop.permute.xlu0 %751
        %753 = vrot.lane.b32.xlu0 %v489, 16
        %v754 = vpop.permute.xlu0 %753
        %755 = vrot.lane.b32.xlu0 %v490, 16
        %v756 = vpop.permute.xlu0 %755
        %757 = vrot.lane.b32.xlu0 %v491, 16
        %v758 = vpop.permute.xlu0 %757
        %759 = vrot.lane.b32.xlu0 %v492, 16
        %v760 = vpop.permute.xlu0 %759
        %761 = vrot.lane.b32.xlu0 %v493, 16
        %v762 = vpop.permute.xlu0 %761
        %763 = vrot.lane.b32.xlu0 %v494, 16
        %v764 = vpop.permute.xlu0 %763
        %765 = vrot.lane.b32.xlu0 %v495, 16
        %v766 = vpop.permute.xlu0 %765
        %767 = vrot.lane.b32.xlu0 %v496, 16
        %v768 = vpop.permute.xlu0 %767
        %769 = vrot.lane.b32.xlu0 %v497, 16
        %v770 = vpop.permute.xlu0 %769
        %803 = vrot.lane.b32.xlu0 %v499, 20
        %v804 = vpop.permute.xlu0 %803
        %805 = vrot.lane.b32.xlu0 %v500, 20
        %v806 = vpop.permute.xlu0 %805
        %807 = vrot.lane.b32.xlu0 %v501, 20
        %v808 = vpop.permute.xlu0 %807
        %809 = vrot.lane.b32.xlu0 %v502, 20
        %v810 = vpop.permute.xlu0 %809
        %811 = vrot.lane.b32.xlu0 %v503, 20
        %v812 = vpop.permute.xlu0 %811
        %813 = vrot.lane.b32.xlu0 %v504, 20
        %v814 = vpop.permute.xlu0 %813
        %815 = vrot.lane.b32.xlu0 %v505, 20
        %v816 = vpop.permute.xlu0 %815
        %817 = vrot.lane.b32.xlu0 %v506, 20
        %v818 = vpop.permute.xlu0 %817
        %819 = vrot.lane.b32.xlu0 %v507, 20
        %v820 = vpop.permute.xlu0 %819
        %821 = vrot.lane.b32.xlu0 %v508, 20
        %v822 = vpop.permute.xlu0 %821
        %823 = vrot.lane.b32.xlu0 %v509, 20
        %v824 = vpop.permute.xlu0 %823
        %825 = vrot.lane.b32.xlu0 %v510, 20
        %v826 = vpop.permute.xlu0 %825
        %827 = vrot.lane.b32.xlu0 %v511, 20
        %v828 = vpop.permute.xlu0 %827
        %829 = vrot.lane.b32.xlu0 %v512, 20
        %v830 = vpop.permute.xlu0 %829
        %831 = vrot.lane.b32.xlu0 %v513, 20
        %v832 = vpop.permute.xlu0 %831
        %833 = vrot.lane.b32.xlu0 %v514, 20
        %v834 = vpop.permute.xlu0 %833
        %867 = vrot.lane.b32.xlu0 %v515, 28
        %v868 = vpop.permute.xlu0 %867
        %869 = vrot.lane.b32.xlu0 %v516, 28
        %v870 = vpop.permute.xlu0 %869
        %871 = vrot.lane.b32.xlu0 %v517, 28
        %v872 = vpop.permute.xlu0 %871
        %873 = vrot.lane.b32.xlu0 %v518, 28
        %v874 = vpop.permute.xlu0 %873
        %875 = vrot.lane.b32.xlu0 %v519, 28
        %v876 = vpop.permute.xlu0 %875
        %877 = vrot.lane.b32.xlu0 %v520, 28
        %v878 = vpop.permute.xlu0 %877
        %879 = vrot.lane.b32.xlu0 %v521, 28
        %v880 = vpop.permute.xlu0 %879
        %881 = vrot.lane.b32.xlu0 %v522, 28
        %v882 = vpop.permute.xlu0 %881
        %883 = vrot.lane.b32.xlu0 %v523, 28
        %v884 = vpop.permute.xlu0 %883
        %885 = vrot.lane.b32.xlu0 %v524, 28
        %v886 = vpop.permute.xlu0 %885
        %887 = vrot.lane.b32.xlu0 %v525, 28
        %v888 = vpop.permute.xlu0 %887
        %889 = vrot.lane.b32.xlu0 %v526, 28
        %v890 = vpop.permute.xlu0 %889
        %891 = vrot.lane.b32.xlu0 %v527, 28
        %v892 = vpop.permute.xlu0 %891
        %893 = vrot.lane.b32.xlu0 %v528, 28
        %v894 = vpop.permute.xlu0 %893
        %895 = vrot.lane.b32.xlu0 %v529, 28
        %v896 = vpop.permute.xlu0 %895
        %897 = vrot.lane.b32.xlu0 %v530, 28
        %v898 = vpop.permute.xlu0 %897
        %vm915 = vcmask 31744
        %v916 = vsel %vm915, %v548, %v612
        %v917 = vsel %vm915, %v550, %v614
        %v918 = vsel %vm915, %v552, %v616
        %v919 = vsel %vm915, %v554, %v618
        %v920 = vsel %vm915, %v556, %v620
        %v921 = vsel %vm915, %v558, %v622
        %v922 = vsel %vm915, %v560, %v624
        %v923 = vsel %vm915, %v562, %v626
        %v924 = vsel %vm915, %v564, %v628
        %v925 = vsel %vm915, %v566, %v630
        %v926 = vsel %vm915, %v568, %v632
        %v927 = vsel %vm915, %v570, %v634
        %v928 = vsel %vm915, %v572, %v636
        %v929 = vsel %vm915, %v574, %v638
        %v930 = vsel %vm915, %v576, %v640
        %v931 = vsel %vm915, %v578, %v642
        %v932 = vsel %vm345, %v916, %v612
        %v933 = vsel %vm345, %v917, %v614
        %v934 = vsel %vm345, %v918, %v616
        %v935 = vsel %vm345, %v919, %v618
        %v936 = vsel %vm345, %v920, %v620
        %v937 = vsel %vm345, %v921, %v622
        %v938 = vsel %vm345, %v922, %v624
        %v939 = vsel %vm345, %v923, %v626
        %v940 = vsel %vm345, %v924, %v628
        %v941 = vsel %vm345, %v925, %v630
        %v942 = vsel %vm345, %v926, %v632
        %v943 = vsel %vm345, %v927, %v634
        %v944 = vsel %vm345, %v928, %v636
        %v945 = vsel %vm345, %v929, %v638
        %v946 = vsel %vm345, %v930, %v640
        %v947 = vsel %vm345, %v931, %v642
        %vm948 = vcmask 97280
        %v949 = vsel %vm948, %v932, %v676
        %v950 = vsel %vm948, %v933, %v678
        %v951 = vsel %vm948, %v934, %v680
        %v952 = vsel %vm948, %v935, %v682
        %v953 = vsel %vm948, %v936, %v684
        %v954 = vsel %vm948, %v937, %v686
        %v955 = vsel %vm948, %v938, %v688
        %v956 = vsel %vm948, %v939, %v690
        %v957 = vsel %vm948, %v940, %v692
        %v958 = vsel %vm948, %v941, %v694
        %v959 = vsel %vm948, %v942, %v696
        %v960 = vsel %vm948, %v943, %v698
        %v961 = vsel %vm948, %v944, %v700
        %v962 = vsel %vm948, %v945, %v702
        %v963 = vsel %vm948, %v946, %v704
        %v964 = vsel %vm948, %v947, %v706
        %vm965 = vcmask 130048
        %v966 = vsel %vm965, %v949, %v740
        %v967 = vsel %vm965, %v950, %v742
        %v968 = vsel %vm965, %v951, %v744
        %v969 = vsel %vm965, %v952, %v746
        %v970 = vsel %vm965, %v953, %v748
        %v971 = vsel %vm965, %v954, %v750
        %v972 = vsel %vm965, %v955, %v752
        %v973 = vsel %vm965, %v956, %v754
        %v974 = vsel %vm965, %v957, %v756
        %v975 = vsel %vm965, %v958, %v758
        %v976 = vsel %vm965, %v959, %v760
        %v977 = vsel %vm965, %v960, %v762
        %v978 = vsel %vm965, %v961, %v764
        %v979 = vsel %vm965, %v962, %v766
        %v980 = vsel %vm965, %v963, %v768
        %v981 = vsel %vm965, %v964, %v770
        %vm982 = vcmask 162816
        %v983 = vsel %vm982, %v966, %v740
        %v984 = vsel %vm982, %v967, %v742
        %v985 = vsel %vm982, %v968, %v744
        %v986 = vsel %vm982, %v969, %v746
        %v987 = vsel %vm982, %v970, %v748
        %v988 = vsel %vm982, %v971, %v750
        %v989 = vsel %vm982, %v972, %v752
        %v990 = vsel %vm982, %v973, %v754
        %v991 = vsel %vm982, %v974, %v756
        %v992 = vsel %vm982, %v975, %v758
        %v993 = vsel %vm982, %v976, %v760
        %v994 = vsel %vm982, %v977, %v762
        %v995 = vsel %vm982, %v978, %v764
        %v996 = vsel %vm982, %v979, %v766
        %v997 = vsel %vm982, %v980, %v768
        %v998 = vsel %vm982, %v981, %v770
        %vm999 = vcmask 195584
        %v1000 = vsel %vm999, %v983, %v804
        %v1001 = vsel %vm999, %v984, %v806
        %v1002 = vsel %vm999, %v985, %v808
        %v1003 = vsel %vm999, %v986, %v810
        %v1004 = vsel %vm999, %v987, %v812
        %v1005 = vsel %vm999, %v988, %v814
        %v1006 = vsel %vm999, %v989, %v816
        %v1007 = vsel %vm999, %v990, %v818
        %v1008 = vsel %vm999, %v991, %v820
        %v1009 = vsel %vm999, %v992, %v822
        %v1010 = vsel %vm999, %v993, %v824
        %v1011 = vsel %vm999, %v994, %v826
        %v1012 = vsel %vm999, %v995, %v828
        %v1013 = vsel %vm999, %v996, %v830
        %v1014 = vsel %vm999, %v997, %v832
        %v1015 = vsel %vm999, %v998, %v834
        %vm1016 = vcmask 228352
        %v1017 = vsel %vm1016, %v1000, %v868
        %v1018 = vsel %vm1016, %v1001, %v870
        %v1019 = vsel %vm1016, %v1002, %v872
        %v1020 = vsel %vm1016, %v1003, %v874
        %v1021 = vsel %vm1016, %v1004, %v876
        %v1022 = vsel %vm1016, %v1005, %v878
        %v1023 = vsel %vm1016, %v1006, %v880
        %v1024 = vsel %vm1016, %v1007, %v882
        %v1025 = vsel %vm1016, %v1008, %v884
        %v1026 = vsel %vm1016, %v1009, %v886
        %v1027 = vsel %vm1016, %v1010, %v888
        %v1028 = vsel %vm1016, %v1011, %v890
        %v1029 = vsel %vm1016, %v1012, %v892
        %v1030 = vsel %vm1016, %v1013, %v894
        %v1031 = vsel %vm1016, %v1014, %v896
        %v1032 = vsel %vm1016, %v1015, %v898
        %vm1033 = vcmask 261120
        %v1034 = vsel %vm1033, %v1017, %v868
        %v1035 = vsel %vm1033, %v1018, %v870
        %v1036 = vsel %vm1033, %v1019, %v872
        %v1037 = vsel %vm1033, %v1020, %v874
        %v1038 = vsel %vm1033, %v1021, %v876
        %v1039 = vsel %vm1033, %v1022, %v878
        %v1040 = vsel %vm1033, %v1023, %v880
        %v1041 = vsel %vm1033, %v1024, %v882
        %v1042 = vsel %vm1033, %v1025, %v884
        %v1043 = vsel %vm1033, %v1026, %v886
        %v1044 = vsel %vm1033, %v1027, %v888
        %v1045 = vsel %vm1033, %v1028, %v890
        %v1046 = vsel %vm1033, %v1029, %v892
        %v1047 = vsel %vm1033, %v1030, %v894
        %v1048 = vsel %vm1033, %v1031, %v896
        %v1049 = vsel %vm1033, %v1032, %v898
        %vm1050 = vcmask 293888
        %v1052 = vsel %vm1050, %v1034, 0
        %v1055 = vsel %vm1050, %v1035, 0
        %v1058 = vsel %vm1050, %v1036, 0
        %v1061 = vsel %vm1050, %v1037, 0
        %v1064 = vsel %vm1050, %v1038, 0
        %v1067 = vsel %vm1050, %v1039, 0
        %v1070 = vsel %vm1050, %v1040, 0
        %v1073 = vsel %vm1050, %v1041, 0
        %v1076 = vsel %vm1050, %v1042, 0
        %v1079 = vsel %vm1050, %v1043, 0
        %v1082 = vsel %vm1050, %v1044, 0
        %v1085 = vsel %vm1050, %v1045, 0
        %v1088 = vsel %vm1050, %v1046, 0
        %v1091 = vsel %vm1050, %v1047, 0
        %v1094 = vsel %vm1050, %v1048, 0
        %v1097 = vsel %vm1050, %v1049, 0
        %vm1099 = vcmask 1043456
        %v1101 = vsel %vm1099, %v433, 0
        %1103 = vmatprep.subr.mxu0 0.0
        %1104 = vmatpush1.msra.mxu0 0.0
        %1105 = vmatprep.subr.mxu0 0.0
        %1106 = vmatpush1.msra.mxu0 0.0
        %1107 = vmatprep.subr.mxu0 0.0
        %1108 = vmatpush1.msra.mxu0 0.0
        %1109 = vmatprep.subr.mxu0 0.0
        %1110 = vmatpush1.msra.mxu0 0.0
        %1111 = vmatprep.subr.mxu0 0.0
        %1112 = vmatpush1.msra.mxu0 0.0
        %1113 = vmatprep.subr.mxu0 0.0
        %1114 = vmatpush1.msra.mxu0 0.0
        %1115 = vmatprep.subr.mxu0 0.0
        %1116 = vmatpush1.msra.mxu0 0.0
        %1117 = vmatprep.subr.mxu0 0.0
        %1118 = vmatpush1.msra.mxu0 0.0
        %1119 = vmatprep.subr.mxu0 0.0
        %1120 = vmatpush1.msra.mxu0 0.0
        %1121 = vmatprep.subr.mxu0 0.0
        %1122 = vmatpush1.msra.mxu0 0.0
        %1123 = vmatprep.subr.mxu0 0.0
        %1124 = vmatpush1.msra.mxu0 0.0
        %1125 = vmatprep.subr.mxu0 0.0
        %v1126 = vand.u32 %v1101, 4294901760
        %1127 = vmatpush1.msra.mxu0 %v1126
        %1128 = vmatprep.subr.mxu0 0.0
        %v1129 = vand.u32 %v432, 4294901760
        %1130 = vmatpush1.msra.mxu0 %v1129
        %1131 = vmatprep.subr.mxu0 0.0
        %v1132 = vand.u32 %v431, 4294901760
        %1133 = vmatpush1.msra.mxu0 %v1132
        %1134 = vmatprep.subr.mxu0 0.0
        %v1135 = vand.u32 %v430, 4294901760
        %1136 = vmatpush1.msra.mxu0 %v1135
        %1137 = vmatprep.subr.mxu0 0.0
        %v1138 = vand.u32 %v429, 4294901760
        %1139 = vmatpush1.msra.mxu0 %v1138
        %1140 = vmatprep.subr.mxu0 0.0
        %1141 = vmatpush2.msra.mxu0 0.0
        %1142 = vmatprep.subr.mxu0 0.0
        %1143 = vmatpush2.msra.mxu0 0.0
        %1144 = vmatprep.subr.mxu0 0.0
        %1145 = vmatpush2.msra.mxu0 0.0
        %1146 = vmatprep.subr.mxu0 0.0
        %1147 = vmatpush2.msra.mxu0 0.0
        %1148 = vmatprep.subr.mxu0 0.0
        %1149 = vmatpush2.msra.mxu0 0.0
        %1150 = vmatprep.subr.mxu0 0.0
        %1151 = vmatpush2.msra.mxu0 0.0
        %1152 = vmatprep.subr.mxu0 0.0
        %1153 = vmatpush2.msra.mxu0 0.0
        %1154 = vmatprep.subr.mxu0 0.0
        %1155 = vmatpush2.msra.mxu0 0.0
        %1156 = vmatprep.subr.mxu0 0.0
        %1157 = vmatpush2.msra.mxu0 0.0
        %1158 = vmatprep.subr.mxu0 0.0
        %1159 = vmatpush2.msra.mxu0 0.0
        %1160 = vmatprep.subr.mxu0 0.0
        %1161 = vmatpush2.msra.mxu0 0.0
        %1162 = vmatprep.subr.mxu0 0.0
        %1163 = vmatpush2.msra.mxu0 0.0
        %1164 = vmatprep.subr.mxu0 0.0
        %1165 = vmatpush2.msra.mxu0 0.0
        %1166 = vmatprep.subr.mxu0 0.0
        %1167 = vmatpush2.msra.mxu0 0.0
        %1168 = vmatprep.subr.mxu0 0.0
        %1169 = vmatpush2.msra.mxu0 0.0
        %1170 = vmatprep.subr.mxu0 0.0
        %1171 = vmatpush2.msra.mxu0 0.0
        %1172 = vmatprep.mubr.f32.mxu0 0.0
        %v1173 = vand.u32 %v1052, 4294901760
        %v1174 = vsub.f32 %v1052, %v1173
        %v1175 = vand.u32 %v1174, 4294901760
        %v1176 = vsub.f32 %v1174, %v1175
        %v1177 = vand.u32 %v1176, 4294901760
        %1178 = vmatmul.mubr.f32.gmra.mxu0 %v1177
        %v1179 = vpop.f32.mrf.mxu0
        %v1180 = vadd.f32 0.0, %v1179
        %v1181 = vpop.f32.mrf.mxu0
        %1182 = vmatprep.mubr.f32.mxu0 0.0
        %v1183 = vand.u32 %v1055, 4294901760
        %v1184 = vsub.f32 %v1055, %v1183
        %v1185 = vand.u32 %v1184, 4294901760
        %v1186 = vsub.f32 %v1184, %v1185
        %v1187 = vand.u32 %v1186, 4294901760
        %1188 = vmatmul.mubr.f32.gmra.mxu0 %v1187
        %v1189 = vpop.f32.mrf.mxu0
        %v1190 = vadd.f32 0.0, %v1189
        %v1191 = vpop.f32.mrf.mxu0
        %1192 = vmatprep.mubr.f32.mxu0 0.0
        %v1193 = vand.u32 %v1058, 4294901760
        %v1194 = vsub.f32 %v1058, %v1193
        %v1195 = vand.u32 %v1194, 4294901760
        %v1196 = vsub.f32 %v1194, %v1195
        %v1197 = vand.u32 %v1196, 4294901760
        %1198 = vmatmul.mubr.f32.gmra.mxu0 %v1197
        %v1199 = vpop.f32.mrf.mxu0
        %v1200 = vadd.f32 0.0, %v1199
        %v1201 = vpop.f32.mrf.mxu0
        %1202 = vmatprep.mubr.f32.mxu0 0.0
        %v1203 = vand.u32 %v1061, 4294901760
        %v1204 = vsub.f32 %v1061, %v1203
        %v1205 = vand.u32 %v1204, 4294901760
        %v1206 = vsub.f32 %v1204, %v1205
        %v1207 = vand.u32 %v1206, 4294901760
        %1208 = vmatmul.mubr.f32.gmra.mxu0 %v1207
        %v1209 = vpop.f32.mrf.mxu0
        %v1210 = vadd.f32 0.0, %v1209
        %v1211 = vpop.f32.mrf.mxu0
        %1212 = vmatprep.mubr.f32.mxu0 0.0
        %v1213 = vand.u32 %v1064, 4294901760
        %v1214 = vsub.f32 %v1064, %v1213
        %v1215 = vand.u32 %v1214, 4294901760
        %v1216 = vsub.f32 %v1214, %v1215
        %v1217 = vand.u32 %v1216, 4294901760
        %1218 = vmatmul.mubr.f32.gmra.mxu0 %v1217
        %v1219 = vpop.f32.mrf.mxu0
        %v1220 = vadd.f32 0.0, %v1219
        %v1221 = vpop.f32.mrf.mxu0
        %1222 = vmatprep.mubr.f32.mxu0 0.0
        %v1223 = vand.u32 %v1067, 4294901760
        %v1224 = vsub.f32 %v1067, %v1223
        %v1225 = vand.u32 %v1224, 4294901760
        %v1226 = vsub.f32 %v1224, %v1225
        %v1227 = vand.u32 %v1226, 4294901760
        %1228 = vmatmul.mubr.f32.gmra.mxu0 %v1227
        %v1229 = vpop.f32.mrf.mxu0
        %v1230 = vadd.f32 0.0, %v1229
        %v1231 = vpop.f32.mrf.mxu0
        %1232 = vmatprep.mubr.f32.mxu0 0.0
        %v1233 = vand.u32 %v1070, 4294901760
        %v1234 = vsub.f32 %v1070, %v1233
        %v1235 = vand.u32 %v1234, 4294901760
        %v1236 = vsub.f32 %v1234, %v1235
        %v1237 = vand.u32 %v1236, 4294901760
        %1238 = vmatmul.mubr.f32.gmra.mxu0 %v1237
        %v1239 = vpop.f32.mrf.mxu0
        %v1240 = vadd.f32 0.0, %v1239
        %v1241 = vpop.f32.mrf.mxu0
        %1242 = vmatprep.mubr.f32.mxu0 0.0
        %v1243 = vand.u32 %v1073, 4294901760
        %v1244 = vsub.f32 %v1073, %v1243
        %v1245 = vand.u32 %v1244, 4294901760
        %v1246 = vsub.f32 %v1244, %v1245
        %v1247 = vand.u32 %v1246, 4294901760
        %1248 = vmatmul.mubr.f32.gmra.mxu0 %v1247
        %v1249 = vpop.f32.mrf.mxu0
        %v1250 = vadd.f32 0.0, %v1249
        %v1251 = vpop.f32.mrf.mxu0
        %1252 = vmatprep.mubr.f32.mxu0 0.0
        %v1253 = vand.u32 %v1076, 4294901760
        %v1254 = vsub.f32 %v1076, %v1253
        %v1255 = vand.u32 %v1254, 4294901760
        %v1256 = vsub.f32 %v1254, %v1255
        %v1257 = vand.u32 %v1256, 4294901760
        %1258 = vmatmul.mubr.f32.gmra.mxu0 %v1257
        %v1259 = vpop.f32.mrf.mxu0
        %v1260 = vadd.f32 0.0, %v1259
        %v1261 = vpop.f32.mrf.mxu0
        %1262 = vmatprep.mubr.f32.mxu0 0.0
        %v1263 = vand.u32 %v1079, 4294901760
        %v1264 = vsub.f32 %v1079, %v1263
        %v1265 = vand.u32 %v1264, 4294901760
        %v1266 = vsub.f32 %v1264, %v1265
        %v1267 = vand.u32 %v1266, 4294901760
        %1268 = vmatmul.mubr.f32.gmra.mxu0 %v1267
        %v1269 = vpop.f32.mrf.mxu0
        %v1270 = vadd.f32 0.0, %v1269
        %v1271 = vpop.f32.mrf.mxu0
        %1272 = vmatprep.mubr.f32.mxu0 0.0
        %v1273 = vand.u32 %v1082, 4294901760
        %v1274 = vsub.f32 %v1082, %v1273
        %v1275 = vand.u32 %v1274, 4294901760
        %v1276 = vsub.f32 %v1274, %v1275
        %v1277 = vand.u32 %v1276, 4294901760
        %1278 = vmatmul.mubr.f32.gmra.mxu0 %v1277
        %v1279 = vpop.f32.mrf.mxu0
        %v1280 = vadd.f32 0.0, %v1279
        %v1281 = vpop.f32.mrf.mxu0
        %1282 = vmatprep.mubr.f32.mxu0 0.0
        %v1283 = vand.u32 %v1085, 4294901760
        %v1284 = vsub.f32 %v1085, %v1283
        %v1285 = vand.u32 %v1284, 4294901760
        %v1286 = vsub.f32 %v1284, %v1285
        %v1287 = vand.u32 %v1286, 4294901760
        %1288 = vmatmul.mubr.f32.gmra.mxu0 %v1287
        %v1289 = vpop.f32.mrf.mxu0
        %v1290 = vadd.f32 0.0, %v1289
        %v1291 = vpop.f32.mrf.mxu0
        %1292 = vmatprep.mubr.f32.mxu0 0.0
        %v1293 = vand.u32 %v1088, 4294901760
        %v1294 = vsub.f32 %v1088, %v1293
        %v1295 = vand.u32 %v1294, 4294901760
        %v1296 = vsub.f32 %v1294, %v1295
        %v1297 = vand.u32 %v1296, 4294901760
        %1298 = vmatmul.mubr.f32.gmra.mxu0 %v1297
        %v1299 = vpop.f32.mrf.mxu0
        %v1300 = vadd.f32 0.0, %v1299
        %v1301 = vpop.f32.mrf.mxu0
        %1302 = vmatprep.mubr.f32.mxu0 0.0
        %v1303 = vand.u32 %v1091, 4294901760
        %v1304 = vsub.f32 %v1091, %v1303
        %v1305 = vand.u32 %v1304, 4294901760
        %v1306 = vsub.f32 %v1304, %v1305
        %v1307 = vand.u32 %v1306, 4294901760
        %1308 = vmatmul.mubr.f32.gmra.mxu0 %v1307
        %v1309 = vpop.f32.mrf.mxu0
        %v1310 = vadd.f32 0.0, %v1309
        %v1311 = vpop.f32.mrf.mxu0
        %1312 = vmatprep.mubr.f32.mxu0 0.0
        %v1313 = vand.u32 %v1094, 4294901760
        %v1314 = vsub.f32 %v1094, %v1313
        %v1315 = vand.u32 %v1314, 4294901760
        %v1316 = vsub.f32 %v1314, %v1315
        %v1317 = vand.u32 %v1316, 4294901760
        %1318 = vmatmul.mubr.f32.gmra.mxu0 %v1317
        %v1319 = vpop.f32.mrf.mxu0
        %v1320 = vadd.f32 0.0, %v1319
        %v1321 = vpop.f32.mrf.mxu0
        %1322 = vmatprep.mubr.f32.mxu0 0.0
        %v1323 = vand.u32 %v1097, 4294901760
        %v1324 = vsub.f32 %v1097, %v1323
        %v1325 = vand.u32 %v1324, 4294901760
        %v1326 = vsub.f32 %v1324, %v1325
        %v1327 = vand.u32 %v1326, 4294901760
        %1328 = vmatmul.mubr.f32.gmra.mxu0 %v1327
        %v1329 = vpop.f32.mrf.mxu0
        %v1330 = vadd.f32 0.0, %v1329
        %v1331 = vpop.f32.mrf.mxu0
        %1332 = vdwg.mxu0
        %1333 = vmatprep.subr.mxu0 0.0
        %1334 = vmatpush1.msra.mxu0 0.0
        %1335 = vmatprep.subr.mxu0 0.0
        %1336 = vmatpush1.msra.mxu0 0.0
        %1337 = vmatprep.subr.mxu0 0.0
        %1338 = vmatpush1.msra.mxu0 0.0
        %1339 = vmatprep.subr.mxu0 0.0
        %1340 = vmatpush1.msra.mxu0 0.0
        %1341 = vmatprep.subr.mxu0 0.0
        %1342 = vmatpush1.msra.mxu0 0.0
        %1343 = vmatprep.subr.mxu0 0.0
        %1344 = vmatpush1.msra.mxu0 0.0
        %1345 = vmatprep.subr.mxu0 0.0
        %1346 = vmatpush1.msra.mxu0 0.0
        %1347 = vmatprep.subr.mxu0 0.0
        %1348 = vmatpush1.msra.mxu0 0.0
        %1349 = vmatprep.subr.mxu0 0.0
        %1350 = vmatpush1.msra.mxu0 0.0
        %1351 = vmatprep.subr.mxu0 0.0
        %1352 = vmatpush1.msra.mxu0 0.0
        %1353 = vmatprep.subr.mxu0 0.0
        %1354 = vmatpush1.msra.mxu0 0.0
        %1355 = vmatprep.subr.mxu0 0.0
        %v1356 = vand.u32 %v1101, 4294901760
        %v1357 = vsub.f32 %v1101, %v1356
        %v1358 = vand.u32 %v1357, 4294901760
        %v1359 = vsub.f32 %v1357, %v1358
        %v1360 = vand.u32 %v1359, 4294901760
        %1361 = vmatpush1.msra.mxu0 %v1360
        %1362 = vmatprep.subr.mxu0 0.0
        %v1363 = vand.u32 %v432, 4294901760
        %v1364 = vsub.f32 %v432, %v1363
        %v1365 = vand.u32 %v1364, 4294901760
        %v1366 = vsub.f32 %v1364, %v1365
        %v1367 = vand.u32 %v1366, 4294901760
        %1368 = vmatpush1.msra.mxu0 %v1367
        %1369 = vmatprep.subr.mxu0 0.0
        %v1370 = vand.u32 %v431, 4294901760
        %v1371 = vsub.f32 %v431, %v1370
        %v1372 = vand.u32 %v1371, 4294901760
        %v1373 = vsub.f32 %v1371, %v1372
        %v1374 = vand.u32 %v1373, 4294901760
        %1375 = vmatpush1.msra.mxu0 %v1374
        %1376 = vmatprep.subr.mxu0 0.0
        %v1377 = vand.u32 %v430, 4294901760
        %v1378 = vsub.f32 %v430, %v1377
        %v1379 = vand.u32 %v1378, 4294901760
        %v1380 = vsub.f32 %v1378, %v1379
        %v1381 = vand.u32 %v1380, 4294901760
        %1382 = vmatpush1.msra.mxu0 %v1381
        %1383 = vmatprep.subr.mxu0 0.0
        %v1384 = vand.u32 %v429, 4294901760
        %v1385 = vsub.f32 %v429, %v1384
        %v1386 = vand.u32 %v1385, 4294901760
        %v1387 = vsub.f32 %v1385, %v1386
        %v1388 = vand.u32 %v1387, 4294901760
        %1389 = vmatpush1.msra.mxu0 %v1388
        %1390 = vmatprep.subr.mxu0 0.0
        %1391 = vmatpush2.msra.mxu0 0.0
        %1392 = vmatprep.subr.mxu0 0.0
        %1393 = vmatpush2.msra.mxu0 0.0
        %1394 = vmatprep.subr.mxu0 0.0
        %1395 = vmatpush2.msra.mxu0 0.0
        %1396 = vmatprep.subr.mxu0 0.0
        %1397 = vmatpush2.msra.mxu0 0.0
        %1398 = vmatprep.subr.mxu0 0.0
        %1399 = vmatpush2.msra.mxu0 0.0
        %1400 = vmatprep.subr.mxu0 0.0
        %1401 = vmatpush2.msra.mxu0 0.0
        %1402 = vmatprep.subr.mxu0 0.0
        %1403 = vmatpush2.msra.mxu0 0.0
        %1404 = vmatprep.subr.mxu0 0.0
        %1405 = vmatpush2.msra.mxu0 0.0
        %1406 = vmatprep.subr.mxu0 0.0
        %1407 = vmatpush2.msra.mxu0 0.0
        %1408 = vmatprep.subr.mxu0 0.0
        %1409 = vmatpush2.msra.mxu0 0.0
        %1410 = vmatprep.subr.mxu0 0.0
        %1411 = vmatpush2.msra.mxu0 0.0
        %1412 = vmatprep.subr.mxu0 0.0
        %1413 = vmatpush2.msra.mxu0 0.0
        %1414 = vmatprep.subr.mxu0 0.0
        %1415 = vmatpush2.msra.mxu0 0.0
        %1416 = vmatprep.subr.mxu0 0.0
        %1417 = vmatpush2.msra.mxu0 0.0
        %1418 = vmatprep.subr.mxu0 0.0
        %1419 = vmatpush2.msra.mxu0 0.0
        %1420 = vmatprep.subr.mxu0 0.0
        %1421 = vmatpush2.msra.mxu0 0.0
        %1422 = vmatprep.mubr.f32.mxu0 0.0
        %v1423 = vand.u32 %v1052, 4294901760
        %1424 = vmatmul.mubr.f32.gmra.mxu0 %v1423
        %v1425 = vpop.f32.mrf.mxu0
        %v1426 = vadd.f32 %v1180, %v1425
        %v1427 = vpop.f32.mrf.mxu0
        %1428 = vmatprep.mubr.f32.mxu0 0.0
        %v1429 = vand.u32 %v1055, 4294901760
        %1430 = vmatmul.mubr.f32.gmra.mxu0 %v1429
        %v1431 = vpop.f32.mrf.mxu0
        %v1432 = vadd.f32 %v1190, %v1431
        %v1433 = vpop.f32.mrf.mxu0
        %1434 = vmatprep.mubr.f32.mxu0 0.0
        %v1435 = vand.u32 %v1058, 4294901760
        %1436 = vmatmul.mubr.f32.gmra.mxu0 %v1435
        %v1437 = vpop.f32.mrf.mxu0
        %v1438 = vadd.f32 %v1200, %v1437
        %v1439 = vpop.f32.mrf.mxu0
        %1440 = vmatprep.mubr.f32.mxu0 0.0
        %v1441 = vand.u32 %v1061, 4294901760
        %1442 = vmatmul.mubr.f32.gmra.mxu0 %v1441
        %v1443 = vpop.f32.mrf.mxu0
        %v1444 = vadd.f32 %v1210, %v1443
        %v1445 = vpop.f32.mrf.mxu0
        %1446 = vmatprep.mubr.f32.mxu0 0.0
        %v1447 = vand.u32 %v1064, 4294901760
        %1448 = vmatmul.mubr.f32.gmra.mxu0 %v1447
        %v1449 = vpop.f32.mrf.mxu0
        %v1450 = vadd.f32 %v1220, %v1449
        %v1451 = vpop.f32.mrf.mxu0
        %1452 = vmatprep.mubr.f32.mxu0 0.0
        %v1453 = vand.u32 %v1067, 4294901760
        %1454 = vmatmul.mubr.f32.gmra.mxu0 %v1453
        %v1455 = vpop.f32.mrf.mxu0
        %v1456 = vadd.f32 %v1230, %v1455
        %v1457 = vpop.f32.mrf.mxu0
        %1458 = vmatprep.mubr.f32.mxu0 0.0
        %v1459 = vand.u32 %v1070, 4294901760
        %1460 = vmatmul.mubr.f32.gmra.mxu0 %v1459
        %v1461 = vpop.f32.mrf.mxu0
        %v1462 = vadd.f32 %v1240, %v1461
        %v1463 = vpop.f32.mrf.mxu0
        %1464 = vmatprep.mubr.f32.mxu0 0.0
        %v1465 = vand.u32 %v1073, 4294901760
        %1466 = vmatmul.mubr.f32.gmra.mxu0 %v1465
        %v1467 = vpop.f32.mrf.mxu0
        %v1468 = vadd.f32 %v1250, %v1467
        %v1469 = vpop.f32.mrf.mxu0
        %1470 = vmatprep.mubr.f32.mxu0 0.0
        %v1471 = vand.u32 %v1076, 4294901760
        %1472 = vmatmul.mubr.f32.gmra.mxu0 %v1471
        %v1473 = vpop.f32.mrf.mxu0
        %v1474 = vadd.f32 %v1260, %v1473
        %v1475 = vpop.f32.mrf.mxu0
        %1476 = vmatprep.mubr.f32.mxu0 0.0
        %v1477 = vand.u32 %v1079, 4294901760
        %1478 = vmatmul.mubr.f32.gmra.mxu0 %v1477
        %v1479 = vpop.f32.mrf.mxu0
        %v1480 = vadd.f32 %v1270, %v1479
        %v1481 = vpop.f32.mrf.mxu0
        %1482 = vmatprep.mubr.f32.mxu0 0.0
        %v1483 = vand.u32 %v1082, 4294901760
        %1484 = vmatmul.mubr.f32.gmra.mxu0 %v1483
        %v1485 = vpop.f32.mrf.mxu0
        %v1486 = vadd.f32 %v1280, %v1485
        %v1487 = vpop.f32.mrf.mxu0
        %1488 = vmatprep.mubr.f32.mxu0 0.0
        %v1489 = vand.u32 %v1085, 4294901760
        %1490 = vmatmul.mubr.f32.gmra.mxu0 %v1489
        %v1491 = vpop.f32.mrf.mxu0
        %v1492 = vadd.f32 %v1290, %v1491
        %v1493 = vpop.f32.mrf.mxu0
        %1494 = vmatprep.mubr.f32.mxu0 0.0
        %v1495 = vand.u32 %v1088, 4294901760
        %1496 = vmatmul.mubr.f32.gmra.mxu0 %v1495
        %v1497 = vpop.f32.mrf.mxu0
        %v1498 = vadd.f32 %v1300, %v1497
        %v1499 = vpop.f32.mrf.mxu0
        %1500 = vmatprep.mubr.f32.mxu0 0.0
        %v1501 = vand.u32 %v1091, 4294901760
        %1502 = vmatmul.mubr.f32.gmra.mxu0 %v1501
        %v1503 = vpop.f32.mrf.mxu0
        %v1504 = vadd.f32 %v1310, %v1503
        %v1505 = vpop.f32.mrf.mxu0
        %1506 = vmatprep.mubr.f32.mxu0 0.0
        %v1507 = vand.u32 %v1094, 4294901760
        %1508 = vmatmul.mubr.f32.gmra.mxu0 %v1507
        %v1509 = vpop.f32.mrf.mxu0
        %v1510 = vadd.f32 %v1320, %v1509
        %v1511 = vpop.f32.mrf.mxu0
        %1512 = vmatprep.mubr.f32.mxu0 0.0
        %v1513 = vand.u32 %v1097, 4294901760
        %1514 = vmatmul.mubr.f32.gmra.mxu0 %v1513
        %v1515 = vpop.f32.mrf.mxu0
        %v1516 = vadd.f32 %v1330, %v1515
        %v1517 = vpop.f32.mrf.mxu0
        %1518 = vdwg.mxu0
        %1519 = vmatprep.subr.mxu0 0.0
        %1520 = vmatpush1.msra.mxu0 0.0
        %1521 = vmatprep.subr.mxu0 0.0
        %1522 = vmatpush1.msra.mxu0 0.0
        %1523 = vmatprep.subr.mxu0 0.0
        %1524 = vmatpush1.msra.mxu0 0.0
        %1525 = vmatprep.subr.mxu0 0.0
        %1526 = vmatpush1.msra.mxu0 0.0
        %1527 = vmatprep.subr.mxu0 0.0
        %1528 = vmatpush1.msra.mxu0 0.0
        %1529 = vmatprep.subr.mxu0 0.0
        %1530 = vmatpush1.msra.mxu0 0.0
        %1531 = vmatprep.subr.mxu0 0.0
        %1532 = vmatpush1.msra.mxu0 0.0
        %1533 = vmatprep.subr.mxu0 0.0
        %1534 = vmatpush1.msra.mxu0 0.0
        %1535 = vmatprep.subr.mxu0 0.0
        %1536 = vmatpush1.msra.mxu0 0.0
        %1537 = vmatprep.subr.mxu0 0.0
        %1538 = vmatpush1.msra.mxu0 0.0
        %1539 = vmatprep.subr.mxu0 0.0
        %1540 = vmatpush1.msra.mxu0 0.0
        %1541 = vmatprep.subr.mxu0 0.0
        %v1542 = vand.u32 %v1101, 4294901760
        %v1543 = vsub.f32 %v1101, %v1542
        %1544 = vmatpush1.msra.mxu0 %v1543
        %1545 = vmatprep.subr.mxu0 0.0
        %v1546 = vand.u32 %v432, 4294901760
        %v1547 = vsub.f32 %v432, %v1546
        %1548 = vmatpush1.msra.mxu0 %v1547
        %1549 = vmatprep.subr.mxu0 0.0
        %v1550 = vand.u32 %v431, 4294901760
        %v1551 = vsub.f32 %v431, %v1550
        %1552 = vmatpush1.msra.mxu0 %v1551
        %1553 = vmatprep.subr.mxu0 0.0
        %v1554 = vand.u32 %v430, 4294901760
        %v1555 = vsub.f32 %v430, %v1554
        %1556 = vmatpush1.msra.mxu0 %v1555
        %1557 = vmatprep.subr.mxu0 0.0
        %v1558 = vand.u32 %v429, 4294901760
        %v1559 = vsub.f32 %v429, %v1558
        %1560 = vmatpush1.msra.mxu0 %v1559
        %1561 = vmatprep.subr.mxu0 0.0
        %1562 = vmatpush2.msra.mxu0 0.0
        %1563 = vmatprep.subr.mxu0 0.0
        %1564 = vmatpush2.msra.mxu0 0.0
        %1565 = vmatprep.subr.mxu0 0.0
        %1566 = vmatpush2.msra.mxu0 0.0
        %1567 = vmatprep.subr.mxu0 0.0
        %1568 = vmatpush2.msra.mxu0 0.0
        %1569 = vmatprep.subr.mxu0 0.0
        %1570 = vmatpush2.msra.mxu0 0.0
        %1571 = vmatprep.subr.mxu0 0.0
        %1572 = vmatpush2.msra.mxu0 0.0
        %1573 = vmatprep.subr.mxu0 0.0
        %1574 = vmatpush2.msra.mxu0 0.0
        %1575 = vmatprep.subr.mxu0 0.0
        %1576 = vmatpush2.msra.mxu0 0.0
        %1577 = vmatprep.subr.mxu0 0.0
        %1578 = vmatpush2.msra.mxu0 0.0
        %1579 = vmatprep.subr.mxu0 0.0
        %1580 = vmatpush2.msra.mxu0 0.0
        %1581 = vmatprep.subr.mxu0 0.0
        %1582 = vmatpush2.msra.mxu0 0.0
        %1583 = vmatprep.subr.mxu0 0.0
        %1584 = vmatpush2.msra.mxu0 0.0
        %1585 = vmatprep.subr.mxu0 0.0
        %1586 = vmatpush2.msra.mxu0 0.0
        %1587 = vmatprep.subr.mxu0 0.0
        %1588 = vmatpush2.msra.mxu0 0.0
        %1589 = vmatprep.subr.mxu0 0.0
        %1590 = vmatpush2.msra.mxu0 0.0
        %1591 = vmatprep.subr.mxu0 0.0
        %1592 = vmatpush2.msra.mxu0 0.0
        %1593 = vmatprep.mubr.f32.mxu0 0.0
        %v1594 = vand.u32 %v1052, 4294901760
        %v1595 = vsub.f32 %v1052, %v1594
        %1596 = vmatmul.mubr.f32.gmra.mxu0 %v1595
        %v1597 = vpop.f32.mrf.mxu0
        %v1598 = vadd.f32 %v1426, %v1597
        %v1599 = vpop.f32.mrf.mxu0
        %1600 = vmatprep.mubr.f32.mxu0 0.0
        %v1601 = vand.u32 %v1055, 4294901760
        %v1602 = vsub.f32 %v1055, %v1601
        %1603 = vmatmul.mubr.f32.gmra.mxu0 %v1602
        %v1604 = vpop.f32.mrf.mxu0
        %v1605 = vadd.f32 %v1432, %v1604
        %v1606 = vpop.f32.mrf.mxu0
        %1607 = vmatprep.mubr.f32.mxu0 0.0
        %v1608 = vand.u32 %v1058, 4294901760
        %v1609 = vsub.f32 %v1058, %v1608
        %1610 = vmatmul.mubr.f32.gmra.mxu0 %v1609
        %v1611 = vpop.f32.mrf.mxu0
        %v1612 = vadd.f32 %v1438, %v1611
        %v1613 = vpop.f32.mrf.mxu0
        %1614 = vmatprep.mubr.f32.mxu0 0.0
        %v1615 = vand.u32 %v1061, 4294901760
        %v1616 = vsub.f32 %v1061, %v1615
        %1617 = vmatmul.mubr.f32.gmra.mxu0 %v1616
        %v1618 = vpop.f32.mrf.mxu0
        %v1619 = vadd.f32 %v1444, %v1618
        %v1620 = vpop.f32.mrf.mxu0
        %1621 = vmatprep.mubr.f32.mxu0 0.0
        %v1622 = vand.u32 %v1064, 4294901760
        %v1623 = vsub.f32 %v1064, %v1622
        %1624 = vmatmul.mubr.f32.gmra.mxu0 %v1623
        %v1625 = vpop.f32.mrf.mxu0
        %v1626 = vadd.f32 %v1450, %v1625
        %v1627 = vpop.f32.mrf.mxu0
        %1628 = vmatprep.mubr.f32.mxu0 0.0
        %v1629 = vand.u32 %v1067, 4294901760
        %v1630 = vsub.f32 %v1067, %v1629
        %1631 = vmatmul.mubr.f32.gmra.mxu0 %v1630
        %v1632 = vpop.f32.mrf.mxu0
        %v1633 = vadd.f32 %v1456, %v1632
        %v1634 = vpop.f32.mrf.mxu0
        %1635 = vmatprep.mubr.f32.mxu0 0.0
        %v1636 = vand.u32 %v1070, 4294901760
        %v1637 = vsub.f32 %v1070, %v1636
        %1638 = vmatmul.mubr.f32.gmra.mxu0 %v1637
        %v1639 = vpop.f32.mrf.mxu0
        %v1640 = vadd.f32 %v1462, %v1639
        %v1641 = vpop.f32.mrf.mxu0
        %1642 = vmatprep.mubr.f32.mxu0 0.0
        %v1643 = vand.u32 %v1073, 4294901760
        %v1644 = vsub.f32 %v1073, %v1643
        %1645 = vmatmul.mubr.f32.gmra.mxu0 %v1644
        %v1646 = vpop.f32.mrf.mxu0
        %v1647 = vadd.f32 %v1468, %v1646
        %v1648 = vpop.f32.mrf.mxu0
        %1649 = vmatprep.mubr.f32.mxu0 0.0
        %v1650 = vand.u32 %v1076, 4294901760
        %v1651 = vsub.f32 %v1076, %v1650
        %1652 = vmatmul.mubr.f32.gmra.mxu0 %v1651
        %v1653 = vpop.f32.mrf.mxu0
        %v1654 = vadd.f32 %v1474, %v1653
        %v1655 = vpop.f32.mrf.mxu0
        %1656 = vmatprep.mubr.f32.mxu0 0.0
        %v1657 = vand.u32 %v1079, 4294901760
        %v1658 = vsub.f32 %v1079, %v1657
        %1659 = vmatmul.mubr.f32.gmra.mxu0 %v1658
        %v1660 = vpop.f32.mrf.mxu0
        %v1661 = vadd.f32 %v1480, %v1660
        %v1662 = vpop.f32.mrf.mxu0
        %1663 = vmatprep.mubr.f32.mxu0 0.0
        %v1664 = vand.u32 %v1082, 4294901760
        %v1665 = vsub.f32 %v1082, %v1664
        %1666 = vmatmul.mubr.f32.gmra.mxu0 %v1665
        %v1667 = vpop.f32.mrf.mxu0
        %v1668 = vadd.f32 %v1486, %v1667
        %v1669 = vpop.f32.mrf.mxu0
        %1670 = vmatprep.mubr.f32.mxu0 0.0
        %v1671 = vand.u32 %v1085, 4294901760
        %v1672 = vsub.f32 %v1085, %v1671
        %1673 = vmatmul.mubr.f32.gmra.mxu0 %v1672
        %v1674 = vpop.f32.mrf.mxu0
        %v1675 = vadd.f32 %v1492, %v1674
        %v1676 = vpop.f32.mrf.mxu0
        %1677 = vmatprep.mubr.f32.mxu0 0.0
        %v1678 = vand.u32 %v1088, 4294901760
        %v1679 = vsub.f32 %v1088, %v1678
        %1680 = vmatmul.mubr.f32.gmra.mxu0 %v1679
        %v1681 = vpop.f32.mrf.mxu0
        %v1682 = vadd.f32 %v1498, %v1681
        %v1683 = vpop.f32.mrf.mxu0
        %1684 = vmatprep.mubr.f32.mxu0 0.0
        %v1685 = vand.u32 %v1091, 4294901760
        %v1686 = vsub.f32 %v1091, %v1685
        %1687 = vmatmul.mubr.f32.gmra.mxu0 %v1686
        %v1688 = vpop.f32.mrf.mxu0
        %v1689 = vadd.f32 %v1504, %v1688
        %v1690 = vpop.f32.mrf.mxu0
        %1691 = vmatprep.mubr.f32.mxu0 0.0
        %v1692 = vand.u32 %v1094, 4294901760
        %v1693 = vsub.f32 %v1094, %v1692
        %1694 = vmatmul.mubr.f32.gmra.mxu0 %v1693
        %v1695 = vpop.f32.mrf.mxu0
        %v1696 = vadd.f32 %v1510, %v1695
        %v1697 = vpop.f32.mrf.mxu0
        %1698 = vmatprep.mubr.f32.mxu0 0.0
        %v1699 = vand.u32 %v1097, 4294901760
        %v1700 = vsub.f32 %v1097, %v1699
        %1701 = vmatmul.mubr.f32.gmra.mxu0 %v1700
        %v1702 = vpop.f32.mrf.mxu0
        %v1703 = vadd.f32 %v1516, %v1702
        %v1704 = vpop.f32.mrf.mxu0
        %1705 = vdwg.mxu0
        %1706 = vmatprep.subr.mxu0 0.0
        %1707 = vmatpush1.msra.mxu0 0.0
        %1708 = vmatprep.subr.mxu0 0.0
        %1709 = vmatpush1.msra.mxu0 0.0
        %1710 = vmatprep.subr.mxu0 0.0
        %1711 = vmatpush1.msra.mxu0 0.0
        %1712 = vmatprep.subr.mxu0 0.0
        %1713 = vmatpush1.msra.mxu0 0.0
        %1714 = vmatprep.subr.mxu0 0.0
        %1715 = vmatpush1.msra.mxu0 0.0
        %1716 = vmatprep.subr.mxu0 0.0
        %1717 = vmatpush1.msra.mxu0 0.0
        %1718 = vmatprep.subr.mxu0 0.0
        %1719 = vmatpush1.msra.mxu0 0.0
        %1720 = vmatprep.subr.mxu0 0.0
        %1721 = vmatpush1.msra.mxu0 0.0
        %1722 = vmatprep.subr.mxu0 0.0
        %1723 = vmatpush1.msra.mxu0 0.0
        %1724 = vmatprep.subr.mxu0 0.0
        %1725 = vmatpush1.msra.mxu0 0.0
        %1726 = vmatprep.subr.mxu0 0.0
        %1727 = vmatpush1.msra.mxu0 0.0
        %1728 = vmatprep.subr.mxu0 0.0
        %v1729 = vand.u32 %v1101, 4294901760
        %1730 = vmatpush1.msra.mxu0 %v1729
        %1731 = vmatprep.subr.mxu0 0.0
        %v1732 = vand.u32 %v432, 4294901760
        %1733 = vmatpush1.msra.mxu0 %v1732
        %1734 = vmatprep.subr.mxu0 0.0
        %v1735 = vand.u32 %v431, 4294901760
        %1736 = vmatpush1.msra.mxu0 %v1735
        %1737 = vmatprep.subr.mxu0 0.0
        %v1738 = vand.u32 %v430, 4294901760
        %1739 = vmatpush1.msra.mxu0 %v1738
        %1740 = vmatprep.subr.mxu0 0.0
        %v1741 = vand.u32 %v429, 4294901760
        %1742 = vmatpush1.msra.mxu0 %v1741
        %1743 = vmatprep.subr.mxu0 0.0
        %1744 = vmatpush2.msra.mxu0 0.0
        %1745 = vmatprep.subr.mxu0 0.0
        %1746 = vmatpush2.msra.mxu0 0.0
        %1747 = vmatprep.subr.mxu0 0.0
        %1748 = vmatpush2.msra.mxu0 0.0
        %1749 = vmatprep.subr.mxu0 0.0
        %1750 = vmatpush2.msra.mxu0 0.0
        %1751 = vmatprep.subr.mxu0 0.0
        %1752 = vmatpush2.msra.mxu0 0.0
        %1753 = vmatprep.subr.mxu0 0.0
        %1754 = vmatpush2.msra.mxu0 0.0
        %1755 = vmatprep.subr.mxu0 0.0
        %1756 = vmatpush2.msra.mxu0 0.0
        %1757 = vmatprep.subr.mxu0 0.0
        %1758 = vmatpush2.msra.mxu0 0.0
        %1759 = vmatprep.subr.mxu0 0.0
        %1760 = vmatpush2.msra.mxu0 0.0
        %1761 = vmatprep.subr.mxu0 0.0
        %1762 = vmatpush2.msra.mxu0 0.0
        %1763 = vmatprep.subr.mxu0 0.0
        %1764 = vmatpush2.msra.mxu0 0.0
        %1765 = vmatprep.subr.mxu0 0.0
        %1766 = vmatpush2.msra.mxu0 0.0
        %1767 = vmatprep.subr.mxu0 0.0
        %1768 = vmatpush2.msra.mxu0 0.0
        %1769 = vmatprep.subr.mxu0 0.0
        %1770 = vmatpush2.msra.mxu0 0.0
        %1771 = vmatprep.subr.mxu0 0.0
        %1772 = vmatpush2.msra.mxu0 0.0
        %1773 = vmatprep.subr.mxu0 0.0
        %1774 = vmatpush2.msra.mxu0 0.0
        %1775 = vmatprep.mubr.f32.mxu0 0.0
        %v1776 = vand.u32 %v1052, 4294901760
        %v1777 = vsub.f32 %v1052, %v1776
        %v1778 = vand.u32 %v1777, 4294901760
        %1779 = vmatmul.mubr.f32.gmra.mxu0 %v1778
        %v1780 = vpop.f32.mrf.mxu0
        %v1781 = vadd.f32 %v1598, %v1780
        %v1782 = vpop.f32.mrf.mxu0
        %1783 = vmatprep.mubr.f32.mxu0 0.0
        %v1784 = vand.u32 %v1055, 4294901760
        %v1785 = vsub.f32 %v1055, %v1784
        %v1786 = vand.u32 %v1785, 4294901760
        %1787 = vmatmul.mubr.f32.gmra.mxu0 %v1786
        %v1788 = vpop.f32.mrf.mxu0
        %v1789 = vadd.f32 %v1605, %v1788
        %v1790 = vpop.f32.mrf.mxu0
        %1791 = vmatprep.mubr.f32.mxu0 0.0
        %v1792 = vand.u32 %v1058, 4294901760
        %v1793 = vsub.f32 %v1058, %v1792
        %v1794 = vand.u32 %v1793, 4294901760
        %1795 = vmatmul.mubr.f32.gmra.mxu0 %v1794
        %v1796 = vpop.f32.mrf.mxu0
        %v1797 = vadd.f32 %v1612, %v1796
        %v1798 = vpop.f32.mrf.mxu0
        %1799 = vmatprep.mubr.f32.mxu0 0.0
        %v1800 = vand.u32 %v1061, 4294901760
        %v1801 = vsub.f32 %v1061, %v1800
        %v1802 = vand.u32 %v1801, 4294901760
        %1803 = vmatmul.mubr.f32.gmra.mxu0 %v1802
        %v1804 = vpop.f32.mrf.mxu0
        %v1805 = vadd.f32 %v1619, %v1804
        %v1806 = vpop.f32.mrf.mxu0
        %1807 = vmatprep.mubr.f32.mxu0 0.0
        %v1808 = vand.u32 %v1064, 4294901760
        %v1809 = vsub.f32 %v1064, %v1808
        %v1810 = vand.u32 %v1809, 4294901760
        %1811 = vmatmul.mubr.f32.gmra.mxu0 %v1810
        %v1812 = vpop.f32.mrf.mxu0
        %v1813 = vadd.f32 %v1626, %v1812
        %v1814 = vpop.f32.mrf.mxu0
        %1815 = vmatprep.mubr.f32.mxu0 0.0
        %v1816 = vand.u32 %v1067, 4294901760
        %v1817 = vsub.f32 %v1067, %v1816
        %v1818 = vand.u32 %v1817, 4294901760
        %1819 = vmatmul.mubr.f32.gmra.mxu0 %v1818
        %v1820 = vpop.f32.mrf.mxu0
        %v1821 = vadd.f32 %v1633, %v1820
        %v1822 = vpop.f32.mrf.mxu0
        %1823 = vmatprep.mubr.f32.mxu0 0.0
        %v1824 = vand.u32 %v1070, 4294901760
        %v1825 = vsub.f32 %v1070, %v1824
        %v1826 = vand.u32 %v1825, 4294901760
        %1827 = vmatmul.mubr.f32.gmra.mxu0 %v1826
        %v1828 = vpop.f32.mrf.mxu0
        %v1829 = vadd.f32 %v1640, %v1828
        %v1830 = vpop.f32.mrf.mxu0
        %1831 = vmatprep.mubr.f32.mxu0 0.0
        %v1832 = vand.u32 %v1073, 4294901760
        %v1833 = vsub.f32 %v1073, %v1832
        %v1834 = vand.u32 %v1833, 4294901760
        %1835 = vmatmul.mubr.f32.gmra.mxu0 %v1834
        %v1836 = vpop.f32.mrf.mxu0
        %v1837 = vadd.f32 %v1647, %v1836
        %v1838 = vpop.f32.mrf.mxu0
        %1839 = vmatprep.mubr.f32.mxu0 0.0
        %v1840 = vand.u32 %v1076, 4294901760
        %v1841 = vsub.f32 %v1076, %v1840
        %v1842 = vand.u32 %v1841, 4294901760
        %1843 = vmatmul.mubr.f32.gmra.mxu0 %v1842
        %v1844 = vpop.f32.mrf.mxu0
        %v1845 = vadd.f32 %v1654, %v1844
        %v1846 = vpop.f32.mrf.mxu0
        %1847 = vmatprep.mubr.f32.mxu0 0.0
        %v1848 = vand.u32 %v1079, 4294901760
        %v1849 = vsub.f32 %v1079, %v1848
        %v1850 = vand.u32 %v1849, 4294901760
        %1851 = vmatmul.mubr.f32.gmra.mxu0 %v1850
        %v1852 = vpop.f32.mrf.mxu0
        %v1853 = vadd.f32 %v1661, %v1852
        %v1854 = vpop.f32.mrf.mxu0
        %1855 = vmatprep.mubr.f32.mxu0 0.0
        %v1856 = vand.u32 %v1082, 4294901760
        %v1857 = vsub.f32 %v1082, %v1856
        %v1858 = vand.u32 %v1857, 4294901760
        %1859 = vmatmul.mubr.f32.gmra.mxu0 %v1858
        %v1860 = vpop.f32.mrf.mxu0
        %v1861 = vadd.f32 %v1668, %v1860
        %v1862 = vpop.f32.mrf.mxu0
        %1863 = vmatprep.mubr.f32.mxu0 0.0
        %v1864 = vand.u32 %v1085, 4294901760
        %v1865 = vsub.f32 %v1085, %v1864
        %v1866 = vand.u32 %v1865, 4294901760
        %1867 = vmatmul.mubr.f32.gmra.mxu0 %v1866
        %v1868 = vpop.f32.mrf.mxu0
        %v1869 = vadd.f32 %v1675, %v1868
        %v1870 = vpop.f32.mrf.mxu0
        %1871 = vmatprep.mubr.f32.mxu0 0.0
        %v1872 = vand.u32 %v1088, 4294901760
        %v1873 = vsub.f32 %v1088, %v1872
        %v1874 = vand.u32 %v1873, 4294901760
        %1875 = vmatmul.mubr.f32.gmra.mxu0 %v1874
        %v1876 = vpop.f32.mrf.mxu0
        %v1877 = vadd.f32 %v1682, %v1876
        %v1878 = vpop.f32.mrf.mxu0
        %1879 = vmatprep.mubr.f32.mxu0 0.0
        %v1880 = vand.u32 %v1091, 4294901760
        %v1881 = vsub.f32 %v1091, %v1880
        %v1882 = vand.u32 %v1881, 4294901760
        %1883 = vmatmul.mubr.f32.gmra.mxu0 %v1882
        %v1884 = vpop.f32.mrf.mxu0
        %v1885 = vadd.f32 %v1689, %v1884
        %v1886 = vpop.f32.mrf.mxu0
        %1887 = vmatprep.mubr.f32.mxu0 0.0
        %v1888 = vand.u32 %v1094, 4294901760
        %v1889 = vsub.f32 %v1094, %v1888
        %v1890 = vand.u32 %v1889, 4294901760
        %1891 = vmatmul.mubr.f32.gmra.mxu0 %v1890
        %v1892 = vpop.f32.mrf.mxu0
        %v1893 = vadd.f32 %v1696, %v1892
        %v1894 = vpop.f32.mrf.mxu0
        %1895 = vmatprep.mubr.f32.mxu0 0.0
        %v1896 = vand.u32 %v1097, 4294901760
        %v1897 = vsub.f32 %v1097, %v1896
        %v1898 = vand.u32 %v1897, 4294901760
        %1899 = vmatmul.mubr.f32.gmra.mxu0 %v1898
        %v1900 = vpop.f32.mrf.mxu0
        %v1901 = vadd.f32 %v1703, %v1900
        %v1902 = vpop.f32.mrf.mxu0
        %1903 = vdwg.mxu0
        %1904 = vmatprep.subr.mxu0 0.0
        %1905 = vmatpush1.msra.mxu0 0.0
        %1906 = vmatprep.subr.mxu0 0.0
        %1907 = vmatpush1.msra.mxu0 0.0
        %1908 = vmatprep.subr.mxu0 0.0
        %1909 = vmatpush1.msra.mxu0 0.0
        %1910 = vmatprep.subr.mxu0 0.0
        %1911 = vmatpush1.msra.mxu0 0.0
        %1912 = vmatprep.subr.mxu0 0.0
        %1913 = vmatpush1.msra.mxu0 0.0
        %1914 = vmatprep.subr.mxu0 0.0
        %1915 = vmatpush1.msra.mxu0 0.0
        %1916 = vmatprep.subr.mxu0 0.0
        %1917 = vmatpush1.msra.mxu0 0.0
        %1918 = vmatprep.subr.mxu0 0.0
        %1919 = vmatpush1.msra.mxu0 0.0
        %1920 = vmatprep.subr.mxu0 0.0
        %1921 = vmatpush1.msra.mxu0 0.0
        %1922 = vmatprep.subr.mxu0 0.0
        %1923 = vmatpush1.msra.mxu0 0.0
        %1924 = vmatprep.subr.mxu0 0.0
        %1925 = vmatpush1.msra.mxu0 0.0
        %1926 = vmatprep.subr.mxu0 0.0
        %v1927 = vand.u32 %v1101, 4294901760
        %v1928 = vsub.f32 %v1101, %v1927
        %v1929 = vand.u32 %v1928, 4294901760
        %1930 = vmatpush1.msra.mxu0 %v1929
        %1931 = vmatprep.subr.mxu0 0.0
        %v1932 = vand.u32 %v432, 4294901760
        %v1933 = vsub.f32 %v432, %v1932
        %v1934 = vand.u32 %v1933, 4294901760
        %1935 = vmatpush1.msra.mxu0 %v1934
        %1936 = vmatprep.subr.mxu0 0.0
        %v1937 = vand.u32 %v431, 4294901760
        %v1938 = vsub.f32 %v431, %v1937
        %v1939 = vand.u32 %v1938, 4294901760
        %1940 = vmatpush1.msra.mxu0 %v1939
        %1941 = vmatprep.subr.mxu0 0.0
        %v1942 = vand.u32 %v430, 4294901760
        %v1943 = vsub.f32 %v430, %v1942
        %v1944 = vand.u32 %v1943, 4294901760
        %1945 = vmatpush1.msra.mxu0 %v1944
        %1946 = vmatprep.subr.mxu0 0.0
        %v1947 = vand.u32 %v429, 4294901760
        %v1948 = vsub.f32 %v429, %v1947
        %v1949 = vand.u32 %v1948, 4294901760
        %1950 = vmatpush1.msra.mxu0 %v1949
        %1951 = vmatprep.subr.mxu0 0.0
        %1952 = vmatpush2.msra.mxu0 0.0
        %1953 = vmatprep.subr.mxu0 0.0
        %1954 = vmatpush2.msra.mxu0 0.0
        %1955 = vmatprep.subr.mxu0 0.0
        %1956 = vmatpush2.msra.mxu0 0.0
        %1957 = vmatprep.subr.mxu0 0.0
        %1958 = vmatpush2.msra.mxu0 0.0
        %1959 = vmatprep.subr.mxu0 0.0
        %1960 = vmatpush2.msra.mxu0 0.0
        %1961 = vmatprep.subr.mxu0 0.0
        %1962 = vmatpush2.msra.mxu0 0.0
        %1963 = vmatprep.subr.mxu0 0.0
        %1964 = vmatpush2.msra.mxu0 0.0
        %1965 = vmatprep.subr.mxu0 0.0
        %1966 = vmatpush2.msra.mxu0 0.0
        %1967 = vmatprep.subr.mxu0 0.0
        %1968 = vmatpush2.msra.mxu0 0.0
        %1969 = vmatprep.subr.mxu0 0.0
        %1970 = vmatpush2.msra.mxu0 0.0
        %1971 = vmatprep.subr.mxu0 0.0
        %1972 = vmatpush2.msra.mxu0 0.0
        %1973 = vmatprep.subr.mxu0 0.0
        %1974 = vmatpush2.msra.mxu0 0.0
        %1975 = vmatprep.subr.mxu0 0.0
        %1976 = vmatpush2.msra.mxu0 0.0
        %1977 = vmatprep.subr.mxu0 0.0
        %1978 = vmatpush2.msra.mxu0 0.0
        %1979 = vmatprep.subr.mxu0 0.0
        %1980 = vmatpush2.msra.mxu0 0.0
        %1981 = vmatprep.subr.mxu0 0.0
        %1982 = vmatpush2.msra.mxu0 0.0
        %1983 = vmatprep.mubr.f32.mxu0 0.0
        %v1984 = vand.u32 %v1052, 4294901760
        %1985 = vmatmul.mubr.f32.gmra.mxu0 %v1984
        %v1986 = vpop.f32.mrf.mxu0
        %v1987 = vadd.f32 %v1781, %v1986
        %v1988 = vpop.f32.mrf.mxu0
        %1989 = vmatprep.mubr.f32.mxu0 0.0
        %v1990 = vand.u32 %v1055, 4294901760
        %1991 = vmatmul.mubr.f32.gmra.mxu0 %v1990
        %v1992 = vpop.f32.mrf.mxu0
        %v1993 = vadd.f32 %v1789, %v1992
        %v1994 = vpop.f32.mrf.mxu0
        %1995 = vmatprep.mubr.f32.mxu0 0.0
        %v1996 = vand.u32 %v1058, 4294901760
        %1997 = vmatmul.mubr.f32.gmra.mxu0 %v1996
        %v1998 = vpop.f32.mrf.mxu0
        %v1999 = vadd.f32 %v1797, %v1998
        %v2000 = vpop.f32.mrf.mxu0
        %2001 = vmatprep.mubr.f32.mxu0 0.0
        %v2002 = vand.u32 %v1061, 4294901760
        %2003 = vmatmul.mubr.f32.gmra.mxu0 %v2002
        %v2004 = vpop.f32.mrf.mxu0
        %v2005 = vadd.f32 %v1805, %v2004
        %v2006 = vpop.f32.mrf.mxu0
        %2007 = vmatprep.mubr.f32.mxu0 0.0
        %v2008 = vand.u32 %v1064, 4294901760
        %2009 = vmatmul.mubr.f32.gmra.mxu0 %v2008
        %v2010 = vpop.f32.mrf.mxu0
        %v2011 = vadd.f32 %v1813, %v2010
        %v2012 = vpop.f32.mrf.mxu0
        %2013 = vmatprep.mubr.f32.mxu0 0.0
        %v2014 = vand.u32 %v1067, 4294901760
        %2015 = vmatmul.mubr.f32.gmra.mxu0 %v2014
        %v2016 = vpop.f32.mrf.mxu0
        %v2017 = vadd.f32 %v1821, %v2016
        %v2018 = vpop.f32.mrf.mxu0
        %2019 = vmatprep.mubr.f32.mxu0 0.0
        %v2020 = vand.u32 %v1070, 4294901760
        %2021 = vmatmul.mubr.f32.gmra.mxu0 %v2020
        %v2022 = vpop.f32.mrf.mxu0
        %v2023 = vadd.f32 %v1829, %v2022
        %v2024 = vpop.f32.mrf.mxu0
        %2025 = vmatprep.mubr.f32.mxu0 0.0
        %v2026 = vand.u32 %v1073, 4294901760
        %2027 = vmatmul.mubr.f32.gmra.mxu0 %v2026
        %v2028 = vpop.f32.mrf.mxu0
        %v2029 = vadd.f32 %v1837, %v2028
        %v2030 = vpop.f32.mrf.mxu0
        %2031 = vmatprep.mubr.f32.mxu0 0.0
        %v2032 = vand.u32 %v1076, 4294901760
        %2033 = vmatmul.mubr.f32.gmra.mxu0 %v2032
        %v2034 = vpop.f32.mrf.mxu0
        %v2035 = vadd.f32 %v1845, %v2034
        %v2036 = vpop.f32.mrf.mxu0
        %2037 = vmatprep.mubr.f32.mxu0 0.0
        %v2038 = vand.u32 %v1079, 4294901760
        %2039 = vmatmul.mubr.f32.gmra.mxu0 %v2038
        %v2040 = vpop.f32.mrf.mxu0
        %v2041 = vadd.f32 %v1853, %v2040
        %v2042 = vpop.f32.mrf.mxu0
        %2043 = vmatprep.mubr.f32.mxu0 0.0
        %v2044 = vand.u32 %v1082, 4294901760
        %2045 = vmatmul.mubr.f32.gmra.mxu0 %v2044
        %v2046 = vpop.f32.mrf.mxu0
        %v2047 = vadd.f32 %v1861, %v2046
        %v2048 = vpop.f32.mrf.mxu0
        %2049 = vmatprep.mubr.f32.mxu0 0.0
        %v2050 = vand.u32 %v1085, 4294901760
        %2051 = vmatmul.mubr.f32.gmra.mxu0 %v2050
        %v2052 = vpop.f32.mrf.mxu0
        %v2053 = vadd.f32 %v1869, %v2052
        %v2054 = vpop.f32.mrf.mxu0
        %2055 = vmatprep.mubr.f32.mxu0 0.0
        %v2056 = vand.u32 %v1088, 4294901760
        %2057 = vmatmul.mubr.f32.gmra.mxu0 %v2056
        %v2058 = vpop.f32.mrf.mxu0
        %v2059 = vadd.f32 %v1877, %v2058
        %v2060 = vpop.f32.mrf.mxu0
        %2061 = vmatprep.mubr.f32.mxu0 0.0
        %v2062 = vand.u32 %v1091, 4294901760
        %2063 = vmatmul.mubr.f32.gmra.mxu0 %v2062
        %v2064 = vpop.f32.mrf.mxu0
        %v2065 = vadd.f32 %v1885, %v2064
        %v2066 = vpop.f32.mrf.mxu0
        %2067 = vmatprep.mubr.f32.mxu0 0.0
        %v2068 = vand.u32 %v1094, 4294901760
        %2069 = vmatmul.mubr.f32.gmra.mxu0 %v2068
        %v2070 = vpop.f32.mrf.mxu0
        %v2071 = vadd.f32 %v1893, %v2070
        %v2072 = vpop.f32.mrf.mxu0
        %2073 = vmatprep.mubr.f32.mxu0 0.0
        %v2074 = vand.u32 %v1097, 4294901760
        %2075 = vmatmul.mubr.f32.gmra.mxu0 %v2074
        %v2076 = vpop.f32.mrf.mxu0
        %v2077 = vadd.f32 %v1901, %v2076
        %v2078 = vpop.f32.mrf.mxu0
        %2079 = vdwg.mxu0
        %2080 = vmatprep.subr.mxu0 0.0
        %2081 = vmatpush1.msra.mxu0 0.0
        %2082 = vmatprep.subr.mxu0 0.0
        %2083 = vmatpush1.msra.mxu0 0.0
        %2084 = vmatprep.subr.mxu0 0.0
        %2085 = vmatpush1.msra.mxu0 0.0
        %2086 = vmatprep.subr.mxu0 0.0
        %2087 = vmatpush1.msra.mxu0 0.0
        %2088 = vmatprep.subr.mxu0 0.0
        %2089 = vmatpush1.msra.mxu0 0.0
        %2090 = vmatprep.subr.mxu0 0.0
        %2091 = vmatpush1.msra.mxu0 0.0
        %2092 = vmatprep.subr.mxu0 0.0
        %2093 = vmatpush1.msra.mxu0 0.0
        %2094 = vmatprep.subr.mxu0 0.0
        %2095 = vmatpush1.msra.mxu0 0.0
        %2096 = vmatprep.subr.mxu0 0.0
        %2097 = vmatpush1.msra.mxu0 0.0
        %2098 = vmatprep.subr.mxu0 0.0
        %2099 = vmatpush1.msra.mxu0 0.0
        %2100 = vmatprep.subr.mxu0 0.0
        %2101 = vmatpush1.msra.mxu0 0.0
        %2102 = vmatprep.subr.mxu0 0.0
        %v2103 = vand.u32 %v1101, 4294901760
        %2104 = vmatpush1.msra.mxu0 %v2103
        %2105 = vmatprep.subr.mxu0 0.0
        %v2106 = vand.u32 %v432, 4294901760
        %2107 = vmatpush1.msra.mxu0 %v2106
        %2108 = vmatprep.subr.mxu0 0.0
        %v2109 = vand.u32 %v431, 4294901760
        %2110 = vmatpush1.msra.mxu0 %v2109
        %2111 = vmatprep.subr.mxu0 0.0
        %v2112 = vand.u32 %v430, 4294901760
        %2113 = vmatpush1.msra.mxu0 %v2112
        %2114 = vmatprep.subr.mxu0 0.0
        %v2115 = vand.u32 %v429, 4294901760
        %2116 = vmatpush1.msra.mxu0 %v2115
        %2117 = vmatprep.subr.mxu0 0.0
        %2118 = vmatpush2.msra.mxu0 0.0
        %2119 = vmatprep.subr.mxu0 0.0
        %2120 = vmatpush2.msra.mxu0 0.0
        %2121 = vmatprep.subr.mxu0 0.0
        %2122 = vmatpush2.msra.mxu0 0.0
        %2123 = vmatprep.subr.mxu0 0.0
        %2124 = vmatpush2.msra.mxu0 0.0
        %2125 = vmatprep.subr.mxu0 0.0
        %2126 = vmatpush2.msra.mxu0 0.0
        %2127 = vmatprep.subr.mxu0 0.0
        %2128 = vmatpush2.msra.mxu0 0.0
        %2129 = vmatprep.subr.mxu0 0.0
        %2130 = vmatpush2.msra.mxu0 0.0
        %2131 = vmatprep.subr.mxu0 0.0
        %2132 = vmatpush2.msra.mxu0 0.0
        %2133 = vmatprep.subr.mxu0 0.0
        %2134 = vmatpush2.msra.mxu0 0.0
        %2135 = vmatprep.subr.mxu0 0.0
        %2136 = vmatpush2.msra.mxu0 0.0
        %2137 = vmatprep.subr.mxu0 0.0
        %2138 = vmatpush2.msra.mxu0 0.0
        %2139 = vmatprep.subr.mxu0 0.0
        %2140 = vmatpush2.msra.mxu0 0.0
        %2141 = vmatprep.subr.mxu0 0.0
        %2142 = vmatpush2.msra.mxu0 0.0
        %2143 = vmatprep.subr.mxu0 0.0
        %2144 = vmatpush2.msra.mxu0 0.0
        %2145 = vmatprep.subr.mxu0 0.0
        %2146 = vmatpush2.msra.mxu0 0.0
        %2147 = vmatprep.subr.mxu0 0.0
        %2148 = vmatpush2.msra.mxu0 0.0
        %2149 = vmatprep.mubr.f32.mxu0 0.0
        %v2150 = vand.u32 %v1052, 4294901760
        %2151 = vmatmul.mubr.f32.gmra.mxu0 %v2150
        %v2152 = vpop.f32.mrf.mxu0
        %v2153 = vadd.f32 %v1987, %v2152
        %v2154 = vpop.f32.mrf.mxu0
        %2155 = vmatprep.mubr.f32.mxu0 0.0
        %v2156 = vand.u32 %v1055, 4294901760
        %2157 = vmatmul.mubr.f32.gmra.mxu0 %v2156
        %v2158 = vpop.f32.mrf.mxu0
        %v2159 = vadd.f32 %v1993, %v2158
        %v2160 = vpop.f32.mrf.mxu0
        %2161 = vmatprep.mubr.f32.mxu0 0.0
        %v2162 = vand.u32 %v1058, 4294901760
        %2163 = vmatmul.mubr.f32.gmra.mxu0 %v2162
        %v2164 = vpop.f32.mrf.mxu0
        %v2165 = vadd.f32 %v1999, %v2164
        %v2166 = vpop.f32.mrf.mxu0
        %2167 = vmatprep.mubr.f32.mxu0 0.0
        %v2168 = vand.u32 %v1061, 4294901760
        %2169 = vmatmul.mubr.f32.gmra.mxu0 %v2168
        %v2170 = vpop.f32.mrf.mxu0
        %v2171 = vadd.f32 %v2005, %v2170
        %v2172 = vpop.f32.mrf.mxu0
        %2173 = vmatprep.mubr.f32.mxu0 0.0
        %v2174 = vand.u32 %v1064, 4294901760
        %2175 = vmatmul.mubr.f32.gmra.mxu0 %v2174
        %v2176 = vpop.f32.mrf.mxu0
        %v2177 = vadd.f32 %v2011, %v2176
        %v2178 = vpop.f32.mrf.mxu0
        %2179 = vmatprep.mubr.f32.mxu0 0.0
        %v2180 = vand.u32 %v1067, 4294901760
        %2181 = vmatmul.mubr.f32.gmra.mxu0 %v2180
        %v2182 = vpop.f32.mrf.mxu0
        %v2183 = vadd.f32 %v2017, %v2182
        %v2184 = vpop.f32.mrf.mxu0
        %2185 = vmatprep.mubr.f32.mxu0 0.0
        %v2186 = vand.u32 %v1070, 4294901760
        %2187 = vmatmul.mubr.f32.gmra.mxu0 %v2186
        %v2188 = vpop.f32.mrf.mxu0
        %v2189 = vadd.f32 %v2023, %v2188
        %v2190 = vpop.f32.mrf.mxu0
        %2191 = vmatprep.mubr.f32.mxu0 0.0
        %v2192 = vand.u32 %v1073, 4294901760
        %2193 = vmatmul.mubr.f32.gmra.mxu0 %v2192
        %v2194 = vpop.f32.mrf.mxu0
        %v2195 = vadd.f32 %v2029, %v2194
        %v2196 = vpop.f32.mrf.mxu0
        %2197 = vmatprep.mubr.f32.mxu0 0.0
        %v2198 = vand.u32 %v1076, 4294901760
        %2199 = vmatmul.mubr.f32.gmra.mxu0 %v2198
        %v2200 = vpop.f32.mrf.mxu0
        %v2201 = vadd.f32 %v2035, %v2200
        %v2202 = vpop.f32.mrf.mxu0
        %2203 = vmatprep.mubr.f32.mxu0 0.0
        %v2204 = vand.u32 %v1079, 4294901760
        %2205 = vmatmul.mubr.f32.gmra.mxu0 %v2204
        %v2206 = vpop.f32.mrf.mxu0
        %v2207 = vadd.f32 %v2041, %v2206
        %v2208 = vpop.f32.mrf.mxu0
        %2209 = vmatprep.mubr.f32.mxu0 0.0
        %v2210 = vand.u32 %v1082, 4294901760
        %2211 = vmatmul.mubr.f32.gmra.mxu0 %v2210
        %v2212 = vpop.f32.mrf.mxu0
        %v2213 = vadd.f32 %v2047, %v2212
        %v2214 = vpop.f32.mrf.mxu0
        %2215 = vmatprep.mubr.f32.mxu0 0.0
        %v2216 = vand.u32 %v1085, 4294901760
        %2217 = vmatmul.mubr.f32.gmra.mxu0 %v2216
        %v2218 = vpop.f32.mrf.mxu0
        %v2219 = vadd.f32 %v2053, %v2218
        %v2220 = vpop.f32.mrf.mxu0
        %2221 = vmatprep.mubr.f32.mxu0 0.0
        %v2222 = vand.u32 %v1088, 4294901760
        %2223 = vmatmul.mubr.f32.gmra.mxu0 %v2222
        %v2224 = vpop.f32.mrf.mxu0
        %v2225 = vadd.f32 %v2059, %v2224
        %v2226 = vpop.f32.mrf.mxu0
        %2227 = vmatprep.mubr.f32.mxu0 0.0
        %v2228 = vand.u32 %v1091, 4294901760
        %2229 = vmatmul.mubr.f32.gmra.mxu0 %v2228
        %v2230 = vpop.f32.mrf.mxu0
        %v2231 = vadd.f32 %v2065, %v2230
        %v2232 = vpop.f32.mrf.mxu0
        %2233 = vmatprep.mubr.f32.mxu0 0.0
        %v2234 = vand.u32 %v1094, 4294901760
        %2235 = vmatmul.mubr.f32.gmra.mxu0 %v2234
        %v2236 = vpop.f32.mrf.mxu0
        %v2237 = vadd.f32 %v2071, %v2236
        %v2238 = vpop.f32.mrf.mxu0
        %2239 = vmatprep.mubr.f32.mxu0 0.0
        %v2240 = vand.u32 %v1097, 4294901760
        %2241 = vmatmul.mubr.f32.gmra.mxu0 %v2240
        %v2242 = vpop.f32.mrf.mxu0
        %v2243 = vadd.f32 %v2077, %v2242
        %v2244 = vpop.f32.mrf.mxu0
        %2245 = vdwg.mxu0
        %v2246 = vld [vmem:[#allocation2 + $0x2] sm:$0xff]
        %v2247 = vld [vmem:[#allocation2 + $0x12] sm:$0xff]
        %v2248 = vld [vmem:[#allocation2 + $0x22] sm:$0xff]
        %v2249 = vld [vmem:[#allocation2 + $0x32] sm:$0xff]
        %v2250 = vld [vmem:[#allocation2 + $0x42] sm:$0xff]
        %v2251 = vld [vmem:[#allocation2 + $0x52] sm:$0xff]
        %v2252 = vld [vmem:[#allocation2 + $0x62] sm:$0xff]
        %v2253 = vld [vmem:[#allocation2 + $0x72] sm:$0xff]
        %v2254 = vld [vmem:[#allocation2 + $0x82] sm:$0xff]
        %v2255 = vld [vmem:[#allocation2 + $0x92] sm:$0xff]
        %v2256 = vld [vmem:[#allocation2 + $0xa2] sm:$0xff]
        %v2257 = vld [vmem:[#allocation2 + $0xb2] sm:$0xff]
        %v2258 = vld [vmem:[#allocation2 + $0xc2] sm:$0xff]
        %v2259 = vld [vmem:[#allocation2 + $0xd2] sm:$0xff]
        %v2260 = vld [vmem:[#allocation2 + $0xe2] sm:$0xff]
        %v2261 = vld [vmem:[#allocation2 + $0xf2] sm:$0xff]
        %v2262 = vld [vmem:[%s399 + $0x2] sm:$0xff]
        %v2263 = vld [vmem:[%s399 + $0x12] sm:$0xff]
        %v2264 = vld [vmem:[%s399 + $0x22] sm:$0xff]
        %v2265 = vld [vmem:[%s399 + $0x32] sm:$0xff]
        %v2266 = vld [vmem:[%s399 + $0x42] sm:$0xff]
        %v2267 = vld [vmem:[%s399 + $0x52] sm:$0xff]
        %v2268 = vld [vmem:[%s399 + $0x62] sm:$0xff]
        %v2269 = vld [vmem:[%s399 + $0x72] sm:$0xff]
        %v2270 = vld [vmem:[%s399 + $0x82] sm:$0xff]
        %v2271 = vld [vmem:[%s399 + $0x92] sm:$0xff]
        %v2272 = vld [vmem:[%s399 + $0xa2] sm:$0xff]
        %v2273 = vld [vmem:[%s399 + $0xb2] sm:$0xff]
        %v2274 = vld [vmem:[%s399 + $0xc2] sm:$0xff]
        %v2275 = vld [vmem:[%s399 + $0xd2] sm:$0xff]
        %v2276 = vld [vmem:[%s399 + $0xe2] sm:$0xff]
        %v2277 = vld [vmem:[%s399 + $0xf2] sm:$0xff]
        %v2278 = vld [vmem:[%s498 + $0x2] sm:$0xff]
        %v2279 = vld [vmem:[%s498 + $0x12] sm:$0xff]
        %v2280 = vld [vmem:[%s498 + $0x22] sm:$0xff]
        %v2281 = vld [vmem:[%s498 + $0x32] sm:$0xff]
        %v2282 = vld [vmem:[%s498 + $0x42] sm:$0xff]
        %v2283 = vld [vmem:[%s498 + $0x52] sm:$0xff]
        %v2284 = vld [vmem:[%s498 + $0x62] sm:$0xff]
        %v2285 = vld [vmem:[%s498 + $0x72] sm:$0xff]
        %v2286 = vld [vmem:[%s498 + $0x82] sm:$0xff]
        %v2287 = vld [vmem:[%s498 + $0x92] sm:$0xff]
        %v2288 = vld [vmem:[%s498 + $0xa2] sm:$0xff]
        %v2289 = vld [vmem:[%s498 + $0xb2] sm:$0xff]
        %v2290 = vld [vmem:[%s498 + $0xc2] sm:$0xff]
        %v2291 = vld [vmem:[%s498 + $0xd2] sm:$0xff]
        %v2292 = vld [vmem:[%s498 + $0xe2] sm:$0xff]
        %v2293 = vld [vmem:[%s498 + $0xf2] sm:$0xff]
        %2310 = vrot.lane.b32.xlu0 %v2246, 8
        %v2311 = vpop.permute.xlu0 %2310
        %2312 = vrot.lane.b32.xlu0 %v2247, 8
        %v2313 = vpop.permute.xlu0 %2312
        %2314 = vrot.lane.b32.xlu0 %v2248, 8
        %v2315 = vpop.permute.xlu0 %2314
        %2316 = vrot.lane.b32.xlu0 %v2249, 8
        %v2317 = vpop.permute.xlu0 %2316
        %2318 = vrot.lane.b32.xlu0 %v2250, 8
        %v2319 = vpop.permute.xlu0 %2318
        %2320 = vrot.lane.b32.xlu0 %v2251, 8
        %v2321 = vpop.permute.xlu0 %2320
        %2322 = vrot.lane.b32.xlu0 %v2252, 8
        %v2323 = vpop.permute.xlu0 %2322
        %2324 = vrot.lane.b32.xlu0 %v2253, 8
        %v2325 = vpop.permute.xlu0 %2324
        %2326 = vrot.lane.b32.xlu0 %v2254, 8
        %v2327 = vpop.permute.xlu0 %2326
        %2328 = vrot.lane.b32.xlu0 %v2255, 8
        %v2329 = vpop.permute.xlu0 %2328
        %2330 = vrot.lane.b32.xlu0 %v2256, 8
        %v2331 = vpop.permute.xlu0 %2330
        %2332 = vrot.lane.b32.xlu0 %v2257, 8
        %v2333 = vpop.permute.xlu0 %2332
        %2334 = vrot.lane.b32.xlu0 %v2258, 8
        %v2335 = vpop.permute.xlu0 %2334
        %2336 = vrot.lane.b32.xlu0 %v2259, 8
        %v2337 = vpop.permute.xlu0 %2336
        %2338 = vrot.lane.b32.xlu0 %v2260, 8
        %v2339 = vpop.permute.xlu0 %2338
        %2340 = vrot.lane.b32.xlu0 %v2261, 8
        %v2341 = vpop.permute.xlu0 %2340
        %2358 = vrot.lane.b32.xlu0 %v482, 12
        %v2359 = vpop.permute.xlu0 %2358
        %2360 = vrot.lane.b32.xlu0 %v483, 12
        %v2361 = vpop.permute.xlu0 %2360
        %2362 = vrot.lane.b32.xlu0 %v484, 12
        %v2363 = vpop.permute.xlu0 %2362
        %2364 = vrot.lane.b32.xlu0 %v485, 12
        %v2365 = vpop.permute.xlu0 %2364
        %2366 = vrot.lane.b32.xlu0 %v486, 12
        %v2367 = vpop.permute.xlu0 %2366
        %2368 = vrot.lane.b32.xlu0 %v487, 12
        %v2369 = vpop.permute.xlu0 %2368
        %2370 = vrot.lane.b32.xlu0 %v488, 12
        %v2371 = vpop.permute.xlu0 %2370
        %2372 = vrot.lane.b32.xlu0 %v489, 12
        %v2373 = vpop.permute.xlu0 %2372
        %2374 = vrot.lane.b32.xlu0 %v490, 12
        %v2375 = vpop.permute.xlu0 %2374
        %2376 = vrot.lane.b32.xlu0 %v491, 12
        %v2377 = vpop.permute.xlu0 %2376
        %2378 = vrot.lane.b32.xlu0 %v492, 12
        %v2379 = vpop.permute.xlu0 %2378
        %2380 = vrot.lane.b32.xlu0 %v493, 12
        %v2381 = vpop.permute.xlu0 %2380
        %2382 = vrot.lane.b32.xlu0 %v494, 12
        %v2383 = vpop.permute.xlu0 %2382
        %2384 = vrot.lane.b32.xlu0 %v495, 12
        %v2385 = vpop.permute.xlu0 %2384
        %2386 = vrot.lane.b32.xlu0 %v496, 12
        %v2387 = vpop.permute.xlu0 %2386
        %2388 = vrot.lane.b32.xlu0 %v497, 12
        %v2389 = vpop.permute.xlu0 %2388
        %2422 = vrot.lane.b32.xlu0 %v2262, 20
        %v2423 = vpop.permute.xlu0 %2422
        %2424 = vrot.lane.b32.xlu0 %v2263, 20
        %v2425 = vpop.permute.xlu0 %2424
        %2426 = vrot.lane.b32.xlu0 %v2264, 20
        %v2427 = vpop.permute.xlu0 %2426
        %2428 = vrot.lane.b32.xlu0 %v2265, 20
        %v2429 = vpop.permute.xlu0 %2428
        %2430 = vrot.lane.b32.xlu0 %v2266, 20
        %v2431 = vpop.permute.xlu0 %2430
        %2432 = vrot.lane.b32.xlu0 %v2267, 20
        %v2433 = vpop.permute.xlu0 %2432
        %2434 = vrot.lane.b32.xlu0 %v2268, 20
        %v2435 = vpop.permute.xlu0 %2434
        %2436 = vrot.lane.b32.xlu0 %v2269, 20
        %v2437 = vpop.permute.xlu0 %2436
        %2438 = vrot.lane.b32.xlu0 %v2270, 20
        %v2439 = vpop.permute.xlu0 %2438
        %2440 = vrot.lane.b32.xlu0 %v2271, 20
        %v2441 = vpop.permute.xlu0 %2440
        %2442 = vrot.lane.b32.xlu0 %v2272, 20
        %v2443 = vpop.permute.xlu0 %2442
        %2444 = vrot.lane.b32.xlu0 %v2273, 20
        %v2445 = vpop.permute.xlu0 %2444
        %2446 = vrot.lane.b32.xlu0 %v2274, 20
        %v2447 = vpop.permute.xlu0 %2446
        %2448 = vrot.lane.b32.xlu0 %v2275, 20
        %v2449 = vpop.permute.xlu0 %2448
        %2450 = vrot.lane.b32.xlu0 %v2276, 20
        %v2451 = vpop.permute.xlu0 %2450
        %2452 = vrot.lane.b32.xlu0 %v2277, 20
        %v2453 = vpop.permute.xlu0 %2452
        %2470 = vrot.lane.b32.xlu0 %v515, 24
        %v2471 = vpop.permute.xlu0 %2470
        %2472 = vrot.lane.b32.xlu0 %v516, 24
        %v2473 = vpop.permute.xlu0 %2472
        %2474 = vrot.lane.b32.xlu0 %v517, 24
        %v2475 = vpop.permute.xlu0 %2474
        %2476 = vrot.lane.b32.xlu0 %v518, 24
        %v2477 = vpop.permute.xlu0 %2476
        %2478 = vrot.lane.b32.xlu0 %v519, 24
        %v2479 = vpop.permute.xlu0 %2478
        %2480 = vrot.lane.b32.xlu0 %v520, 24
        %v2481 = vpop.permute.xlu0 %2480
        %2482 = vrot.lane.b32.xlu0 %v521, 24
        %v2483 = vpop.permute.xlu0 %2482
        %2484 = vrot.lane.b32.xlu0 %v522, 24
        %v2485 = vpop.permute.xlu0 %2484
        %2486 = vrot.lane.b32.xlu0 %v523, 24
        %v2487 = vpop.permute.xlu0 %2486
        %2488 = vrot.lane.b32.xlu0 %v524, 24
        %v2489 = vpop.permute.xlu0 %2488
        %2490 = vrot.lane.b32.xlu0 %v525, 24
        %v2491 = vpop.permute.xlu0 %2490
        %2492 = vrot.lane.b32.xlu0 %v526, 24
        %v2493 = vpop.permute.xlu0 %2492
        %2494 = vrot.lane.b32.xlu0 %v527, 24
        %v2495 = vpop.permute.xlu0 %2494
        %2496 = vrot.lane.b32.xlu0 %v528, 24
        %v2497 = vpop.permute.xlu0 %2496
        %2498 = vrot.lane.b32.xlu0 %v529, 24
        %v2499 = vpop.permute.xlu0 %2498
        %2500 = vrot.lane.b32.xlu0 %v530, 24
        %v2501 = vpop.permute.xlu0 %2500
        %2534 = vrot.lane.b32.xlu0 %v2278, 32
        %v2535 = vpop.permute.xlu0 %2534
        %2536 = vrot.lane.b32.xlu0 %v2279, 32
        %v2537 = vpop.permute.xlu0 %2536
        %2538 = vrot.lane.b32.xlu0 %v2280, 32
        %v2539 = vpop.permute.xlu0 %2538
        %2540 = vrot.lane.b32.xlu0 %v2281, 32
        %v2541 = vpop.permute.xlu0 %2540
        %2542 = vrot.lane.b32.xlu0 %v2282, 32
        %v2543 = vpop.permute.xlu0 %2542
        %2544 = vrot.lane.b32.xlu0 %v2283, 32
        %v2545 = vpop.permute.xlu0 %2544
        %2546 = vrot.lane.b32.xlu0 %v2284, 32
        %v2547 = vpop.permute.xlu0 %2546
        %2548 = vrot.lane.b32.xlu0 %v2285, 32
        %v2549 = vpop.permute.xlu0 %2548
        %2550 = vrot.lane.b32.xlu0 %v2286, 32
        %v2551 = vpop.permute.xlu0 %2550
        %2552 = vrot.lane.b32.xlu0 %v2287, 32
        %v2553 = vpop.permute.xlu0 %2552
        %2554 = vrot.lane.b32.xlu0 %v2288, 32
        %v2555 = vpop.permute.xlu0 %2554
        %2556 = vrot.lane.b32.xlu0 %v2289, 32
        %v2557 = vpop.permute.xlu0 %2556
        %2558 = vrot.lane.b32.xlu0 %v2290, 32
        %v2559 = vpop.permute.xlu0 %2558
        %2560 = vrot.lane.b32.xlu0 %v2291, 32
        %v2561 = vpop.permute.xlu0 %2560
        %2562 = vrot.lane.b32.xlu0 %v2292, 32
        %v2563 = vpop.permute.xlu0 %2562
        %2564 = vrot.lane.b32.xlu0 %v2293, 32
        %v2565 = vpop.permute.xlu0 %2564
        %v2582 = vsel %vm345, %v450, %v2311
        %v2583 = vsel %vm345, %v451, %v2313
        %v2584 = vsel %vm345, %v452, %v2315
        %v2585 = vsel %vm345, %v453, %v2317
        %v2586 = vsel %vm345, %v454, %v2319
        %v2587 = vsel %vm345, %v455, %v2321
        %v2588 = vsel %vm345, %v456, %v2323
        %v2589 = vsel %vm345, %v457, %v2325
        %v2590 = vsel %vm345, %v458, %v2327
        %v2591 = vsel %vm345, %v459, %v2329
        %v2592 = vsel %vm345, %v460, %v2331
        %v2593 = vsel %vm345, %v461, %v2333
        %v2594 = vsel %vm345, %v462, %v2335
        %v2595 = vsel %vm345, %v463, %v2337
        %v2596 = vsel %vm345, %v464, %v2339
        %v2597 = vsel %vm345, %v465, %v2341
        %v2598 = vsel %vm948, %v2582, %v2359
        %v2599 = vsel %vm948, %v2583, %v2361
        %v2600 = vsel %vm948, %v2584, %v2363
        %v2601 = vsel %vm948, %v2585, %v2365
        %v2602 = vsel %vm948, %v2586, %v2367
        %v2603 = vsel %vm948, %v2587, %v2369
        %v2604 = vsel %vm948, %v2588, %v2371
        %v2605 = vsel %vm948, %v2589, %v2373
        %v2606 = vsel %vm948, %v2590, %v2375
        %v2607 = vsel %vm948, %v2591, %v2377
        %v2608 = vsel %vm948, %v2592, %v2379
        %v2609 = vsel %vm948, %v2593, %v2381
        %v2610 = vsel %vm948, %v2594, %v2383
        %v2611 = vsel %vm948, %v2595, %v2385
        %v2612 = vsel %vm948, %v2596, %v2387
        %v2613 = vsel %vm948, %v2597, %v2389
        %v2614 = vsel %vm965, %v2598, %v2359
        %v2615 = vsel %vm965, %v2599, %v2361
        %v2616 = vsel %vm965, %v2600, %v2363
        %v2617 = vsel %vm965, %v2601, %v2365
        %v2618 = vsel %vm965, %v2602, %v2367
        %v2619 = vsel %vm965, %v2603, %v2369
        %v2620 = vsel %vm965, %v2604, %v2371
        %v2621 = vsel %vm965, %v2605, %v2373
        %v2622 = vsel %vm965, %v2606, %v2375
        %v2623 = vsel %vm965, %v2607, %v2377
        %v2624 = vsel %vm965, %v2608, %v2379
        %v2625 = vsel %vm965, %v2609, %v2381
        %v2626 = vsel %vm965, %v2610, %v2383
        %v2627 = vsel %vm965, %v2611, %v2385
        %v2628 = vsel %vm965, %v2612, %v2387
        %v2629 = vsel %vm965, %v2613, %v2389
        %v2630 = vsel %vm982, %v2614, %v2423
        %v2631 = vsel %vm982, %v2615, %v2425
        %v2632 = vsel %vm982, %v2616, %v2427
        %v2633 = vsel %vm982, %v2617, %v2429
        %v2634 = vsel %vm982, %v2618, %v2431
        %v2635 = vsel %vm982, %v2619, %v2433
        %v2636 = vsel %vm982, %v2620, %v2435
        %v2637 = vsel %vm982, %v2621, %v2437
        %v2638 = vsel %vm982, %v2622, %v2439
        %v2639 = vsel %vm982, %v2623, %v2441
        %v2640 = vsel %vm982, %v2624, %v2443
        %v2641 = vsel %vm982, %v2625, %v2445
        %v2642 = vsel %vm982, %v2626, %v2447
        %v2643 = vsel %vm982, %v2627, %v2449
        %v2644 = vsel %vm982, %v2628, %v2451
        %v2645 = vsel %vm982, %v2629, %v2453
        %v2646 = vsel %vm999, %v2630, %v2471
        %v2647 = vsel %vm999, %v2631, %v2473
        %v2648 = vsel %vm999, %v2632, %v2475
        %v2649 = vsel %vm999, %v2633, %v2477
        %v2650 = vsel %vm999, %v2634, %v2479
        %v2651 = vsel %vm999, %v2635, %v2481
        %v2652 = vsel %vm999, %v2636, %v2483
        %v2653 = vsel %vm999, %v2637, %v2485
        %v2654 = vsel %vm999, %v2638, %v2487
        %v2655 = vsel %vm999, %v2639, %v2489
        %v2656 = vsel %vm999, %v2640, %v2491
        %v2657 = vsel %vm999, %v2641, %v2493
        %v2658 = vsel %vm999, %v2642, %v2495
        %v2659 = vsel %vm999, %v2643, %v2497
        %v2660 = vsel %vm999, %v2644, %v2499
        %v2661 = vsel %vm999, %v2645, %v2501
        %v2662 = vsel %vm1016, %v2646, %v2471
        %v2663 = vsel %vm1016, %v2647, %v2473
        %v2664 = vsel %vm1016, %v2648, %v2475
        %v2665 = vsel %vm1016, %v2649, %v2477
        %v2666 = vsel %vm1016, %v2650, %v2479
        %v2667 = vsel %vm1016, %v2651, %v2481
        %v2668 = vsel %vm1016, %v2652, %v2483
        %v2669 = vsel %vm1016, %v2653, %v2485
        %v2670 = vsel %vm1016, %v2654, %v2487
        %v2671 = vsel %vm1016, %v2655, %v2489
        %v2672 = vsel %vm1016, %v2656, %v2491
        %v2673 = vsel %vm1016, %v2657, %v2493
        %v2674 = vsel %vm1016, %v2658, %v2495
        %v2675 = vsel %vm1016, %v2659, %v2497
        %v2676 = vsel %vm1016, %v2660, %v2499
        %v2677 = vsel %vm1016, %v2661, %v2501
        %v2678 = vsel %vm1033, %v2662, %v2535
        %v2679 = vsel %vm1033, %v2663, %v2537
        %v2680 = vsel %vm1033, %v2664, %v2539
        %v2681 = vsel %vm1033, %v2665, %v2541
        %v2682 = vsel %vm1033, %v2666, %v2543
        %v2683 = vsel %vm1033, %v2667, %v2545
        %v2684 = vsel %vm1033, %v2668, %v2547
        %v2685 = vsel %vm1033, %v2669, %v2549
        %v2686 = vsel %vm1033, %v2670, %v2551
        %v2687 = vsel %vm1033, %v2671, %v2553
        %v2688 = vsel %vm1033, %v2672, %v2555
        %v2689 = vsel %vm1033, %v2673, %v2557
        %v2690 = vsel %vm1033, %v2674, %v2559
        %v2691 = vsel %vm1033, %v2675, %v2561
        %v2692 = vsel %vm1033, %v2676, %v2563
        %v2693 = vsel %vm1033, %v2677, %v2565
        %v2695 = vsel %vm1050, %v2678, 0
        %v2698 = vsel %vm1050, %v2679, 0
        %v2701 = vsel %vm1050, %v2680, 0
        %v2704 = vsel %vm1050, %v2681, 0
        %v2707 = vsel %vm1050, %v2682, 0
        %v2710 = vsel %vm1050, %v2683, 0
        %v2713 = vsel %vm1050, %v2684, 0
        %v2716 = vsel %vm1050, %v2685, 0
        %v2719 = vsel %vm1050, %v2686, 0
        %v2722 = vsel %vm1050, %v2687, 0
        %v2725 = vsel %vm1050, %v2688, 0
        %v2728 = vsel %vm1050, %v2689, 0
        %v2731 = vsel %vm1050, %v2690, 0
        %v2734 = vsel %vm1050, %v2691, 0
        %v2737 = vsel %vm1050, %v2692, 0
        %v2740 = vsel %vm1050, %v2693, 0
        %2742 = vmatprep.subr.mxu0 0.0
        %2743 = vmatpush1.msra.mxu0 0.0
        %2744 = vmatprep.subr.mxu0 0.0
        %2745 = vmatpush1.msra.mxu0 0.0
        %2746 = vmatprep.subr.mxu0 0.0
        %2747 = vmatpush1.msra.mxu0 0.0
        %2748 = vmatprep.subr.mxu0 0.0
        %2749 = vmatpush1.msra.mxu0 0.0
        %2750 = vmatprep.subr.mxu0 0.0
        %2751 = vmatpush1.msra.mxu0 0.0
        %2752 = vmatprep.subr.mxu0 0.0
        %2753 = vmatpush1.msra.mxu0 0.0
        %2754 = vmatprep.subr.mxu0 0.0
        %2755 = vmatpush1.msra.mxu0 0.0
        %2756 = vmatprep.subr.mxu0 0.0
        %2757 = vmatpush1.msra.mxu0 0.0
        %2758 = vmatprep.subr.mxu0 0.0
        %2759 = vmatpush1.msra.mxu0 0.0
        %2760 = vmatprep.subr.mxu0 0.0
        %2761 = vmatpush1.msra.mxu0 0.0
        %2762 = vmatprep.subr.mxu0 0.0
        %2763 = vmatpush1.msra.mxu0 0.0
        %2764 = vmatprep.subr.mxu0 0.0
        %v2765 = vand.u32 %v1101, 4294901760
        %2766 = vmatpush1.msra.mxu0 %v2765
        %2767 = vmatprep.subr.mxu0 0.0
        %v2768 = vand.u32 %v432, 4294901760
        %2769 = vmatpush1.msra.mxu0 %v2768
        %2770 = vmatprep.subr.mxu0 0.0
        %v2771 = vand.u32 %v431, 4294901760
        %2772 = vmatpush1.msra.mxu0 %v2771
        %2773 = vmatprep.subr.mxu0 0.0
        %v2774 = vand.u32 %v430, 4294901760
        %2775 = vmatpush1.msra.mxu0 %v2774
        %2776 = vmatprep.subr.mxu0 0.0
        %v2777 = vand.u32 %v429, 4294901760
        %2778 = vmatpush1.msra.mxu0 %v2777
        %2779 = vmatprep.subr.mxu0 0.0
        %2780 = vmatpush2.msra.mxu0 0.0
        %2781 = vmatprep.subr.mxu0 0.0
        %2782 = vmatpush2.msra.mxu0 0.0
        %2783 = vmatprep.subr.mxu0 0.0
        %2784 = vmatpush2.msra.mxu0 0.0
        %2785 = vmatprep.subr.mxu0 0.0
        %2786 = vmatpush2.msra.mxu0 0.0
        %2787 = vmatprep.subr.mxu0 0.0
        %2788 = vmatpush2.msra.mxu0 0.0
        %2789 = vmatprep.subr.mxu0 0.0
        %2790 = vmatpush2.msra.mxu0 0.0
        %2791 = vmatprep.subr.mxu0 0.0
        %2792 = vmatpush2.msra.mxu0 0.0
        %2793 = vmatprep.subr.mxu0 0.0
        %2794 = vmatpush2.msra.mxu0 0.0
        %2795 = vmatprep.subr.mxu0 0.0
        %2796 = vmatpush2.msra.mxu0 0.0
        %2797 = vmatprep.subr.mxu0 0.0
        %2798 = vmatpush2.msra.mxu0 0.0
        %2799 = vmatprep.subr.mxu0 0.0
        %2800 = vmatpush2.msra.mxu0 0.0
        %2801 = vmatprep.subr.mxu0 0.0
        %2802 = vmatpush2.msra.mxu0 0.0
        %2803 = vmatprep.subr.mxu0 0.0
        %2804 = vmatpush2.msra.mxu0 0.0
        %2805 = vmatprep.subr.mxu0 0.0
        %2806 = vmatpush2.msra.mxu0 0.0
        %2807 = vmatprep.subr.mxu0 0.0
        %2808 = vmatpush2.msra.mxu0 0.0
        %2809 = vmatprep.subr.mxu0 0.0
        %2810 = vmatpush2.msra.mxu0 0.0
        %2811 = vmatprep.mubr.f32.mxu0 0.0
        %v2812 = vand.u32 %v2695, 4294901760
        %v2813 = vsub.f32 %v2695, %v2812
        %v2814 = vand.u32 %v2813, 4294901760
        %v2815 = vsub.f32 %v2813, %v2814
        %v2816 = vand.u32 %v2815, 4294901760
        %2817 = vmatmul.mubr.f32.gmra.mxu0 %v2816
        %v2818 = vpop.f32.mrf.mxu0
        %v2819 = vadd.f32 0.0, %v2818
        %v2820 = vpop.f32.mrf.mxu0
        %2821 = vmatprep.mubr.f32.mxu0 0.0
        %v2822 = vand.u32 %v2698, 4294901760
        %v2823 = vsub.f32 %v2698, %v2822
        %v2824 = vand.u32 %v2823, 4294901760
        %v2825 = vsub.f32 %v2823, %v2824
        %v2826 = vand.u32 %v2825, 4294901760
        %2827 = vmatmul.mubr.f32.gmra.mxu0 %v2826
        %v2828 = vpop.f32.mrf.mxu0
        %v2829 = vadd.f32 0.0, %v2828
        %v2830 = vpop.f32.mrf.mxu0
        %2831 = vmatprep.mubr.f32.mxu0 0.0
        %v2832 = vand.u32 %v2701, 4294901760
        %v2833 = vsub.f32 %v2701, %v2832
        %v2834 = vand.u32 %v2833, 4294901760
        %v2835 = vsub.f32 %v2833, %v2834
        %v2836 = vand.u32 %v2835, 4294901760
        %2837 = vmatmul.mubr.f32.gmra.mxu0 %v2836
        %v2838 = vpop.f32.mrf.mxu0
        %v2839 = vadd.f32 0.0, %v2838
        %v2840 = vpop.f32.mrf.mxu0
        %2841 = vmatprep.mubr.f32.mxu0 0.0
        %v2842 = vand.u32 %v2704, 4294901760
        %v2843 = vsub.f32 %v2704, %v2842
        %v2844 = vand.u32 %v2843, 4294901760
        %v2845 = vsub.f32 %v2843, %v2844
        %v2846 = vand.u32 %v2845, 4294901760
        %2847 = vmatmul.mubr.f32.gmra.mxu0 %v2846
        %v2848 = vpop.f32.mrf.mxu0
        %v2849 = vadd.f32 0.0, %v2848
        %v2850 = vpop.f32.mrf.mxu0
        %2851 = vmatprep.mubr.f32.mxu0 0.0
        %v2852 = vand.u32 %v2707, 4294901760
        %v2853 = vsub.f32 %v2707, %v2852
        %v2854 = vand.u32 %v2853, 4294901760
        %v2855 = vsub.f32 %v2853, %v2854
        %v2856 = vand.u32 %v2855, 4294901760
        %2857 = vmatmul.mubr.f32.gmra.mxu0 %v2856
        %v2858 = vpop.f32.mrf.mxu0
        %v2859 = vadd.f32 0.0, %v2858
        %v2860 = vpop.f32.mrf.mxu0
        %2861 = vmatprep.mubr.f32.mxu0 0.0
        %v2862 = vand.u32 %v2710, 4294901760
        %v2863 = vsub.f32 %v2710, %v2862
        %v2864 = vand.u32 %v2863, 4294901760
        %v2865 = vsub.f32 %v2863, %v2864
        %v2866 = vand.u32 %v2865, 4294901760
        %2867 = vmatmul.mubr.f32.gmra.mxu0 %v2866
        %v2868 = vpop.f32.mrf.mxu0
        %v2869 = vadd.f32 0.0, %v2868
        %v2870 = vpop.f32.mrf.mxu0
        %2871 = vmatprep.mubr.f32.mxu0 0.0
        %v2872 = vand.u32 %v2713, 4294901760
        %v2873 = vsub.f32 %v2713, %v2872
        %v2874 = vand.u32 %v2873, 4294901760
        %v2875 = vsub.f32 %v2873, %v2874
        %v2876 = vand.u32 %v2875, 4294901760
        %2877 = vmatmul.mubr.f32.gmra.mxu0 %v2876
        %v2878 = vpop.f32.mrf.mxu0
        %v2879 = vadd.f32 0.0, %v2878
        %v2880 = vpop.f32.mrf.mxu0
        %2881 = vmatprep.mubr.f32.mxu0 0.0
        %v2882 = vand.u32 %v2716, 4294901760
        %v2883 = vsub.f32 %v2716, %v2882
        %v2884 = vand.u32 %v2883, 4294901760
        %v2885 = vsub.f32 %v2883, %v2884
        %v2886 = vand.u32 %v2885, 4294901760
        %2887 = vmatmul.mubr.f32.gmra.mxu0 %v2886
        %v2888 = vpop.f32.mrf.mxu0
        %v2889 = vadd.f32 0.0, %v2888
        %v2890 = vpop.f32.mrf.mxu0
        %2891 = vmatprep.mubr.f32.mxu0 0.0
        %v2892 = vand.u32 %v2719, 4294901760
        %v2893 = vsub.f32 %v2719, %v2892
        %v2894 = vand.u32 %v2893, 4294901760
        %v2895 = vsub.f32 %v2893, %v2894
        %v2896 = vand.u32 %v2895, 4294901760
        %2897 = vmatmul.mubr.f32.gmra.mxu0 %v2896
        %v2898 = vpop.f32.mrf.mxu0
        %v2899 = vadd.f32 0.0, %v2898
        %v2900 = vpop.f32.mrf.mxu0
        %2901 = vmatprep.mubr.f32.mxu0 0.0
        %v2902 = vand.u32 %v2722, 4294901760
        %v2903 = vsub.f32 %v2722, %v2902
        %v2904 = vand.u32 %v2903, 4294901760
        %v2905 = vsub.f32 %v2903, %v2904
        %v2906 = vand.u32 %v2905, 4294901760
        %2907 = vmatmul.mubr.f32.gmra.mxu0 %v2906
        %v2908 = vpop.f32.mrf.mxu0
        %v2909 = vadd.f32 0.0, %v2908
        %v2910 = vpop.f32.mrf.mxu0
        %2911 = vmatprep.mubr.f32.mxu0 0.0
        %v2912 = vand.u32 %v2725, 4294901760
        %v2913 = vsub.f32 %v2725, %v2912
        %v2914 = vand.u32 %v2913, 4294901760
        %v2915 = vsub.f32 %v2913, %v2914
        %v2916 = vand.u32 %v2915, 4294901760
        %2917 = vmatmul.mubr.f32.gmra.mxu0 %v2916
        %v2918 = vpop.f32.mrf.mxu0
        %v2919 = vadd.f32 0.0, %v2918
        %v2920 = vpop.f32.mrf.mxu0
        %2921 = vmatprep.mubr.f32.mxu0 0.0
        %v2922 = vand.u32 %v2728, 4294901760
        %v2923 = vsub.f32 %v2728, %v2922
        %v2924 = vand.u32 %v2923, 4294901760
        %v2925 = vsub.f32 %v2923, %v2924
        %v2926 = vand.u32 %v2925, 4294901760
        %2927 = vmatmul.mubr.f32.gmra.mxu0 %v2926
        %v2928 = vpop.f32.mrf.mxu0
        %v2929 = vadd.f32 0.0, %v2928
        %v2930 = vpop.f32.mrf.mxu0
        %2931 = vmatprep.mubr.f32.mxu0 0.0
        %v2932 = vand.u32 %v2731, 4294901760
        %v2933 = vsub.f32 %v2731, %v2932
        %v2934 = vand.u32 %v2933, 4294901760
        %v2935 = vsub.f32 %v2933, %v2934
        %v2936 = vand.u32 %v2935, 4294901760
        %2937 = vmatmul.mubr.f32.gmra.mxu0 %v2936
        %v2938 = vpop.f32.mrf.mxu0
        %v2939 = vadd.f32 0.0, %v2938
        %v2940 = vpop.f32.mrf.mxu0
        %2941 = vmatprep.mubr.f32.mxu0 0.0
        %v2942 = vand.u32 %v2734, 4294901760
        %v2943 = vsub.f32 %v2734, %v2942
        %v2944 = vand.u32 %v2943, 4294901760
        %v2945 = vsub.f32 %v2943, %v2944
        %v2946 = vand.u32 %v2945, 4294901760
        %2947 = vmatmul.mubr.f32.gmra.mxu0 %v2946
        %v2948 = vpop.f32.mrf.mxu0
        %v2949 = vadd.f32 0.0, %v2948
        %v2950 = vpop.f32.mrf.mxu0
        %2951 = vmatprep.mubr.f32.mxu0 0.0
        %v2952 = vand.u32 %v2737, 4294901760
        %v2953 = vsub.f32 %v2737, %v2952
        %v2954 = vand.u32 %v2953, 4294901760
        %v2955 = vsub.f32 %v2953, %v2954
        %v2956 = vand.u32 %v2955, 4294901760
        %2957 = vmatmul.mubr.f32.gmra.mxu0 %v2956
        %v2958 = vpop.f32.mrf.mxu0
        %v2959 = vadd.f32 0.0, %v2958
        %v2960 = vpop.f32.mrf.mxu0
        %2961 = vmatprep.mubr.f32.mxu0 0.0
        %v2962 = vand.u32 %v2740, 4294901760
        %v2963 = vsub.f32 %v2740, %v2962
        %v2964 = vand.u32 %v2963, 4294901760
        %v2965 = vsub.f32 %v2963, %v2964
        %v2966 = vand.u32 %v2965, 4294901760
        %2967 = vmatmul.mubr.f32.gmra.mxu0 %v2966
        %v2968 = vpop.f32.mrf.mxu0
        %v2969 = vadd.f32 0.0, %v2968
        %v2970 = vpop.f32.mrf.mxu0
        %2971 = vdwg.mxu0
        %2972 = vmatprep.subr.mxu0 0.0
        %2973 = vmatpush1.msra.mxu0 0.0
        %2974 = vmatprep.subr.mxu0 0.0
        %2975 = vmatpush1.msra.mxu0 0.0
        %2976 = vmatprep.subr.mxu0 0.0
        %2977 = vmatpush1.msra.mxu0 0.0
        %2978 = vmatprep.subr.mxu0 0.0
        %2979 = vmatpush1.msra.mxu0 0.0
        %2980 = vmatprep.subr.mxu0 0.0
        %2981 = vmatpush1.msra.mxu0 0.0
        %2982 = vmatprep.subr.mxu0 0.0
        %2983 = vmatpush1.msra.mxu0 0.0
        %2984 = vmatprep.subr.mxu0 0.0
        %2985 = vmatpush1.msra.mxu0 0.0
        %2986 = vmatprep.subr.mxu0 0.0
        %2987 = vmatpush1.msra.mxu0 0.0
        %2988 = vmatprep.subr.mxu0 0.0
        %2989 = vmatpush1.msra.mxu0 0.0
        %2990 = vmatprep.subr.mxu0 0.0
        %2991 = vmatpush1.msra.mxu0 0.0
        %2992 = vmatprep.subr.mxu0 0.0
        %2993 = vmatpush1.msra.mxu0 0.0
        %2994 = vmatprep.subr.mxu0 0.0
        %v2995 = vand.u32 %v1101, 4294901760
        %v2996 = vsub.f32 %v1101, %v2995
        %v2997 = vand.u32 %v2996, 4294901760
        %v2998 = vsub.f32 %v2996, %v2997
        %v2999 = vand.u32 %v2998, 4294901760
        %3000 = vmatpush1.msra.mxu0 %v2999
        %3001 = vmatprep.subr.mxu0 0.0
        %v3002 = vand.u32 %v432, 4294901760
        %v3003 = vsub.f32 %v432, %v3002
        %v3004 = vand.u32 %v3003, 4294901760
        %v3005 = vsub.f32 %v3003, %v3004
        %v3006 = vand.u32 %v3005, 4294901760
        %3007 = vmatpush1.msra.mxu0 %v3006
        %3008 = vmatprep.subr.mxu0 0.0
        %v3009 = vand.u32 %v431, 4294901760
        %v3010 = vsub.f32 %v431, %v3009
        %v3011 = vand.u32 %v3010, 4294901760
        %v3012 = vsub.f32 %v3010, %v3011
        %v3013 = vand.u32 %v3012, 4294901760
        %3014 = vmatpush1.msra.mxu0 %v3013
        %3015 = vmatprep.subr.mxu0 0.0
        %v3016 = vand.u32 %v430, 4294901760
        %v3017 = vsub.f32 %v430, %v3016
        %v3018 = vand.u32 %v3017, 4294901760
        %v3019 = vsub.f32 %v3017, %v3018
        %v3020 = vand.u32 %v3019, 4294901760
        %3021 = vmatpush1.msra.mxu0 %v3020
        %3022 = vmatprep.subr.mxu0 0.0
        %v3023 = vand.u32 %v429, 4294901760
        %v3024 = vsub.f32 %v429, %v3023
        %v3025 = vand.u32 %v3024, 4294901760
        %v3026 = vsub.f32 %v3024, %v3025
        %v3027 = vand.u32 %v3026, 4294901760
        %3028 = vmatpush1.msra.mxu0 %v3027
        %3029 = vmatprep.subr.mxu0 0.0
        %3030 = vmatpush2.msra.mxu0 0.0
        %3031 = vmatprep.subr.mxu0 0.0
        %3032 = vmatpush2.msra.mxu0 0.0
        %3033 = vmatprep.subr.mxu0 0.0
        %3034 = vmatpush2.msra.mxu0 0.0
        %3035 = vmatprep.subr.mxu0 0.0
        %3036 = vmatpush2.msra.mxu0 0.0
        %3037 = vmatprep.subr.mxu0 0.0
        %3038 = vmatpush2.msra.mxu0 0.0
        %3039 = vmatprep.subr.mxu0 0.0
        %3040 = vmatpush2.msra.mxu0 0.0
        %3041 = vmatprep.subr.mxu0 0.0
        %3042 = vmatpush2.msra.mxu0 0.0
        %3043 = vmatprep.subr.mxu0 0.0
        %3044 = vmatpush2.msra.mxu0 0.0
        %3045 = vmatprep.subr.mxu0 0.0
        %3046 = vmatpush2.msra.mxu0 0.0
        %3047 = vmatprep.subr.mxu0 0.0
        %3048 = vmatpush2.msra.mxu0 0.0
        %3049 = vmatprep.subr.mxu0 0.0
        %3050 = vmatpush2.msra.mxu0 0.0
        %3051 = vmatprep.subr.mxu0 0.0
        %3052 = vmatpush2.msra.mxu0 0.0
        %3053 = vmatprep.subr.mxu0 0.0
        %3054 = vmatpush2.msra.mxu0 0.0
        %3055 = vmatprep.subr.mxu0 0.0
        %3056 = vmatpush2.msra.mxu0 0.0
        %3057 = vmatprep.subr.mxu0 0.0
        %3058 = vmatpush2.msra.mxu0 0.0
        %3059 = vmatprep.subr.mxu0 0.0
        %3060 = vmatpush2.msra.mxu0 0.0
        %3061 = vmatprep.mubr.f32.mxu0 0.0
        %v3062 = vand.u32 %v2695, 4294901760
        %3063 = vmatmul.mubr.f32.gmra.mxu0 %v3062
        %v3064 = vpop.f32.mrf.mxu0
        %v3065 = vadd.f32 %v2819, %v3064
        %v3066 = vpop.f32.mrf.mxu0
        %3067 = vmatprep.mubr.f32.mxu0 0.0
        %v3068 = vand.u32 %v2698, 4294901760
        %3069 = vmatmul.mubr.f32.gmra.mxu0 %v3068
        %v3070 = vpop.f32.mrf.mxu0
        %v3071 = vadd.f32 %v2829, %v3070
        %v3072 = vpop.f32.mrf.mxu0
        %3073 = vmatprep.mubr.f32.mxu0 0.0
        %v3074 = vand.u32 %v2701, 4294901760
        %3075 = vmatmul.mubr.f32.gmra.mxu0 %v3074
        %v3076 = vpop.f32.mrf.mxu0
        %v3077 = vadd.f32 %v2839, %v3076
        %v3078 = vpop.f32.mrf.mxu0
        %3079 = vmatprep.mubr.f32.mxu0 0.0
        %v3080 = vand.u32 %v2704, 4294901760
        %3081 = vmatmul.mubr.f32.gmra.mxu0 %v3080
        %v3082 = vpop.f32.mrf.mxu0
        %v3083 = vadd.f32 %v2849, %v3082
        %v3084 = vpop.f32.mrf.mxu0
        %3085 = vmatprep.mubr.f32.mxu0 0.0
        %v3086 = vand.u32 %v2707, 4294901760
        %3087 = vmatmul.mubr.f32.gmra.mxu0 %v3086
        %v3088 = vpop.f32.mrf.mxu0
        %v3089 = vadd.f32 %v2859, %v3088
        %v3090 = vpop.f32.mrf.mxu0
        %3091 = vmatprep.mubr.f32.mxu0 0.0
        %v3092 = vand.u32 %v2710, 4294901760
        %3093 = vmatmul.mubr.f32.gmra.mxu0 %v3092
        %v3094 = vpop.f32.mrf.mxu0
        %v3095 = vadd.f32 %v2869, %v3094
        %v3096 = vpop.f32.mrf.mxu0
        %3097 = vmatprep.mubr.f32.mxu0 0.0
        %v3098 = vand.u32 %v2713, 4294901760
        %3099 = vmatmul.mubr.f32.gmra.mxu0 %v3098
        %v3100 = vpop.f32.mrf.mxu0
        %v3101 = vadd.f32 %v2879, %v3100
        %v3102 = vpop.f32.mrf.mxu0
        %3103 = vmatprep.mubr.f32.mxu0 0.0
        %v3104 = vand.u32 %v2716, 4294901760
        %3105 = vmatmul.mubr.f32.gmra.mxu0 %v3104
        %v3106 = vpop.f32.mrf.mxu0
        %v3107 = vadd.f32 %v2889, %v3106
        %v3108 = vpop.f32.mrf.mxu0
        %3109 = vmatprep.mubr.f32.mxu0 0.0
        %v3110 = vand.u32 %v2719, 4294901760
        %3111 = vmatmul.mubr.f32.gmra.mxu0 %v3110
        %v3112 = vpop.f32.mrf.mxu0
        %v3113 = vadd.f32 %v2899, %v3112
        %v3114 = vpop.f32.mrf.mxu0
        %3115 = vmatprep.mubr.f32.mxu0 0.0
        %v3116 = vand.u32 %v2722, 4294901760
        %3117 = vmatmul.mubr.f32.gmra.mxu0 %v3116
        %v3118 = vpop.f32.mrf.mxu0
        %v3119 = vadd.f32 %v2909, %v3118
        %v3120 = vpop.f32.mrf.mxu0
        %3121 = vmatprep.mubr.f32.mxu0 0.0
        %v3122 = vand.u32 %v2725, 4294901760
        %3123 = vmatmul.mubr.f32.gmra.mxu0 %v3122
        %v3124 = vpop.f32.mrf.mxu0
        %v3125 = vadd.f32 %v2919, %v3124
        %v3126 = vpop.f32.mrf.mxu0
        %3127 = vmatprep.mubr.f32.mxu0 0.0
        %v3128 = vand.u32 %v2728, 4294901760
        %3129 = vmatmul.mubr.f32.gmra.mxu0 %v3128
        %v3130 = vpop.f32.mrf.mxu0
        %v3131 = vadd.f32 %v2929, %v3130
        %v3132 = vpop.f32.mrf.mxu0
        %3133 = vmatprep.mubr.f32.mxu0 0.0
        %v3134 = vand.u32 %v2731, 4294901760
        %3135 = vmatmul.mubr.f32.gmra.mxu0 %v3134
        %v3136 = vpop.f32.mrf.mxu0
        %v3137 = vadd.f32 %v2939, %v3136
        %v3138 = vpop.f32.mrf.mxu0
        %3139 = vmatprep.mubr.f32.mxu0 0.0
        %v3140 = vand.u32 %v2734, 4294901760
        %3141 = vmatmul.mubr.f32.gmra.mxu0 %v3140
        %v3142 = vpop.f32.mrf.mxu0
        %v3143 = vadd.f32 %v2949, %v3142
        %v3144 = vpop.f32.mrf.mxu0
        %3145 = vmatprep.mubr.f32.mxu0 0.0
        %v3146 = vand.u32 %v2737, 4294901760
        %3147 = vmatmul.mubr.f32.gmra.mxu0 %v3146
        %v3148 = vpop.f32.mrf.mxu0
        %v3149 = vadd.f32 %v2959, %v3148
        %v3150 = vpop.f32.mrf.mxu0
        %3151 = vmatprep.mubr.f32.mxu0 0.0
        %v3152 = vand.u32 %v2740, 4294901760
        %3153 = vmatmul.mubr.f32.gmra.mxu0 %v3152
        %v3154 = vpop.f32.mrf.mxu0
        %v3155 = vadd.f32 %v2969, %v3154
        %v3156 = vpop.f32.mrf.mxu0
        %3157 = vdwg.mxu0
        %3158 = vmatprep.subr.mxu0 0.0
        %3159 = vmatpush1.msra.mxu0 0.0
        %3160 = vmatprep.subr.mxu0 0.0
        %3161 = vmatpush1.msra.mxu0 0.0
        %3162 = vmatprep.subr.mxu0 0.0
        %3163 = vmatpush1.msra.mxu0 0.0
        %3164 = vmatprep.subr.mxu0 0.0
        %3165 = vmatpush1.msra.mxu0 0.0
        %3166 = vmatprep.subr.mxu0 0.0
        %3167 = vmatpush1.msra.mxu0 0.0
        %3168 = vmatprep.subr.mxu0 0.0
        %3169 = vmatpush1.msra.mxu0 0.0
        %3170 = vmatprep.subr.mxu0 0.0
        %3171 = vmatpush1.msra.mxu0 0.0
        %3172 = vmatprep.subr.mxu0 0.0
        %3173 = vmatpush1.msra.mxu0 0.0
        %3174 = vmatprep.subr.mxu0 0.0
        %3175 = vmatpush1.msra.mxu0 0.0
        %3176 = vmatprep.subr.mxu0 0.0
        %3177 = vmatpush1.msra.mxu0 0.0
        %3178 = vmatprep.subr.mxu0 0.0
        %3179 = vmatpush1.msra.mxu0 0.0
        %3180 = vmatprep.subr.mxu0 0.0
        %v3181 = vand.u32 %v1101, 4294901760
        %v3182 = vsub.f32 %v1101, %v3181
        %3183 = vmatpush1.msra.mxu0 %v3182
        %3184 = vmatprep.subr.mxu0 0.0
        %v3185 = vand.u32 %v432, 4294901760
        %v3186 = vsub.f32 %v432, %v3185
        %3187 = vmatpush1.msra.mxu0 %v3186
        %3188 = vmatprep.subr.mxu0 0.0
        %v3189 = vand.u32 %v431, 4294901760
        %v3190 = vsub.f32 %v431, %v3189
        %3191 = vmatpush1.msra.mxu0 %v3190
        %3192 = vmatprep.subr.mxu0 0.0
        %v3193 = vand.u32 %v430, 4294901760
        %v3194 = vsub.f32 %v430, %v3193
        %3195 = vmatpush1.msra.mxu0 %v3194
        %3196 = vmatprep.subr.mxu0 0.0
        %v3197 = vand.u32 %v429, 4294901760
        %v3198 = vsub.f32 %v429, %v3197
        %3199 = vmatpush1.msra.mxu0 %v3198
        %3200 = vmatprep.subr.mxu0 0.0
        %3201 = vmatpush2.msra.mxu0 0.0
        %3202 = vmatprep.subr.mxu0 0.0
        %3203 = vmatpush2.msra.mxu0 0.0
        %3204 = vmatprep.subr.mxu0 0.0
        %3205 = vmatpush2.msra.mxu0 0.0
        %3206 = vmatprep.subr.mxu0 0.0
        %3207 = vmatpush2.msra.mxu0 0.0
        %3208 = vmatprep.subr.mxu0 0.0
        %3209 = vmatpush2.msra.mxu0 0.0
        %3210 = vmatprep.subr.mxu0 0.0
        %3211 = vmatpush2.msra.mxu0 0.0
        %3212 = vmatprep.subr.mxu0 0.0
        %3213 = vmatpush2.msra.mxu0 0.0
        %3214 = vmatprep.subr.mxu0 0.0
        %3215 = vmatpush2.msra.mxu0 0.0
        %3216 = vmatprep.subr.mxu0 0.0
        %3217 = vmatpush2.msra.mxu0 0.0
        %3218 = vmatprep.subr.mxu0 0.0
        %3219 = vmatpush2.msra.mxu0 0.0
        %3220 = vmatprep.subr.mxu0 0.0
        %3221 = vmatpush2.msra.mxu0 0.0
        %3222 = vmatprep.subr.mxu0 0.0
        %3223 = vmatpush2.msra.mxu0 0.0
        %3224 = vmatprep.subr.mxu0 0.0
        %3225 = vmatpush2.msra.mxu0 0.0
        %3226 = vmatprep.subr.mxu0 0.0
        %3227 = vmatpush2.msra.mxu0 0.0
        %3228 = vmatprep.subr.mxu0 0.0
        %3229 = vmatpush2.msra.mxu0 0.0
        %3230 = vmatprep.subr.mxu0 0.0
        %3231 = vmatpush2.msra.mxu0 0.0
        %3232 = vmatprep.mubr.f32.mxu0 0.0
        %v3233 = vand.u32 %v2695, 4294901760
        %v3234 = vsub.f32 %v2695, %v3233
        %3235 = vmatmul.mubr.f32.gmra.mxu0 %v3234
        %v3236 = vpop.f32.mrf.mxu0
        %v3237 = vadd.f32 %v3065, %v3236
        %v3238 = vpop.f32.mrf.mxu0
        %3239 = vmatprep.mubr.f32.mxu0 0.0
        %v3240 = vand.u32 %v2698, 4294901760
        %v3241 = vsub.f32 %v2698, %v3240
        %3242 = vmatmul.mubr.f32.gmra.mxu0 %v3241
        %v3243 = vpop.f32.mrf.mxu0
        %v3244 = vadd.f32 %v3071, %v3243
        %v3245 = vpop.f32.mrf.mxu0
        %3246 = vmatprep.mubr.f32.mxu0 0.0
        %v3247 = vand.u32 %v2701, 4294901760
        %v3248 = vsub.f32 %v2701, %v3247
        %3249 = vmatmul.mubr.f32.gmra.mxu0 %v3248
        %v3250 = vpop.f32.mrf.mxu0
        %v3251 = vadd.f32 %v3077, %v3250
        %v3252 = vpop.f32.mrf.mxu0
        %3253 = vmatprep.mubr.f32.mxu0 0.0
        %v3254 = vand.u32 %v2704, 4294901760
        %v3255 = vsub.f32 %v2704, %v3254
        %3256 = vmatmul.mubr.f32.gmra.mxu0 %v3255
        %v3257 = vpop.f32.mrf.mxu0
        %v3258 = vadd.f32 %v3083, %v3257
        %v3259 = vpop.f32.mrf.mxu0
        %3260 = vmatprep.mubr.f32.mxu0 0.0
        %v3261 = vand.u32 %v2707, 4294901760
        %v3262 = vsub.f32 %v2707, %v3261
        %3263 = vmatmul.mubr.f32.gmra.mxu0 %v3262
        %v3264 = vpop.f32.mrf.mxu0
        %v3265 = vadd.f32 %v3089, %v3264
        %v3266 = vpop.f32.mrf.mxu0
        %3267 = vmatprep.mubr.f32.mxu0 0.0
        %v3268 = vand.u32 %v2710, 4294901760
        %v3269 = vsub.f32 %v2710, %v3268
        %3270 = vmatmul.mubr.f32.gmra.mxu0 %v3269
        %v3271 = vpop.f32.mrf.mxu0
        %v3272 = vadd.f32 %v3095, %v3271
        %v3273 = vpop.f32.mrf.mxu0
        %3274 = vmatprep.mubr.f32.mxu0 0.0
        %v3275 = vand.u32 %v2713, 4294901760
        %v3276 = vsub.f32 %v2713, %v3275
        %3277 = vmatmul.mubr.f32.gmra.mxu0 %v3276
        %v3278 = vpop.f32.mrf.mxu0
        %v3279 = vadd.f32 %v3101, %v3278
        %v3280 = vpop.f32.mrf.mxu0
        %3281 = vmatprep.mubr.f32.mxu0 0.0
        %v3282 = vand.u32 %v2716, 4294901760
        %v3283 = vsub.f32 %v2716, %v3282
        %3284 = vmatmul.mubr.f32.gmra.mxu0 %v3283
        %v3285 = vpop.f32.mrf.mxu0
        %v3286 = vadd.f32 %v3107, %v3285
        %v3287 = vpop.f32.mrf.mxu0
        %3288 = vmatprep.mubr.f32.mxu0 0.0
        %v3289 = vand.u32 %v2719, 4294901760
        %v3290 = vsub.f32 %v2719, %v3289
        %3291 = vmatmul.mubr.f32.gmra.mxu0 %v3290
        %v3292 = vpop.f32.mrf.mxu0
        %v3293 = vadd.f32 %v3113, %v3292
        %v3294 = vpop.f32.mrf.mxu0
        %3295 = vmatprep.mubr.f32.mxu0 0.0
        %v3296 = vand.u32 %v2722, 4294901760
        %v3297 = vsub.f32 %v2722, %v3296
        %3298 = vmatmul.mubr.f32.gmra.mxu0 %v3297
        %v3299 = vpop.f32.mrf.mxu0
        %v3300 = vadd.f32 %v3119, %v3299
        %v3301 = vpop.f32.mrf.mxu0
        %3302 = vmatprep.mubr.f32.mxu0 0.0
        %v3303 = vand.u32 %v2725, 4294901760
        %v3304 = vsub.f32 %v2725, %v3303
        %3305 = vmatmul.mubr.f32.gmra.mxu0 %v3304
        %v3306 = vpop.f32.mrf.mxu0
        %v3307 = vadd.f32 %v3125, %v3306
        %v3308 = vpop.f32.mrf.mxu0
        %3309 = vmatprep.mubr.f32.mxu0 0.0
        %v3310 = vand.u32 %v2728, 4294901760
        %v3311 = vsub.f32 %v2728, %v3310
        %3312 = vmatmul.mubr.f32.gmra.mxu0 %v3311
        %v3313 = vpop.f32.mrf.mxu0
        %v3314 = vadd.f32 %v3131, %v3313
        %v3315 = vpop.f32.mrf.mxu0
        %3316 = vmatprep.mubr.f32.mxu0 0.0
        %v3317 = vand.u32 %v2731, 4294901760
        %v3318 = vsub.f32 %v2731, %v3317
        %3319 = vmatmul.mubr.f32.gmra.mxu0 %v3318
        %v3320 = vpop.f32.mrf.mxu0
        %v3321 = vadd.f32 %v3137, %v3320
        %v3322 = vpop.f32.mrf.mxu0
        %3323 = vmatprep.mubr.f32.mxu0 0.0
        %v3324 = vand.u32 %v2734, 4294901760
        %v3325 = vsub.f32 %v2734, %v3324
        %3326 = vmatmul.mubr.f32.gmra.mxu0 %v3325
        %v3327 = vpop.f32.mrf.mxu0
        %v3328 = vadd.f32 %v3143, %v3327
        %v3329 = vpop.f32.mrf.mxu0
        %3330 = vmatprep.mubr.f32.mxu0 0.0
        %v3331 = vand.u32 %v2737, 4294901760
        %v3332 = vsub.f32 %v2737, %v3331
        %3333 = vmatmul.mubr.f32.gmra.mxu0 %v3332
        %v3334 = vpop.f32.mrf.mxu0
        %v3335 = vadd.f32 %v3149, %v3334
        %v3336 = vpop.f32.mrf.mxu0
        %3337 = vmatprep.mubr.f32.mxu0 0.0
        %v3338 = vand.u32 %v2740, 4294901760
        %v3339 = vsub.f32 %v2740, %v3338
        %3340 = vmatmul.mubr.f32.gmra.mxu0 %v3339
        %v3341 = vpop.f32.mrf.mxu0
        %v3342 = vadd.f32 %v3155, %v3341
        %v3343 = vpop.f32.mrf.mxu0
        %3344 = vdwg.mxu0
        %3345 = vmatprep.subr.mxu0 0.0
        %3346 = vmatpush1.msra.mxu0 0.0
        %3347 = vmatprep.subr.mxu0 0.0
        %3348 = vmatpush1.msra.mxu0 0.0
        %3349 = vmatprep.subr.mxu0 0.0
        %3350 = vmatpush1.msra.mxu0 0.0
        %3351 = vmatprep.subr.mxu0 0.0
        %3352 = vmatpush1.msra.mxu0 0.0
        %3353 = vmatprep.subr.mxu0 0.0
        %3354 = vmatpush1.msra.mxu0 0.0
        %3355 = vmatprep.subr.mxu0 0.0
        %3356 = vmatpush1.msra.mxu0 0.0
        %3357 = vmatprep.subr.mxu0 0.0
        %3358 = vmatpush1.msra.mxu0 0.0
        %3359 = vmatprep.subr.mxu0 0.0
        %3360 = vmatpush1.msra.mxu0 0.0
        %3361 = vmatprep.subr.mxu0 0.0
        %3362 = vmatpush1.msra.mxu0 0.0
        %3363 = vmatprep.subr.mxu0 0.0
        %3364 = vmatpush1.msra.mxu0 0.0
        %3365 = vmatprep.subr.mxu0 0.0
        %3366 = vmatpush1.msra.mxu0 0.0
        %3367 = vmatprep.subr.mxu0 0.0
        %v3368 = vand.u32 %v1101, 4294901760
        %3369 = vmatpush1.msra.mxu0 %v3368
        %3370 = vmatprep.subr.mxu0 0.0
        %v3371 = vand.u32 %v432, 4294901760
        %3372 = vmatpush1.msra.mxu0 %v3371
        %3373 = vmatprep.subr.mxu0 0.0
        %v3374 = vand.u32 %v431, 4294901760
        %3375 = vmatpush1.msra.mxu0 %v3374
        %3376 = vmatprep.subr.mxu0 0.0
        %v3377 = vand.u32 %v430, 4294901760
        %3378 = vmatpush1.msra.mxu0 %v3377
        %3379 = vmatprep.subr.mxu0 0.0
        %v3380 = vand.u32 %v429, 4294901760
        %3381 = vmatpush1.msra.mxu0 %v3380
        %3382 = vmatprep.subr.mxu0 0.0
        %3383 = vmatpush2.msra.mxu0 0.0
        %3384 = vmatprep.subr.mxu0 0.0
        %3385 = vmatpush2.msra.mxu0 0.0
        %3386 = vmatprep.subr.mxu0 0.0
        %3387 = vmatpush2.msra.mxu0 0.0
        %3388 = vmatprep.subr.mxu0 0.0
        %3389 = vmatpush2.msra.mxu0 0.0
        %3390 = vmatprep.subr.mxu0 0.0
        %3391 = vmatpush2.msra.mxu0 0.0
        %3392 = vmatprep.subr.mxu0 0.0
        %3393 = vmatpush2.msra.mxu0 0.0
        %3394 = vmatprep.subr.mxu0 0.0
        %3395 = vmatpush2.msra.mxu0 0.0
        %3396 = vmatprep.subr.mxu0 0.0
        %3397 = vmatpush2.msra.mxu0 0.0
        %3398 = vmatprep.subr.mxu0 0.0
        %3399 = vmatpush2.msra.mxu0 0.0
        %3400 = vmatprep.subr.mxu0 0.0
        %3401 = vmatpush2.msra.mxu0 0.0
        %3402 = vmatprep.subr.mxu0 0.0
        %3403 = vmatpush2.msra.mxu0 0.0
        %3404 = vmatprep.subr.mxu0 0.0
        %3405 = vmatpush2.msra.mxu0 0.0
        %3406 = vmatprep.subr.mxu0 0.0
        %3407 = vmatpush2.msra.mxu0 0.0
        %3408 = vmatprep.subr.mxu0 0.0
        %3409 = vmatpush2.msra.mxu0 0.0
        %3410 = vmatprep.subr.mxu0 0.0
        %3411 = vmatpush2.msra.mxu0 0.0
        %3412 = vmatprep.subr.mxu0 0.0
        %3413 = vmatpush2.msra.mxu0 0.0
        %3414 = vmatprep.mubr.f32.mxu0 0.0
        %v3415 = vand.u32 %v2695, 4294901760
        %v3416 = vsub.f32 %v2695, %v3415
        %v3417 = vand.u32 %v3416, 4294901760
        %3418 = vmatmul.mubr.f32.gmra.mxu0 %v3417
        %v3419 = vpop.f32.mrf.mxu0
        %v3420 = vadd.f32 %v3237, %v3419
        %v3421 = vpop.f32.mrf.mxu0
        %3422 = vmatprep.mubr.f32.mxu0 0.0
        %v3423 = vand.u32 %v2698, 4294901760
        %v3424 = vsub.f32 %v2698, %v3423
        %v3425 = vand.u32 %v3424, 4294901760
        %3426 = vmatmul.mubr.f32.gmra.mxu0 %v3425
        %v3427 = vpop.f32.mrf.mxu0
        %v3428 = vadd.f32 %v3244, %v3427
        %v3429 = vpop.f32.mrf.mxu0
        %3430 = vmatprep.mubr.f32.mxu0 0.0
        %v3431 = vand.u32 %v2701, 4294901760
        %v3432 = vsub.f32 %v2701, %v3431
        %v3433 = vand.u32 %v3432, 4294901760
        %3434 = vmatmul.mubr.f32.gmra.mxu0 %v3433
        %v3435 = vpop.f32.mrf.mxu0
        %v3436 = vadd.f32 %v3251, %v3435
        %v3437 = vpop.f32.mrf.mxu0
        %3438 = vmatprep.mubr.f32.mxu0 0.0
        %v3439 = vand.u32 %v2704, 4294901760
        %v3440 = vsub.f32 %v2704, %v3439
        %v3441 = vand.u32 %v3440, 4294901760
        %3442 = vmatmul.mubr.f32.gmra.mxu0 %v3441
        %v3443 = vpop.f32.mrf.mxu0
        %v3444 = vadd.f32 %v3258, %v3443
        %v3445 = vpop.f32.mrf.mxu0
        %3446 = vmatprep.mubr.f32.mxu0 0.0
        %v3447 = vand.u32 %v2707, 4294901760
        %v3448 = vsub.f32 %v2707, %v3447
        %v3449 = vand.u32 %v3448, 4294901760
        %3450 = vmatmul.mubr.f32.gmra.mxu0 %v3449
        %v3451 = vpop.f32.mrf.mxu0
        %v3452 = vadd.f32 %v3265, %v3451
        %v3453 = vpop.f32.mrf.mxu0
        %3454 = vmatprep.mubr.f32.mxu0 0.0
        %v3455 = vand.u32 %v2710, 4294901760
        %v3456 = vsub.f32 %v2710, %v3455
        %v3457 = vand.u32 %v3456, 4294901760
        %3458 = vmatmul.mubr.f32.gmra.mxu0 %v3457
        %v3459 = vpop.f32.mrf.mxu0
        %v3460 = vadd.f32 %v3272, %v3459
        %v3461 = vpop.f32.mrf.mxu0
        %3462 = vmatprep.mubr.f32.mxu0 0.0
        %v3463 = vand.u32 %v2713, 4294901760
        %v3464 = vsub.f32 %v2713, %v3463
        %v3465 = vand.u32 %v3464, 4294901760
        %3466 = vmatmul.mubr.f32.gmra.mxu0 %v3465
        %v3467 = vpop.f32.mrf.mxu0
        %v3468 = vadd.f32 %v3279, %v3467
        %v3469 = vpop.f32.mrf.mxu0
        %3470 = vmatprep.mubr.f32.mxu0 0.0
        %v3471 = vand.u32 %v2716, 4294901760
        %v3472 = vsub.f32 %v2716, %v3471
        %v3473 = vand.u32 %v3472, 4294901760
        %3474 = vmatmul.mubr.f32.gmra.mxu0 %v3473
        %v3475 = vpop.f32.mrf.mxu0
        %v3476 = vadd.f32 %v3286, %v3475
        %v3477 = vpop.f32.mrf.mxu0
        %3478 = vmatprep.mubr.f32.mxu0 0.0
        %v3479 = vand.u32 %v2719, 4294901760
        %v3480 = vsub.f32 %v2719, %v3479
        %v3481 = vand.u32 %v3480, 4294901760
        %3482 = vmatmul.mubr.f32.gmra.mxu0 %v3481
        %v3483 = vpop.f32.mrf.mxu0
        %v3484 = vadd.f32 %v3293, %v3483
        %v3485 = vpop.f32.mrf.mxu0
        %3486 = vmatprep.mubr.f32.mxu0 0.0
        %v3487 = vand.u32 %v2722, 4294901760
        %v3488 = vsub.f32 %v2722, %v3487
        %v3489 = vand.u32 %v3488, 4294901760
        %3490 = vmatmul.mubr.f32.gmra.mxu0 %v3489
        %v3491 = vpop.f32.mrf.mxu0
        %v3492 = vadd.f32 %v3300, %v3491
        %v3493 = vpop.f32.mrf.mxu0
        %3494 = vmatprep.mubr.f32.mxu0 0.0
        %v3495 = vand.u32 %v2725, 4294901760
        %v3496 = vsub.f32 %v2725, %v3495
        %v3497 = vand.u32 %v3496, 4294901760
        %3498 = vmatmul.mubr.f32.gmra.mxu0 %v3497
        %v3499 = vpop.f32.mrf.mxu0
        %v3500 = vadd.f32 %v3307, %v3499
        %v3501 = vpop.f32.mrf.mxu0
        %3502 = vmatprep.mubr.f32.mxu0 0.0
        %v3503 = vand.u32 %v2728, 4294901760
        %v3504 = vsub.f32 %v2728, %v3503
        %v3505 = vand.u32 %v3504, 4294901760
        %3506 = vmatmul.mubr.f32.gmra.mxu0 %v3505
        %v3507 = vpop.f32.mrf.mxu0
        %v3508 = vadd.f32 %v3314, %v3507
        %v3509 = vpop.f32.mrf.mxu0
        %3510 = vmatprep.mubr.f32.mxu0 0.0
        %v3511 = vand.u32 %v2731, 4294901760
        %v3512 = vsub.f32 %v2731, %v3511
        %v3513 = vand.u32 %v3512, 4294901760
        %3514 = vmatmul.mubr.f32.gmra.mxu0 %v3513
        %v3515 = vpop.f32.mrf.mxu0
        %v3516 = vadd.f32 %v3321, %v3515
        %v3517 = vpop.f32.mrf.mxu0
        %3518 = vmatprep.mubr.f32.mxu0 0.0
        %v3519 = vand.u32 %v2734, 4294901760
        %v3520 = vsub.f32 %v2734, %v3519
        %v3521 = vand.u32 %v3520, 4294901760
        %3522 = vmatmul.mubr.f32.gmra.mxu0 %v3521
        %v3523 = vpop.f32.mrf.mxu0
        %v3524 = vadd.f32 %v3328, %v3523
        %v3525 = vpop.f32.mrf.mxu0
        %3526 = vmatprep.mubr.f32.mxu0 0.0
        %v3527 = vand.u32 %v2737, 4294901760
        %v3528 = vsub.f32 %v2737, %v3527
        %v3529 = vand.u32 %v3528, 4294901760
        %3530 = vmatmul.mubr.f32.gmra.mxu0 %v3529
        %v3531 = vpop.f32.mrf.mxu0
        %v3532 = vadd.f32 %v3335, %v3531
        %v3533 = vpop.f32.mrf.mxu0
        %3534 = vmatprep.mubr.f32.mxu0 0.0
        %v3535 = vand.u32 %v2740, 4294901760
        %v3536 = vsub.f32 %v2740, %v3535
        %v3537 = vand.u32 %v3536, 4294901760
        %3538 = vmatmul.mubr.f32.gmra.mxu0 %v3537
        %v3539 = vpop.f32.mrf.mxu0
        %v3540 = vadd.f32 %v3342, %v3539
        %v3541 = vpop.f32.mrf.mxu0
        %3542 = vdwg.mxu0
        %3543 = vmatprep.subr.mxu0 0.0
        %3544 = vmatpush1.msra.mxu0 0.0
        %3545 = vmatprep.subr.mxu0 0.0
        %3546 = vmatpush1.msra.mxu0 0.0
        %3547 = vmatprep.subr.mxu0 0.0
        %3548 = vmatpush1.msra.mxu0 0.0
        %3549 = vmatprep.subr.mxu0 0.0
        %3550 = vmatpush1.msra.mxu0 0.0
        %3551 = vmatprep.subr.mxu0 0.0
        %3552 = vmatpush1.msra.mxu0 0.0
        %3553 = vmatprep.subr.mxu0 0.0
        %3554 = vmatpush1.msra.mxu0 0.0
        %3555 = vmatprep.subr.mxu0 0.0
        %3556 = vmatpush1.msra.mxu0 0.0
        %3557 = vmatprep.subr.mxu0 0.0
        %3558 = vmatpush1.msra.mxu0 0.0
        %3559 = vmatprep.subr.mxu0 0.0
        %3560 = vmatpush1.msra.mxu0 0.0
        %3561 = vmatprep.subr.mxu0 0.0
        %3562 = vmatpush1.msra.mxu0 0.0
        %3563 = vmatprep.subr.mxu0 0.0
        %3564 = vmatpush1.msra.mxu0 0.0
        %3565 = vmatprep.subr.mxu0 0.0
        %v3566 = vand.u32 %v1101, 4294901760
        %v3567 = vsub.f32 %v1101, %v3566
        %v3568 = vand.u32 %v3567, 4294901760
        %3569 = vmatpush1.msra.mxu0 %v3568
        %3570 = vmatprep.subr.mxu0 0.0
        %v3571 = vand.u32 %v432, 4294901760
        %v3572 = vsub.f32 %v432, %v3571
        %v3573 = vand.u32 %v3572, 4294901760
        %3574 = vmatpush1.msra.mxu0 %v3573
        %3575 = vmatprep.subr.mxu0 0.0
        %v3576 = vand.u32 %v431, 4294901760
        %v3577 = vsub.f32 %v431, %v3576
        %v3578 = vand.u32 %v3577, 4294901760
        %3579 = vmatpush1.msra.mxu0 %v3578
        %3580 = vmatprep.subr.mxu0 0.0
        %v3581 = vand.u32 %v430, 4294901760
        %v3582 = vsub.f32 %v430, %v3581
        %v3583 = vand.u32 %v3582, 4294901760
        %3584 = vmatpush1.msra.mxu0 %v3583
        %3585 = vmatprep.subr.mxu0 0.0
        %v3586 = vand.u32 %v429, 4294901760
        %v3587 = vsub.f32 %v429, %v3586
        %v3588 = vand.u32 %v3587, 4294901760
        %3589 = vmatpush1.msra.mxu0 %v3588
        %3590 = vmatprep.subr.mxu0 0.0
        %3591 = vmatpush2.msra.mxu0 0.0
        %3592 = vmatprep.subr.mxu0 0.0
        %3593 = vmatpush2.msra.mxu0 0.0
        %3594 = vmatprep.subr.mxu0 0.0
        %3595 = vmatpush2.msra.mxu0 0.0
        %3596 = vmatprep.subr.mxu0 0.0
        %3597 = vmatpush2.msra.mxu0 0.0
        %3598 = vmatprep.subr.mxu0 0.0
        %3599 = vmatpush2.msra.mxu0 0.0
        %3600 = vmatprep.subr.mxu0 0.0
        %3601 = vmatpush2.msra.mxu0 0.0
        %3602 = vmatprep.subr.mxu0 0.0
        %3603 = vmatpush2.msra.mxu0 0.0
        %3604 = vmatprep.subr.mxu0 0.0
        %3605 = vmatpush2.msra.mxu0 0.0
        %3606 = vmatprep.subr.mxu0 0.0
        %3607 = vmatpush2.msra.mxu0 0.0
        %3608 = vmatprep.subr.mxu0 0.0
        %3609 = vmatpush2.msra.mxu0 0.0
        %3610 = vmatprep.subr.mxu0 0.0
        %3611 = vmatpush2.msra.mxu0 0.0
        %3612 = vmatprep.subr.mxu0 0.0
        %3613 = vmatpush2.msra.mxu0 0.0
        %3614 = vmatprep.subr.mxu0 0.0
        %3615 = vmatpush2.msra.mxu0 0.0
        %3616 = vmatprep.subr.mxu0 0.0
        %3617 = vmatpush2.msra.mxu0 0.0
        %3618 = vmatprep.subr.mxu0 0.0
        %3619 = vmatpush2.msra.mxu0 0.0
        %3620 = vmatprep.subr.mxu0 0.0
        %3621 = vmatpush2.msra.mxu0 0.0
        %3622 = vmatprep.mubr.f32.mxu0 0.0
        %v3623 = vand.u32 %v2695, 4294901760
        %3624 = vmatmul.mubr.f32.gmra.mxu0 %v3623
        %v3625 = vpop.f32.mrf.mxu0
        %v3626 = vadd.f32 %v3420, %v3625
        %v3627 = vpop.f32.mrf.mxu0
        %3628 = vmatprep.mubr.f32.mxu0 0.0
        %v3629 = vand.u32 %v2698, 4294901760
        %3630 = vmatmul.mubr.f32.gmra.mxu0 %v3629
        %v3631 = vpop.f32.mrf.mxu0
        %v3632 = vadd.f32 %v3428, %v3631
        %v3633 = vpop.f32.mrf.mxu0
        %3634 = vmatprep.mubr.f32.mxu0 0.0
        %v3635 = vand.u32 %v2701, 4294901760
        %3636 = vmatmul.mubr.f32.gmra.mxu0 %v3635
        %v3637 = vpop.f32.mrf.mxu0
        %v3638 = vadd.f32 %v3436, %v3637
        %v3639 = vpop.f32.mrf.mxu0
        %3640 = vmatprep.mubr.f32.mxu0 0.0
        %v3641 = vand.u32 %v2704, 4294901760
        %3642 = vmatmul.mubr.f32.gmra.mxu0 %v3641
        %v3643 = vpop.f32.mrf.mxu0
        %v3644 = vadd.f32 %v3444, %v3643
        %v3645 = vpop.f32.mrf.mxu0
        %3646 = vmatprep.mubr.f32.mxu0 0.0
        %v3647 = vand.u32 %v2707, 4294901760
        %3648 = vmatmul.mubr.f32.gmra.mxu0 %v3647
        %v3649 = vpop.f32.mrf.mxu0
        %v3650 = vadd.f32 %v3452, %v3649
        %v3651 = vpop.f32.mrf.mxu0
        %3652 = vmatprep.mubr.f32.mxu0 0.0
        %v3653 = vand.u32 %v2710, 4294901760
        %3654 = vmatmul.mubr.f32.gmra.mxu0 %v3653
        %v3655 = vpop.f32.mrf.mxu0
        %v3656 = vadd.f32 %v3460, %v3655
        %v3657 = vpop.f32.mrf.mxu0
        %3658 = vmatprep.mubr.f32.mxu0 0.0
        %v3659 = vand.u32 %v2713, 4294901760
        %3660 = vmatmul.mubr.f32.gmra.mxu0 %v3659
        %v3661 = vpop.f32.mrf.mxu0
        %v3662 = vadd.f32 %v3468, %v3661
        %v3663 = vpop.f32.mrf.mxu0
        %3664 = vmatprep.mubr.f32.mxu0 0.0
        %v3665 = vand.u32 %v2716, 4294901760
        %3666 = vmatmul.mubr.f32.gmra.mxu0 %v3665
        %v3667 = vpop.f32.mrf.mxu0
        %v3668 = vadd.f32 %v3476, %v3667
        %v3669 = vpop.f32.mrf.mxu0
        %3670 = vmatprep.mubr.f32.mxu0 0.0
        %v3671 = vand.u32 %v2719, 4294901760
        %3672 = vmatmul.mubr.f32.gmra.mxu0 %v3671
        %v3673 = vpop.f32.mrf.mxu0
        %v3674 = vadd.f32 %v3484, %v3673
        %v3675 = vpop.f32.mrf.mxu0
        %3676 = vmatprep.mubr.f32.mxu0 0.0
        %v3677 = vand.u32 %v2722, 4294901760
        %3678 = vmatmul.mubr.f32.gmra.mxu0 %v3677
        %v3679 = vpop.f32.mrf.mxu0
        %v3680 = vadd.f32 %v3492, %v3679
        %v3681 = vpop.f32.mrf.mxu0
        %3682 = vmatprep.mubr.f32.mxu0 0.0
        %v3683 = vand.u32 %v2725, 4294901760
        %3684 = vmatmul.mubr.f32.gmra.mxu0 %v3683
        %v3685 = vpop.f32.mrf.mxu0
        %v3686 = vadd.f32 %v3500, %v3685
        %v3687 = vpop.f32.mrf.mxu0
        %3688 = vmatprep.mubr.f32.mxu0 0.0
        %v3689 = vand.u32 %v2728, 4294901760
        %3690 = vmatmul.mubr.f32.gmra.mxu0 %v3689
        %v3691 = vpop.f32.mrf.mxu0
        %v3692 = vadd.f32 %v3508, %v3691
        %v3693 = vpop.f32.mrf.mxu0
        %3694 = vmatprep.mubr.f32.mxu0 0.0
        %v3695 = vand.u32 %v2731, 4294901760
        %3696 = vmatmul.mubr.f32.gmra.mxu0 %v3695
        %v3697 = vpop.f32.mrf.mxu0
        %v3698 = vadd.f32 %v3516, %v3697
        %v3699 = vpop.f32.mrf.mxu0
        %3700 = vmatprep.mubr.f32.mxu0 0.0
        %v3701 = vand.u32 %v2734, 4294901760
        %3702 = vmatmul.mubr.f32.gmra.mxu0 %v3701
        %v3703 = vpop.f32.mrf.mxu0
        %v3704 = vadd.f32 %v3524, %v3703
        %v3705 = vpop.f32.mrf.mxu0
        %3706 = vmatprep.mubr.f32.mxu0 0.0
        %v3707 = vand.u32 %v2737, 4294901760
        %3708 = vmatmul.mubr.f32.gmra.mxu0 %v3707
        %v3709 = vpop.f32.mrf.mxu0
        %v3710 = vadd.f32 %v3532, %v3709
        %v3711 = vpop.f32.mrf.mxu0
        %3712 = vmatprep.mubr.f32.mxu0 0.0
        %v3713 = vand.u32 %v2740, 4294901760
        %3714 = vmatmul.mubr.f32.gmra.mxu0 %v3713
        %v3715 = vpop.f32.mrf.mxu0
        %v3716 = vadd.f32 %v3540, %v3715
        %v3717 = vpop.f32.mrf.mxu0
        %3718 = vdwg.mxu0
        %3719 = vmatprep.subr.mxu0 0.0
        %3720 = vmatpush1.msra.mxu0 0.0
        %3721 = vmatprep.subr.mxu0 0.0
        %3722 = vmatpush1.msra.mxu0 0.0
        %3723 = vmatprep.subr.mxu0 0.0
        %3724 = vmatpush1.msra.mxu0 0.0
        %3725 = vmatprep.subr.mxu0 0.0
        %3726 = vmatpush1.msra.mxu0 0.0
        %3727 = vmatprep.subr.mxu0 0.0
        %3728 = vmatpush1.msra.mxu0 0.0
        %3729 = vmatprep.subr.mxu0 0.0
        %3730 = vmatpush1.msra.mxu0 0.0
        %3731 = vmatprep.subr.mxu0 0.0
        %3732 = vmatpush1.msra.mxu0 0.0
        %3733 = vmatprep.subr.mxu0 0.0
        %3734 = vmatpush1.msra.mxu0 0.0
        %3735 = vmatprep.subr.mxu0 0.0
        %3736 = vmatpush1.msra.mxu0 0.0
        %3737 = vmatprep.subr.mxu0 0.0
        %3738 = vmatpush1.msra.mxu0 0.0
        %3739 = vmatprep.subr.mxu0 0.0
        %3740 = vmatpush1.msra.mxu0 0.0
        %3741 = vmatprep.subr.mxu0 0.0
        %v3742 = vand.u32 %v1101, 4294901760
        %3743 = vmatpush1.msra.mxu0 %v3742
        %3744 = vmatprep.subr.mxu0 0.0
        %v3745 = vand.u32 %v432, 4294901760
        %3746 = vmatpush1.msra.mxu0 %v3745
        %3747 = vmatprep.subr.mxu0 0.0
        %v3748 = vand.u32 %v431, 4294901760
        %3749 = vmatpush1.msra.mxu0 %v3748
        %3750 = vmatprep.subr.mxu0 0.0
        %v3751 = vand.u32 %v430, 4294901760
        %3752 = vmatpush1.msra.mxu0 %v3751
        %3753 = vmatprep.subr.mxu0 0.0
        %v3754 = vand.u32 %v429, 4294901760
        %3755 = vmatpush1.msra.mxu0 %v3754
        %3756 = vmatprep.subr.mxu0 0.0
        %3757 = vmatpush2.msra.mxu0 0.0
        %3758 = vmatprep.subr.mxu0 0.0
        %3759 = vmatpush2.msra.mxu0 0.0
        %3760 = vmatprep.subr.mxu0 0.0
        %3761 = vmatpush2.msra.mxu0 0.0
        %3762 = vmatprep.subr.mxu0 0.0
        %3763 = vmatpush2.msra.mxu0 0.0
        %3764 = vmatprep.subr.mxu0 0.0
        %3765 = vmatpush2.msra.mxu0 0.0
        %3766 = vmatprep.subr.mxu0 0.0
        %3767 = vmatpush2.msra.mxu0 0.0
        %3768 = vmatprep.subr.mxu0 0.0
        %3769 = vmatpush2.msra.mxu0 0.0
        %3770 = vmatprep.subr.mxu0 0.0
        %3771 = vmatpush2.msra.mxu0 0.0
        %3772 = vmatprep.subr.mxu0 0.0
        %3773 = vmatpush2.msra.mxu0 0.0
        %3774 = vmatprep.subr.mxu0 0.0
        %3775 = vmatpush2.msra.mxu0 0.0
        %3776 = vmatprep.subr.mxu0 0.0
        %3777 = vmatpush2.msra.mxu0 0.0
        %3778 = vmatprep.subr.mxu0 0.0
        %3779 = vmatpush2.msra.mxu0 0.0
        %3780 = vmatprep.subr.mxu0 0.0
        %3781 = vmatpush2.msra.mxu0 0.0
        %3782 = vmatprep.subr.mxu0 0.0
        %3783 = vmatpush2.msra.mxu0 0.0
        %3784 = vmatprep.subr.mxu0 0.0
        %3785 = vmatpush2.msra.mxu0 0.0
        %3786 = vmatprep.subr.mxu0 0.0
        %3787 = vmatpush2.msra.mxu0 0.0
        %3788 = vmatprep.mubr.f32.mxu0 0.0
        %v3789 = vand.u32 %v2695, 4294901760
        %3790 = vmatmul.mubr.f32.gmra.mxu0 %v3789
        %v3791 = vpop.f32.mrf.mxu0
        %v3792 = vadd.f32 %v3626, %v3791
        %v3793 = vpop.f32.mrf.mxu0
        %3794 = vmatprep.mubr.f32.mxu0 0.0
        %v3795 = vand.u32 %v2698, 4294901760
        %3796 = vmatmul.mubr.f32.gmra.mxu0 %v3795
        %v3797 = vpop.f32.mrf.mxu0
        %v3798 = vadd.f32 %v3632, %v3797
        %v3799 = vpop.f32.mrf.mxu0
        %3800 = vmatprep.mubr.f32.mxu0 0.0
        %v3801 = vand.u32 %v2701, 4294901760
        %3802 = vmatmul.mubr.f32.gmra.mxu0 %v3801
        %v3803 = vpop.f32.mrf.mxu0
        %v3804 = vadd.f32 %v3638, %v3803
        %v3805 = vpop.f32.mrf.mxu0
        %3806 = vmatprep.mubr.f32.mxu0 0.0
        %v3807 = vand.u32 %v2704, 4294901760
        %3808 = vmatmul.mubr.f32.gmra.mxu0 %v3807
        %v3809 = vpop.f32.mrf.mxu0
        %v3810 = vadd.f32 %v3644, %v3809
        %v3811 = vpop.f32.mrf.mxu0
        %3812 = vmatprep.mubr.f32.mxu0 0.0
        %v3813 = vand.u32 %v2707, 4294901760
        %3814 = vmatmul.mubr.f32.gmra.mxu0 %v3813
        %v3815 = vpop.f32.mrf.mxu0
        %v3816 = vadd.f32 %v3650, %v3815
        %v3817 = vpop.f32.mrf.mxu0
        %3818 = vmatprep.mubr.f32.mxu0 0.0
        %v3819 = vand.u32 %v2710, 4294901760
        %3820 = vmatmul.mubr.f32.gmra.mxu0 %v3819
        %v3821 = vpop.f32.mrf.mxu0
        %v3822 = vadd.f32 %v3656, %v3821
        %v3823 = vpop.f32.mrf.mxu0
        %3824 = vmatprep.mubr.f32.mxu0 0.0
        %v3825 = vand.u32 %v2713, 4294901760
        %3826 = vmatmul.mubr.f32.gmra.mxu0 %v3825
        %v3827 = vpop.f32.mrf.mxu0
        %v3828 = vadd.f32 %v3662, %v3827
        %v3829 = vpop.f32.mrf.mxu0
        %3830 = vmatprep.mubr.f32.mxu0 0.0
        %v3831 = vand.u32 %v2716, 4294901760
        %3832 = vmatmul.mubr.f32.gmra.mxu0 %v3831
        %v3833 = vpop.f32.mrf.mxu0
        %v3834 = vadd.f32 %v3668, %v3833
        %v3835 = vpop.f32.mrf.mxu0
        %3836 = vmatprep.mubr.f32.mxu0 0.0
        %v3837 = vand.u32 %v2719, 4294901760
        %3838 = vmatmul.mubr.f32.gmra.mxu0 %v3837
        %v3839 = vpop.f32.mrf.mxu0
        %v3840 = vadd.f32 %v3674, %v3839
        %v3841 = vpop.f32.mrf.mxu0
        %3842 = vmatprep.mubr.f32.mxu0 0.0
        %v3843 = vand.u32 %v2722, 4294901760
        %3844 = vmatmul.mubr.f32.gmra.mxu0 %v3843
        %v3845 = vpop.f32.mrf.mxu0
        %v3846 = vadd.f32 %v3680, %v3845
        %v3847 = vpop.f32.mrf.mxu0
        %3848 = vmatprep.mubr.f32.mxu0 0.0
        %v3849 = vand.u32 %v2725, 4294901760
        %3850 = vmatmul.mubr.f32.gmra.mxu0 %v3849
        %v3851 = vpop.f32.mrf.mxu0
        %v3852 = vadd.f32 %v3686, %v3851
        %v3853 = vpop.f32.mrf.mxu0
        %3854 = vmatprep.mubr.f32.mxu0 0.0
        %v3855 = vand.u32 %v2728, 4294901760
        %3856 = vmatmul.mubr.f32.gmra.mxu0 %v3855
        %v3857 = vpop.f32.mrf.mxu0
        %v3858 = vadd.f32 %v3692, %v3857
        %v3859 = vpop.f32.mrf.mxu0
        %3860 = vmatprep.mubr.f32.mxu0 0.0
        %v3861 = vand.u32 %v2731, 4294901760
        %3862 = vmatmul.mubr.f32.gmra.mxu0 %v3861
        %v3863 = vpop.f32.mrf.mxu0
        %v3864 = vadd.f32 %v3698, %v3863
        %v3865 = vpop.f32.mrf.mxu0
        %3866 = vmatprep.mubr.f32.mxu0 0.0
        %v3867 = vand.u32 %v2734, 4294901760
        %3868 = vmatmul.mubr.f32.gmra.mxu0 %v3867
        %v3869 = vpop.f32.mrf.mxu0
        %v3870 = vadd.f32 %v3704, %v3869
        %v3871 = vpop.f32.mrf.mxu0
        %3872 = vmatprep.mubr.f32.mxu0 0.0
        %v3873 = vand.u32 %v2737, 4294901760
        %3874 = vmatmul.mubr.f32.gmra.mxu0 %v3873
        %v3875 = vpop.f32.mrf.mxu0
        %v3876 = vadd.f32 %v3710, %v3875
        %v3877 = vpop.f32.mrf.mxu0
        %3878 = vmatprep.mubr.f32.mxu0 0.0
        %v3879 = vand.u32 %v2740, 4294901760
        %3880 = vmatmul.mubr.f32.gmra.mxu0 %v3879
        %v3881 = vpop.f32.mrf.mxu0
        %v3882 = vadd.f32 %v3716, %v3881
        %v3883 = vpop.f32.mrf.mxu0
        %3884 = vdwg.mxu0
        %3893 = vrot.lane.b32.xlu0 %v3792, 2
        %v3894 = vpop.permute.xlu0 %3893
        %3895 = vrot.lane.b32.xlu0 %v3804, 2
        %v3896 = vpop.permute.xlu0 %3895
        %3897 = vrot.lane.b32.xlu0 %v3816, 2
        %v3898 = vpop.permute.xlu0 %3897
        %3899 = vrot.lane.b32.xlu0 %v3828, 2
        %v3900 = vpop.permute.xlu0 %3899
        %3901 = vrot.lane.b32.xlu0 %v3840, 2
        %v3902 = vpop.permute.xlu0 %3901
        %3903 = vrot.lane.b32.xlu0 %v3852, 2
        %v3904 = vpop.permute.xlu0 %3903
        %3905 = vrot.lane.b32.xlu0 %v3864, 2
        %v3906 = vpop.permute.xlu0 %3905
        %3907 = vrot.lane.b32.xlu0 %v3876, 2
        %v3908 = vpop.permute.xlu0 %3907
        %3925 = vrot.lane.b32.xlu0 %v2159, 4
        %v3926 = vpop.permute.xlu0 %3925
        %3927 = vrot.lane.b32.xlu0 %v2171, 4
        %v3928 = vpop.permute.xlu0 %3927
        %3929 = vrot.lane.b32.xlu0 %v2183, 4
        %v3930 = vpop.permute.xlu0 %3929
        %3931 = vrot.lane.b32.xlu0 %v2195, 4
        %v3932 = vpop.permute.xlu0 %3931
        %3933 = vrot.lane.b32.xlu0 %v2207, 4
        %v3934 = vpop.permute.xlu0 %3933
        %3935 = vrot.lane.b32.xlu0 %v2219, 4
        %v3936 = vpop.permute.xlu0 %3935
        %3937 = vrot.lane.b32.xlu0 %v2231, 4
        %v3938 = vpop.permute.xlu0 %3937
        %3939 = vrot.lane.b32.xlu0 %v2243, 4
        %v3940 = vpop.permute.xlu0 %3939
        %3957 = vrot.lane.b32.xlu0 %v3798, 6
        %v3958 = vpop.permute.xlu0 %3957
        %3959 = vrot.lane.b32.xlu0 %v3810, 6
        %v3960 = vpop.permute.xlu0 %3959
        %3961 = vrot.lane.b32.xlu0 %v3822, 6
        %v3962 = vpop.permute.xlu0 %3961
        %3963 = vrot.lane.b32.xlu0 %v3834, 6
        %v3964 = vpop.permute.xlu0 %3963
        %3965 = vrot.lane.b32.xlu0 %v3846, 6
        %v3966 = vpop.permute.xlu0 %3965
        %3967 = vrot.lane.b32.xlu0 %v3858, 6
        %v3968 = vpop.permute.xlu0 %3967
        %3969 = vrot.lane.b32.xlu0 %v3870, 6
        %v3970 = vpop.permute.xlu0 %3969
        %3971 = vrot.lane.b32.xlu0 %v3882, 6
        %v3972 = vpop.permute.xlu0 %3971
        %vm3981 = vcmask 15360
        %v3982 = vsel %vm3981, %v2153, %v3894
        %v3983 = vsel %vm3981, %v2165, %v3896
        %v3984 = vsel %vm3981, %v2177, %v3898
        %v3985 = vsel %vm3981, %v2189, %v3900
        %v3986 = vsel %vm3981, %v2201, %v3902
        %v3987 = vsel %vm3981, %v2213, %v3904
        %v3988 = vsel %vm3981, %v2225, %v3906
        %v3989 = vsel %vm3981, %v2237, %v3908
        %v3990 = vsel %vm915, %v3982, %v3926
        %v3991 = vsel %vm915, %v3983, %v3928
        %v3992 = vsel %vm915, %v3984, %v3930
        %v3993 = vsel %vm915, %v3985, %v3932
        %v3994 = vsel %vm915, %v3986, %v3934
        %v3995 = vsel %vm915, %v3987, %v3936
        %v3996 = vsel %vm915, %v3988, %v3938
        %v3997 = vsel %vm915, %v3989, %v3940
        %vm3998 = vcmask 48128
        %v3999 = vsel %vm3998, %v3990, %v3958
        %v4000 = vsel %vm3998, %v3991, %v3960
        %v4001 = vsel %vm3998, %v3992, %v3962
        %v4002 = vsel %vm3998, %v3993, %v3964
        %v4003 = vsel %vm3998, %v3994, %v3966
        %v4004 = vsel %vm3998, %v3995, %v3968
        %v4005 = vsel %vm3998, %v3996, %v3970
        %v4006 = vsel %vm3998, %v3997, %v3972
        %4007 = vst.msk [vmem:[%s301] sm:$0xff] %vm345, %v3999
        %4008 = vst.msk [vmem:[%s301 + $0x8] sm:$0xff] %vm345, %v4000
        %4009 = vst.msk [vmem:[%s301 + $0x10] sm:$0xff] %vm345, %v4001
        %4010 = vst.msk [vmem:[%s301 + $0x18] sm:$0xff] %vm345, %v4002
        %4011 = vst.msk [vmem:[%s301 + $0x20] sm:$0xff] %vm345, %v4003
        %4012 = vst.msk [vmem:[%s301 + $0x28] sm:$0xff] %vm345, %v4004
        %4013 = vst.msk [vmem:[%s301 + $0x30] sm:$0xff] %vm345, %v4005
        %4014 = vst.msk [vmem:[%s301 + $0x38] sm:$0xff] %vm345, %v4006
        %s4015 = sand.u32 %s161, 1
        %s4016 = scalar_lea.sflag [#allocation4], %s4015
        %s4017 = sand.u32 %s161, 1
        %s4018 = smul.addr %s4017, 64
        %s4019 = scalar_lea.vmem [#allocation3], %s4018
        // Predicated region
        $region45: #{tpu_custom_call.1} parent=35 // pred_check
          %p4020 = pneg %p171
        $region46: #{tpu_custom_call.1} parent=35 // pred_check_branch
          %4022 = sbr.rel (%p4020) target = $region48
        $region47: #{tpu_custom_call.1} parent=35 // pred_region
          %s4023 = smul.u32 8, %s23
          %s4025 = ssub.s32 1024, 1024
          %4026 = vsyncadd %s4016, %s4025
          %s4027 = smul.addr %s22, 8
          %s4028 = sadd.s32 %s4023, %s4027
          %s4029 = smul.addr %s4028, 128
          %s4030 = scalar_lea.hbm %s4, %s4029
          %s4031 = sshll.u32 %s4019, 4
          %s4032 = int_to_ptr.vmem [resolvable:$true] %s4031
          %4037 = dma.vmem_to_hbm [thread:$0]  %s4032, 1024, %s4030, %s4016, 128, 128, 8
        $region48: #{tpu_custom_call.1} parent=35 // pred_fallthru
          _
      $region36: #{tpu_custom_call.1} parent=5 // pred_fallthru
        _
      %p4038 = scmp.le.s32.totalorder 2, %s13
      // Predicated region
      $region49: #{tpu_custom_call.1} parent=5 // pred_check
        %p4039 = pneg %p4038
      $region50: #{tpu_custom_call.1} parent=5 // pred_check_branch
        %4041 = sbr.rel (%p4039) target = $region52
      $region51: #{tpu_custom_call.1} parent=5 // pred_region
        %s4042 = ssub.s32 %s13, 2
        // Predicated region
        $region53: #{tpu_custom_call.1} parent=51 // pred_check
          %p4043 = pneg %p177
        $region54: #{tpu_custom_call.1} parent=51 // pred_check_branch
          %4045 = sbr.rel (%p4043) target = $region56
        $region55: #{tpu_custom_call.1} parent=51 // pred_region
          %s4046 = sand.u32 %s162, 1
          %s4047 = scalar_lea.sflag [#allocation4], %s4046
          %s4048 = sand.u32 %s162, 1
          %s4049 = smul.addr %s4048, 64
          %s4050 = scalar_lea.vmem [#allocation3], %s4049
          %4051 = dma.done %s4047, 1024
        $region56: #{tpu_custom_call.1} parent=51 // pred_fallthru
          _
      $region52: #{tpu_custom_call.1} parent=5 // pred_fallthru
        _
    $region6: #{tpu_custom_call.1} parent=1 // loop_footer
      %s17 = sadd.s32 1, %s13
    $region7: #{tpu_custom_call.1} parent=1 // loop_footer_branch
      %12 = sbr.rel target = $region3
    $region8: #{tpu_custom_call.1} parent=1 // loop_exit
      _
    %4052 = vsyncpa [#allocation4], 1
    %s4053 = scalar_lea.sflag [#allocation4], 1
    %4054 = vsyncpa %s4053, 1

</llo_original>
